<compile_context>
chip_gen: v5e
topology: v5e:2x2
jax: 0.10.0
libtpu: 0.0.40
codegen_flags: <defaults>
</compile_context>

<pallas_src>
import jax
import jax.numpy as jnp
from jax import lax
from jax.experimental import pallas as pl
from jax.experimental.pallas import tpu as pltpu

# ----- static sizes (small, consistent with model1's forward) -----
B = 2            # documents per batch
S = 8            # sentences per document (max_num_sent)
T = 16           # tokens per sentence
VOCAB = 100      # proxy vocab
EMB = 768        # embedding_dim (RoBERTa CLS width)
TOPICS = 53      # num_topics (hdp features)
DIN = EMB + TOPICS
H = 32           # hidden_dim_doc
K = 15           # tagset_size = len(tag_to_ix)
NEG = -1e9       # "minus infinity" for masked Viterbi steps

GW = 128         # padded width of one gate group / packed hidden state (lane-aligned)
NGATE = 4        # i, f, o, g  (sigmoid gates contiguous)
GWID = NGATE * GW    # 512

# ----- constant-slab row offsets (8-aligned for the larger blocks) -----
R_H0 = 0                 # rows 0:2    packed initial hidden [B, GW]
R_C0 = 8                 # rows 8:10   packed initial cell   [B, GW]
R_WOUT = 16              # rows 16:144 hidden2tag weight     [GW, GW] (lanes >= K zero)
R_BOUT = 144             # row 144     hidden2tag bias       [1, K]
R_START = 145            # row 145     CRF start transitions [1, K]
R_END = 146              # row 146     CRF end transitions   [1, K]
R_TRANS = 152            # rows 152:167 CRF transitions      [K, K]
SLAB_ROWS = 168


def _bilstm_crf_kernel(g_ref,       # [S*B, 4*GW] f32  precomputed gate inputs (rows t*B+b)
                       mask_ref,    # [S*B, 1]    f32  sentence validity mask
                       slab_ref,    # [SLAB_ROWS, GW] f32 packed constant parameters
                       whh_ref,     # [GW, 4*GW]  bf16 block-structured recurrent weight
                       tags_ref):   # out [B, S]  int32
    f32 = jnp.float32
    bf16 = jnp.bfloat16

    # ---- unpack the constant slab (one DMA, static slices) ----
    h = slab_ref[R_H0:R_H0 + B, :]                  # [B, GW]  (fwd | rev | zero-pad)
    c = slab_ref[R_C0:R_C0 + B, :]
    wout = slab_ref[R_WOUT:R_WOUT + GW, :]          # [GW, GW]
    bout = slab_ref[R_BOUT:R_BOUT + 1, 0:K]         # [1, K]
    start = slab_ref[R_START:R_START + 1, 0:K]      # [1, K]
    end = slab_ref[R_END:R_END + 1, 0:K]            # [1, K]
    trans = slab_ref[R_TRANS:R_TRANS + K, 0:K]      # [K, K]

    whh = whh_ref[...]                              # [GW, 4*GW] bf16
    g_all = g_ref[...]                              # [S*B, 4*GW]
    mask_all = mask_ref[...]                        # [S*B, 1]

    # ---- fused bidirectional LSTM: both docs + both directions in one chain ----
    # hidden state packed [h_fwd | h_rev | 0]; gate groups (each GW lanes) ordered
    # i | f | o | g so the sigmoid gates are one contiguous EUP sweep.
    hs = []
    for t in range(S):                               # tiny static loop, fully unrolled
        gt = g_all[t * B:(t + 1) * B, :] + jnp.dot(
            h.astype(bf16), whh, preferred_element_type=f32)      # [B, 4*GW]
        sg = jax.nn.sigmoid(gt[:, 0:3 * GW])
        ig = sg[:, 0:GW]
        fg = sg[:, GW:2 * GW]
        og = sg[:, 2 * GW:3 * GW]
        gg = jnp.tanh(gt[:, 3 * GW:4 * GW])
        c = fg * c + ig * gg
        h = og * jnp.tanh(c)
        hs.append(h)                                 # kept in vregs, no VMEM scratch

    # re-assemble per-time hidden: fwd half from step t, rev half from step S-1-t
    lane = lax.broadcasted_iota(jnp.int32, (B, GW), 1)
    take_fwd = lane < H
    hall = jnp.concatenate(
        [jnp.where(take_fwd, hs[t], hs[S - 1 - t]) for t in range(S)], axis=0)  # [S*B, GW]

    # ---- hidden2tag: one MXU matmul ----
    em = jnp.dot(hall, wout, preferred_element_type=f32)[:, 0:K] + bout         # [S*B, K]

    # ---- CRF Viterbi decode (torchcrf semantics), both documents per step ----
    row_i = lax.broadcasted_iota(jnp.int32, (K, K), 0)
    col_j = lax.broadcasted_iota(jnp.int32, (K, K), 1)
    diag_hold = jnp.where(row_i == col_j, 0.0, NEG).astype(f32)   # identity step
    iota_prev = lax.broadcasted_iota(jnp.int32, (B, K, K), 1)
    lane_k = lax.broadcasted_iota(jnp.int32, (B, K), 1)

    score = start + em[0:B, :]                       # [B, K], time 0
    hist = []
    for t in range(1, S):
        valid = mask_all[t * B:(t + 1) * B, :]       # [B, 1]
        v3 = valid[:, :, None]                       # [B, 1, 1]
        # masked step -> exact identity: 0/-inf diagonal transition, zero emission
        trans_t = v3 * trans[None, :, :] + (1.0 - v3) * diag_hold[None, :, :]   # [B,K,K]
        m = score[:, :, None] + trans_t              # m[b, i_prev, j_next]
        best = jnp.max(m, axis=1)                    # [B, K]
        bp = jnp.min(jnp.where(m >= best[:, None, :], iota_prev, K), axis=1)    # [B, K]
        score = best + valid * em[t * B:(t + 1) * B, :]
        hist.append(bp)

    # add end transitions and pick the best last tag (both docs at once)
    score = score + end
    best_val = jnp.max(score, axis=1, keepdims=True)                            # [B, 1]
    cur = jnp.min(jnp.where(score >= best_val, lane_k, K), axis=1, keepdims=True)  # [B,1]

    # traceback (padding steps have identity backpointers -> last valid tag repeats)
    iota_s = lax.broadcasted_iota(jnp.int32, (B, S), 1)
    tags = jnp.where(iota_s == (S - 1), cur, jnp.zeros((B, S), jnp.int32))
    for t in range(S - 2, -1, -1):
        bp = hist[t]                                 # backpointers of step t+1
        cur = jnp.sum(jnp.where(lane_k == cur, bp, 0), axis=1, keepdims=True)   # [B, 1]
        tags = jnp.where(iota_s == t, cur, tags)

    tags_ref[...] = tags


def _make_params(key):
    ks = jax.random.split(key, 16)

    def init(k, shape, scale):
        return (scale * jax.random.normal(k, shape)).astype(jnp.float32)

    s_lstm = 1.0 / jnp.sqrt(H)
    p = {}
    # nn.LSTM (bidirectional, 1 layer): weights stored transposed for matmul use
    p["wihf"] = init(ks[0], (DIN, 4 * H), s_lstm)          # W_ih_l0.T (gate order i,f,g,o)
    p["whhf"] = init(ks[1], (H, 4 * H), s_lstm)            # W_hh_l0.T
    p["bf"] = init(ks[2], (1, 4 * H), s_lstm)              # b_ih_l0 + b_hh_l0
    p["wihr"] = init(ks[3], (DIN, 4 * H), s_lstm)          # reverse direction
    p["whhr"] = init(ks[4], (H, 4 * H), s_lstm)
    p["br"] = init(ks[5], (1, 4 * H), s_lstm)
    # hidden2tag: Linear(2H, K)
    p["w_h2t"] = init(ks[6], (K, 2 * H), 0.1)              # PyTorch weight [K, 2H]
    p["bout"] = init(ks[7], (1, K), 0.1)
    # CRF parameters (torchcrf: start/end/transitions)
    p["crf_start"] = init(ks[8], (1, K), 0.1)
    p["crf_end"] = init(ks[9], (1, K), 0.1)
    p["crf_trans"] = init(ks[10], (K, K), 0.1)
    # init_hidden_doc uses torch.randn -> deterministic normals here
    p["h0f"] = init(ks[11], (B, H), 1.0)
    p["c0f"] = init(ks[12], (B, H), 1.0)
    p["h0r"] = init(ks[13], (B, H), 1.0)
    p["c0r"] = init(ks[14], (B, H), 1.0)
    # TODO(synk): RobertaModel.from_pretrained('/roberta_ildc_pretrain/...') cannot be
    # loaded; its CLS embedding is replaced by a deterministic embedding table +
    # masked mean-pool proxy (glue in model1_forward).
    p["emb_table"] = init(ks[15], (VOCAB, EMB), 0.02)
    return p


def prepare_params(params):
    """One-time packing of all constant parameters (hoisted out of the forward)."""
    f32 = jnp.float32
    bf16 = jnp.bfloat16
    order = (0, 1, 3, 2)     # torch gate order i,f,g,o  ->  kernel order i,f,o,g

    def pack_cols(wf, wr):
        # [rows, 4H] fwd/rev (torch gate order) -> [rows, 4*GW], each gate group is
        # [fwd(0:H) | rev(H:2H) | zeros] and padded to a full 128-lane group.
        rows = wf.shape[0]
        out = jnp.zeros((rows, GWID), f32)
        for k, gi in enumerate(order):
            out = out.at[:, k * GW:k * GW + H].set(wf[:, gi * H:(gi + 1) * H])
            out = out.at[:, k * GW + H:k * GW + 2 * H].set(wr[:, gi * H:(gi + 1) * H])
        return out

    wih_wide = pack_cols(params["wihf"], params["wihr"]).astype(bf16)    # [DIN, 512]
    bias_wide = pack_cols(params["bf"], params["br"])                    # [1, 512]

    # block-structured recurrent weight: rows 0:H drive fwd gates, rows H:2H rev gates
    whh_wide = jnp.zeros((GW, GWID), f32)
    for k, gi in enumerate(order):
        whh_wide = whh_wide.at[0:H, k * GW:k * GW + H].set(
            params["whhf"][:, gi * H:(gi + 1) * H])
        whh_wide = whh_wide.at[H:2 * H, k * GW + H:k * GW + 2 * H].set(
            params["whhr"][:, gi * H:(gi + 1) * H])
    whh_wide = whh_wide.astype(bf16)                                     # [128, 512]

    # constant slab (single f32 DMA)
    h0 = (jnp.zeros((B, GW), f32)
          .at[:, 0:H].set(params["h0f"]).at[:, H:2 * H].set(params["h0r"]))
    c0 = (jnp.zeros((B, GW), f32)
          .at[:, 0:H].set(params["c0f"]).at[:, H:2 * H].set(params["c0r"]))
    wout = jnp.zeros((GW, GW), f32).at[0:2 * H, 0:K].set(jnp.transpose(params["w_h2t"]))

    slab = jnp.zeros((SLAB_ROWS, GW), f32)
    slab = slab.at[R_H0:R_H0 + B, :].set(h0)
    slab = slab.at[R_C0:R_C0 + B, :].set(c0)
    slab = slab.at[R_WOUT:R_WOUT + GW, :].set(wout)
    slab = slab.at[R_BOUT, 0:K].set(params["bout"][0])
    slab = slab.at[R_START, 0:K].set(params["crf_start"][0])
    slab = slab.at[R_END, 0:K].set(params["crf_end"][0])
    slab = slab.at[R_TRANS:R_TRANS + K, 0:K].set(params["crf_trans"])

    return {"emb_table": params["emb_table"], "wih_wide": wih_wide,
            "bias_wide": bias_wide, "whh_wide": whh_wide, "slab": slab}


def model1_forward(document, masks, hdp_feats, prepped):
    f32 = jnp.float32
    bf16 = jnp.bfloat16

    # ---- glue: proxy frozen sentence encoder (replaces RoBERTa CLS) ----
    tok_emb = prepped["emb_table"][document]                              # [B, S, T, EMB]
    mf = masks.astype(f32)[..., None]
    cls = (tok_emb * mf).sum(axis=2) / jnp.maximum(mf.sum(axis=2), 1.0)   # [B, S, EMB]
    x = jnp.concatenate([cls, hdp_feats.astype(f32)], axis=-1)            # [B, S, DIN]
    # CRF mask: torch.sum(masks, 2) >= 1
    sent_mask = (masks.sum(axis=-1) >= 1).astype(f32)                     # [B, S]

    # ---- input projection for BOTH directions: one bf16 MXU matmul outside the kernel
    g = jnp.dot(x.astype(bf16), prepped["wih_wide"],
                preferred_element_type=f32) + prepped["bias_wide"]        # [B, S, 512]
    # reverse-direction lanes consume time S-1-t: select the time-flipped copy there
    lane = jnp.arange(GWID) % GW
    g = jnp.where((lane < H)[None, None, :], g, g[:, ::-1, :])
    g_in = jnp.transpose(g, (1, 0, 2)).reshape(S * B, GWID)               # rows t*B+b
    mask_v = jnp.transpose(sent_mask, (1, 0)).reshape(S * B, 1)           # rows t*B+b

    vmem = pl.BlockSpec(memory_space=pltpu.MemorySpace.VMEM)
    tags = pl.pallas_call(
        _bilstm_crf_kernel,
        out_shape=jax.ShapeDtypeStruct((B, S), jnp.int32),
        in_specs=[vmem, vmem, vmem, vmem],
        out_specs=vmem,
    )(g_in, mask_v, prepped["slab"], prepped["whh_wide"])
    # torchcrf returns variable-length lists; here: fixed [B, S] tag matrix
    # (positions past a document's last valid sentence repeat the last valid tag).
    return tags


if __name__ == "__main__":
    key = jax.random.PRNGKey(0)
    kd, km, kh, kp = jax.random.split(key, 4)

    document = jax.random.randint(kd, (B, S, T), 0, VOCAB, dtype=jnp.int32)
    lengths = jax.random.randint(km, (B, S), 4, T + 1)
    masks = (jnp.arange(T)[None, None, :] < lengths[..., None]).astype(jnp.int32)
    hdp_feats = jax.random.normal(kh, (B, S, TOPICS), dtype=jnp.float32)

    params = _make_params(kp)
    prepped = prepare_params(params)     # one-time parameter packing (not per-forward)

    tags = jax.jit(model1_forward)(document, masks, hdp_feats, prepped)
    tags = jax.block_until_ready(tags)

    assert tags.shape == (B, S) and tags.dtype == jnp.int32
    assert bool(jnp.all(tags >= 0)) and bool(jnp.all(tags < K))
    print("KERNEL_OK")
</pallas_src>

<mosaic_0001>
module attributes {stable_mosaic.version = 11 : i64} {
  func.func @_bilstm_crf_kernel(%arg0: memref<16x512xf32, #tpu.memory_space<vmem>>, %arg1: memref<16x1xf32, #tpu.memory_space<vmem>>, %arg2: memref<168x128xf32, #tpu.memory_space<vmem>>, %arg3: memref<128x512xbf16, #tpu.memory_space<vmem>>, %arg4: memref<2x8xi32, #tpu.memory_space<vmem>>) attributes {dimension_semantics = [], scalar_prefetch = 0 : i64, scratch_operands = 0 : i64, tpu.core_type = #tpu.core_type<tc>} {
    %c0 = arith.constant 0 : index
    %c0_0 = arith.constant 0 : index
    %0 = vector.load %arg2[%c0, %c0_0] : memref<168x128xf32, #tpu.memory_space<vmem>>, vector<2x128xf32>
    %c8 = arith.constant 8 : index
    %c0_1 = arith.constant 0 : index
    %1 = vector.load %arg2[%c8, %c0_1] : memref<168x128xf32, #tpu.memory_space<vmem>>, vector<2x128xf32>
    %c16 = arith.constant 16 : index
    %c0_2 = arith.constant 0 : index
    %2 = vector.load %arg2[%c16, %c0_2] : memref<168x128xf32, #tpu.memory_space<vmem>>, vector<128x128xf32>
    %c144 = arith.constant 144 : index
    %c0_3 = arith.constant 0 : index
    %3 = vector.load %arg2[%c144, %c0_3] : memref<168x128xf32, #tpu.memory_space<vmem>>, vector<1x15xf32>
    %c145 = arith.constant 145 : index
    %c0_4 = arith.constant 0 : index
    %4 = vector.load %arg2[%c145, %c0_4] : memref<168x128xf32, #tpu.memory_space<vmem>>, vector<1x15xf32>
    %c146 = arith.constant 146 : index
    %c0_5 = arith.constant 0 : index
    %5 = vector.load %arg2[%c146, %c0_5] : memref<168x128xf32, #tpu.memory_space<vmem>>, vector<1x15xf32>
    %c152 = arith.constant 152 : index
    %c0_6 = arith.constant 0 : index
    %6 = vector.load %arg2[%c152, %c0_6] : memref<168x128xf32, #tpu.memory_space<vmem>>, vector<15x15xf32>
    %c0_7 = arith.constant 0 : index
    %c0_8 = arith.constant 0 : index
    %7 = vector.load %arg3[%c0_7, %c0_8] : memref<128x512xbf16, #tpu.memory_space<vmem>>, vector<128x512xbf16>
    %c0_9 = arith.constant 0 : index
    %c0_10 = arith.constant 0 : index
    %8 = vector.load %arg0[%c0_9, %c0_10] : memref<16x512xf32, #tpu.memory_space<vmem>>, vector<16x512xf32>
    %c0_11 = arith.constant 0 : index
    %c0_12 = arith.constant 0 : index
    %9 = vector.load %arg1[%c0_11, %c0_12] : memref<16x1xf32, #tpu.memory_space<vmem>>, vector<16x1xf32>
    %10 = vector.extract_strided_slice %8 {offsets = [0, 0], sizes = [2, 512], strides = [1, 1]} : vector<16x512xf32> to vector<2x512xf32>
    %11 = arith.truncf %0 : vector<2x128xf32> to vector<2x128xbf16>
    %cst = arith.constant dense<0.000000e+00> : vector<2x512xf32>
    %12 = tpu.matmul %11, %7, %cst {dimension_numbers = #tpu.dot_dimension_numbers<[1], [0], [0], [1], [0, 0, 1, 1], [], []>} : vector<2x128xbf16>, vector<128x512xbf16>, vector<2x512xf32> -> vector<2x512xf32>
    %13 = arith.addf %10, %12 : vector<2x512xf32>
    %14 = vector.extract_strided_slice %13 {offsets = [0, 0], sizes = [2, 384], strides = [1, 1]} : vector<2x512xf32> to vector<2x384xf32>
    %15 = arith.negf %14 : vector<2x384xf32>
    %16 = math.exp %15 : vector<2x384xf32>
    %cst_13 = arith.constant 1.000000e+00 : f32
    %17 = vector.broadcast %cst_13 : f32 to vector<2x384xf32>
    %18 = arith.addf %17, %16 : vector<2x384xf32>
    %19 = arith.divf %17, %18 : vector<2x384xf32>
    %20 = vector.extract_strided_slice %19 {offsets = [0, 0], sizes = [2, 128], strides = [1, 1]} : vector<2x384xf32> to vector<2x128xf32>
    %21 = vector.extract_strided_slice %19 {offsets = [0, 128], sizes = [2, 128], strides = [1, 1]} : vector<2x384xf32> to vector<2x128xf32>
    %22 = vector.extract_strided_slice %19 {offsets = [0, 256], sizes = [2, 128], strides = [1, 1]} : vector<2x384xf32> to vector<2x128xf32>
    %23 = vector.extract_strided_slice %13 {offsets = [0, 384], sizes = [2, 128], strides = [1, 1]} : vector<2x512xf32> to vector<2x128xf32>
    %24 = math.tanh %23 : vector<2x128xf32>
    %25 = arith.mulf %21, %1 : vector<2x128xf32>
    %26 = arith.mulf %20, %24 : vector<2x128xf32>
    %27 = arith.addf %25, %26 : vector<2x128xf32>
    %28 = math.tanh %27 : vector<2x128xf32>
    %29 = arith.mulf %22, %28 : vector<2x128xf32>
    %30 = vector.extract_strided_slice %8 {offsets = [2, 0], sizes = [2, 512], strides = [1, 1]} : vector<16x512xf32> to vector<2x512xf32>
    %31 = arith.truncf %29 : vector<2x128xf32> to vector<2x128xbf16>
    %cst_14 = arith.constant dense<0.000000e+00> : vector<2x512xf32>
    %32 = tpu.matmul %31, %7, %cst_14 {dimension_numbers = #tpu.dot_dimension_numbers<[1], [0], [0], [1], [0, 0, 1, 1], [], []>} : vector<2x128xbf16>, vector<128x512xbf16>, vector<2x512xf32> -> vector<2x512xf32>
    %33 = arith.addf %30, %32 : vector<2x512xf32>
    %34 = vector.extract_strided_slice %33 {offsets = [0, 0], sizes = [2, 384], strides = [1, 1]} : vector<2x512xf32> to vector<2x384xf32>
    %35 = arith.negf %34 : vector<2x384xf32>
    %36 = math.exp %35 : vector<2x384xf32>
    %cst_15 = arith.constant 1.000000e+00 : f32
    %37 = vector.broadcast %cst_15 : f32 to vector<2x384xf32>
    %38 = arith.addf %37, %36 : vector<2x384xf32>
    %39 = arith.divf %37, %38 : vector<2x384xf32>
    %40 = vector.extract_strided_slice %39 {offsets = [0, 0], sizes = [2, 128], strides = [1, 1]} : vector<2x384xf32> to vector<2x128xf32>
    %41 = vector.extract_strided_slice %39 {offsets = [0, 128], sizes = [2, 128], strides = [1, 1]} : vector<2x384xf32> to vector<2x128xf32>
    %42 = vector.extract_strided_slice %39 {offsets = [0, 256], sizes = [2, 128], strides = [1, 1]} : vector<2x384xf32> to vector<2x128xf32>
    %43 = vector.extract_strided_slice %33 {offsets = [0, 384], sizes = [2, 128], strides = [1, 1]} : vector<2x512xf32> to vector<2x128xf32>
    %44 = math.tanh %43 : vector<2x128xf32>
    %45 = arith.mulf %41, %27 : vector<2x128xf32>
    %46 = arith.mulf %40, %44 : vector<2x128xf32>
    %47 = arith.addf %45, %46 : vector<2x128xf32>
    %48 = math.tanh %47 : vector<2x128xf32>
    %49 = arith.mulf %42, %48 : vector<2x128xf32>
    %50 = vector.extract_strided_slice %8 {offsets = [4, 0], sizes = [2, 512], strides = [1, 1]} : vector<16x512xf32> to vector<2x512xf32>
    %51 = arith.truncf %49 : vector<2x128xf32> to vector<2x128xbf16>
    %cst_16 = arith.constant dense<0.000000e+00> : vector<2x512xf32>
    %52 = tpu.matmul %51, %7, %cst_16 {dimension_numbers = #tpu.dot_dimension_numbers<[1], [0], [0], [1], [0, 0, 1, 1], [], []>} : vector<2x128xbf16>, vector<128x512xbf16>, vector<2x512xf32> -> vector<2x512xf32>
    %53 = arith.addf %50, %52 : vector<2x512xf32>
    %54 = vector.extract_strided_slice %53 {offsets = [0, 0], sizes = [2, 384], strides = [1, 1]} : vector<2x512xf32> to vector<2x384xf32>
    %55 = arith.negf %54 : vector<2x384xf32>
    %56 = math.exp %55 : vector<2x384xf32>
    %cst_17 = arith.constant 1.000000e+00 : f32
    %57 = vector.broadcast %cst_17 : f32 to vector<2x384xf32>
    %58 = arith.addf %57, %56 : vector<2x384xf32>
    %59 = arith.divf %57, %58 : vector<2x384xf32>
    %60 = vector.extract_strided_slice %59 {offsets = [0, 0], sizes = [2, 128], strides = [1, 1]} : vector<2x384xf32> to vector<2x128xf32>
    %61 = vector.extract_strided_slice %59 {offsets = [0, 128], sizes = [2, 128], strides = [1, 1]} : vector<2x384xf32> to vector<2x128xf32>
    %62 = vector.extract_strided_slice %59 {offsets = [0, 256], sizes = [2, 128], strides = [1, 1]} : vector<2x384xf32> to vector<2x128xf32>
    %63 = vector.extract_strided_slice %53 {offsets = [0, 384], sizes = [2, 128], strides = [1, 1]} : vector<2x512xf32> to vector<2x128xf32>
    %64 = math.tanh %63 : vector<2x128xf32>
    %65 = arith.mulf %61, %47 : vector<2x128xf32>
    %66 = arith.mulf %60, %64 : vector<2x128xf32>
    %67 = arith.addf %65, %66 : vector<2x128xf32>
    %68 = math.tanh %67 : vector<2x128xf32>
    %69 = arith.mulf %62, %68 : vector<2x128xf32>
    %70 = vector.extract_strided_slice %8 {offsets = [6, 0], sizes = [2, 512], strides = [1, 1]} : vector<16x512xf32> to vector<2x512xf32>
    %71 = arith.truncf %69 : vector<2x128xf32> to vector<2x128xbf16>
    %cst_18 = arith.constant dense<0.000000e+00> : vector<2x512xf32>
    %72 = tpu.matmul %71, %7, %cst_18 {dimension_numbers = #tpu.dot_dimension_numbers<[1], [0], [0], [1], [0, 0, 1, 1], [], []>} : vector<2x128xbf16>, vector<128x512xbf16>, vector<2x512xf32> -> vector<2x512xf32>
    %73 = arith.addf %70, %72 : vector<2x512xf32>
    %74 = vector.extract_strided_slice %73 {offsets = [0, 0], sizes = [2, 384], strides = [1, 1]} : vector<2x512xf32> to vector<2x384xf32>
    %75 = arith.negf %74 : vector<2x384xf32>
    %76 = math.exp %75 : vector<2x384xf32>
    %cst_19 = arith.constant 1.000000e+00 : f32
    %77 = vector.broadcast %cst_19 : f32 to vector<2x384xf32>
    %78 = arith.addf %77, %76 : vector<2x384xf32>
    %79 = arith.divf %77, %78 : vector<2x384xf32>
    %80 = vector.extract_strided_slice %79 {offsets = [0, 0], sizes = [2, 128], strides = [1, 1]} : vector<2x384xf32> to vector<2x128xf32>
    %81 = vector.extract_strided_slice %79 {offsets = [0, 128], sizes = [2, 128], strides = [1, 1]} : vector<2x384xf32> to vector<2x128xf32>
    %82 = vector.extract_strided_slice %79 {offsets = [0, 256], sizes = [2, 128], strides = [1, 1]} : vector<2x384xf32> to vector<2x128xf32>
    %83 = vector.extract_strided_slice %73 {offsets = [0, 384], sizes = [2, 128], strides = [1, 1]} : vector<2x512xf32> to vector<2x128xf32>
    %84 = math.tanh %83 : vector<2x128xf32>
    %85 = arith.mulf %81, %67 : vector<2x128xf32>
    %86 = arith.mulf %80, %84 : vector<2x128xf32>
    %87 = arith.addf %85, %86 : vector<2x128xf32>
    %88 = math.tanh %87 : vector<2x128xf32>
    %89 = arith.mulf %82, %88 : vector<2x128xf32>
    %90 = vector.extract_strided_slice %8 {offsets = [8, 0], sizes = [2, 512], strides = [1, 1]} : vector<16x512xf32> to vector<2x512xf32>
    %91 = arith.truncf %89 : vector<2x128xf32> to vector<2x128xbf16>
    %cst_20 = arith.constant dense<0.000000e+00> : vector<2x512xf32>
    %92 = tpu.matmul %91, %7, %cst_20 {dimension_numbers = #tpu.dot_dimension_numbers<[1], [0], [0], [1], [0, 0, 1, 1], [], []>} : vector<2x128xbf16>, vector<128x512xbf16>, vector<2x512xf32> -> vector<2x512xf32>
    %93 = arith.addf %90, %92 : vector<2x512xf32>
    %94 = vector.extract_strided_slice %93 {offsets = [0, 0], sizes = [2, 384], strides = [1, 1]} : vector<2x512xf32> to vector<2x384xf32>
    %95 = arith.negf %94 : vector<2x384xf32>
    %96 = math.exp %95 : vector<2x384xf32>
    %cst_21 = arith.constant 1.000000e+00 : f32
    %97 = vector.broadcast %cst_21 : f32 to vector<2x384xf32>
    %98 = arith.addf %97, %96 : vector<2x384xf32>
    %99 = arith.divf %97, %98 : vector<2x384xf32>
    %100 = vector.extract_strided_slice %99 {offsets = [0, 0], sizes = [2, 128], strides = [1, 1]} : vector<2x384xf32> to vector<2x128xf32>
    %101 = vector.extract_strided_slice %99 {offsets = [0, 128], sizes = [2, 128], strides = [1, 1]} : vector<2x384xf32> to vector<2x128xf32>
    %102 = vector.extract_strided_slice %99 {offsets = [0, 256], sizes = [2, 128], strides = [1, 1]} : vector<2x384xf32> to vector<2x128xf32>
    %103 = vector.extract_strided_slice %93 {offsets = [0, 384], sizes = [2, 128], strides = [1, 1]} : vector<2x512xf32> to vector<2x128xf32>
    %104 = math.tanh %103 : vector<2x128xf32>
    %105 = arith.mulf %101, %87 : vector<2x128xf32>
    %106 = arith.mulf %100, %104 : vector<2x128xf32>
    %107 = arith.addf %105, %106 : vector<2x128xf32>
    %108 = math.tanh %107 : vector<2x128xf32>
    %109 = arith.mulf %102, %108 : vector<2x128xf32>
    %110 = vector.extract_strided_slice %8 {offsets = [10, 0], sizes = [2, 512], strides = [1, 1]} : vector<16x512xf32> to vector<2x512xf32>
    %111 = arith.truncf %109 : vector<2x128xf32> to vector<2x128xbf16>
    %cst_22 = arith.constant dense<0.000000e+00> : vector<2x512xf32>
    %112 = tpu.matmul %111, %7, %cst_22 {dimension_numbers = #tpu.dot_dimension_numbers<[1], [0], [0], [1], [0, 0, 1, 1], [], []>} : vector<2x128xbf16>, vector<128x512xbf16>, vector<2x512xf32> -> vector<2x512xf32>
    %113 = arith.addf %110, %112 : vector<2x512xf32>
    %114 = vector.extract_strided_slice %113 {offsets = [0, 0], sizes = [2, 384], strides = [1, 1]} : vector<2x512xf32> to vector<2x384xf32>
    %115 = arith.negf %114 : vector<2x384xf32>
    %116 = math.exp %115 : vector<2x384xf32>
    %cst_23 = arith.constant 1.000000e+00 : f32
    %117 = vector.broadcast %cst_23 : f32 to vector<2x384xf32>
    %118 = arith.addf %117, %116 : vector<2x384xf32>
    %119 = arith.divf %117, %118 : vector<2x384xf32>
    %120 = vector.extract_strided_slice %119 {offsets = [0, 0], sizes = [2, 128], strides = [1, 1]} : vector<2x384xf32> to vector<2x128xf32>
    %121 = vector.extract_strided_slice %119 {offsets = [0, 128], sizes = [2, 128], strides = [1, 1]} : vector<2x384xf32> to vector<2x128xf32>
    %122 = vector.extract_strided_slice %119 {offsets = [0, 256], sizes = [2, 128], strides = [1, 1]} : vector<2x384xf32> to vector<2x128xf32>
    %123 = vector.extract_strided_slice %113 {offsets = [0, 384], sizes = [2, 128], strides = [1, 1]} : vector<2x512xf32> to vector<2x128xf32>
    %124 = math.tanh %123 : vector<2x128xf32>
    %125 = arith.mulf %121, %107 : vector<2x128xf32>
    %126 = arith.mulf %120, %124 : vector<2x128xf32>
    %127 = arith.addf %125, %126 : vector<2x128xf32>
    %128 = math.tanh %127 : vector<2x128xf32>
    %129 = arith.mulf %122, %128 : vector<2x128xf32>
    %130 = vector.extract_strided_slice %8 {offsets = [12, 0], sizes = [2, 512], strides = [1, 1]} : vector<16x512xf32> to vector<2x512xf32>
    %131 = arith.truncf %129 : vector<2x128xf32> to vector<2x128xbf16>
    %cst_24 = arith.constant dense<0.000000e+00> : vector<2x512xf32>
    %132 = tpu.matmul %131, %7, %cst_24 {dimension_numbers = #tpu.dot_dimension_numbers<[1], [0], [0], [1], [0, 0, 1, 1], [], []>} : vector<2x128xbf16>, vector<128x512xbf16>, vector<2x512xf32> -> vector<2x512xf32>
    %133 = arith.addf %130, %132 : vector<2x512xf32>
    %134 = vector.extract_strided_slice %133 {offsets = [0, 0], sizes = [2, 384], strides = [1, 1]} : vector<2x512xf32> to vector<2x384xf32>
    %135 = arith.negf %134 : vector<2x384xf32>
    %136 = math.exp %135 : vector<2x384xf32>
    %cst_25 = arith.constant 1.000000e+00 : f32
    %137 = vector.broadcast %cst_25 : f32 to vector<2x384xf32>
    %138 = arith.addf %137, %136 : vector<2x384xf32>
    %139 = arith.divf %137, %138 : vector<2x384xf32>
    %140 = vector.extract_strided_slice %139 {offsets = [0, 0], sizes = [2, 128], strides = [1, 1]} : vector<2x384xf32> to vector<2x128xf32>
    %141 = vector.extract_strided_slice %139 {offsets = [0, 128], sizes = [2, 128], strides = [1, 1]} : vector<2x384xf32> to vector<2x128xf32>
    %142 = vector.extract_strided_slice %139 {offsets = [0, 256], sizes = [2, 128], strides = [1, 1]} : vector<2x384xf32> to vector<2x128xf32>
    %143 = vector.extract_strided_slice %133 {offsets = [0, 384], sizes = [2, 128], strides = [1, 1]} : vector<2x512xf32> to vector<2x128xf32>
    %144 = math.tanh %143 : vector<2x128xf32>
    %145 = arith.mulf %141, %127 : vector<2x128xf32>
    %146 = arith.mulf %140, %144 : vector<2x128xf32>
    %147 = arith.addf %145, %146 : vector<2x128xf32>
    %148 = math.tanh %147 : vector<2x128xf32>
    %149 = arith.mulf %142, %148 : vector<2x128xf32>
    %150 = vector.extract_strided_slice %8 {offsets = [14, 0], sizes = [2, 512], strides = [1, 1]} : vector<16x512xf32> to vector<2x512xf32>
    %151 = arith.truncf %149 : vector<2x128xf32> to vector<2x128xbf16>
    %cst_26 = arith.constant dense<0.000000e+00> : vector<2x512xf32>
    %152 = tpu.matmul %151, %7, %cst_26 {dimension_numbers = #tpu.dot_dimension_numbers<[1], [0], [0], [1], [0, 0, 1, 1], [], []>} : vector<2x128xbf16>, vector<128x512xbf16>, vector<2x512xf32> -> vector<2x512xf32>
    %153 = arith.addf %150, %152 : vector<2x512xf32>
    %154 = vector.extract_strided_slice %153 {offsets = [0, 0], sizes = [2, 384], strides = [1, 1]} : vector<2x512xf32> to vector<2x384xf32>
    %155 = arith.negf %154 : vector<2x384xf32>
    %156 = math.exp %155 : vector<2x384xf32>
    %cst_27 = arith.constant 1.000000e+00 : f32
    %157 = vector.broadcast %cst_27 : f32 to vector<2x384xf32>
    %158 = arith.addf %157, %156 : vector<2x384xf32>
    %159 = arith.divf %157, %158 : vector<2x384xf32>
    %160 = vector.extract_strided_slice %159 {offsets = [0, 0], sizes = [2, 128], strides = [1, 1]} : vector<2x384xf32> to vector<2x128xf32>
    %161 = vector.extract_strided_slice %159 {offsets = [0, 128], sizes = [2, 128], strides = [1, 1]} : vector<2x384xf32> to vector<2x128xf32>
    %162 = vector.extract_strided_slice %159 {offsets = [0, 256], sizes = [2, 128], strides = [1, 1]} : vector<2x384xf32> to vector<2x128xf32>
    %163 = vector.extract_strided_slice %153 {offsets = [0, 384], sizes = [2, 128], strides = [1, 1]} : vector<2x512xf32> to vector<2x128xf32>
    %164 = math.tanh %163 : vector<2x128xf32>
    %165 = arith.mulf %161, %147 : vector<2x128xf32>
    %166 = arith.mulf %160, %164 : vector<2x128xf32>
    %167 = arith.addf %165, %166 : vector<2x128xf32>
    %168 = math.tanh %167 : vector<2x128xf32>
    %169 = arith.mulf %162, %168 : vector<2x128xf32>
    %170 = tpu.iota {dimensions = array<i32: 1>} : vector<2x128xi32>
    %c32_i32 = arith.constant 32 : i32
    %171 = vector.broadcast %c32_i32 : i32 to vector<2x128xi32>
    %172 = arith.cmpi slt, %170, %171 : vector<2x128xi32>
    %173 = arith.select %172, %29, %169 : vector<2x128xi1>, vector<2x128xf32>
    %174 = arith.select %172, %49, %149 : vector<2x128xi1>, vector<2x128xf32>
    %175 = arith.select %172, %69, %129 : vector<2x128xi1>, vector<2x128xf32>
    %176 = arith.select %172, %89, %109 : vector<2x128xi1>, vector<2x128xf32>
    %177 = arith.select %172, %109, %89 : vector<2x128xi1>, vector<2x128xf32>
    %178 = arith.select %172, %129, %69 : vector<2x128xi1>, vector<2x128xf32>
    %179 = arith.select %172, %149, %49 : vector<2x128xi1>, vector<2x128xf32>
    %180 = arith.select %172, %169, %29 : vector<2x128xi1>, vector<2x128xf32>
    %181 = tpu.concatenate %173, %174, %175, %176, %177, %178, %179, %180 in 0 : vector<2x128xf32>, vector<2x128xf32>, vector<2x128xf32>, vector<2x128xf32>, vector<2x128xf32>, vector<2x128xf32>, vector<2x128xf32>, vector<2x128xf32> -> vector<16x128xf32>
    %cst_28 = arith.constant dense<0.000000e+00> : vector<16x128xf32>
    %182 = tpu.matmul %181, %2, %cst_28 {dimension_numbers = #tpu.dot_dimension_numbers<[1], [0], [0], [1], [0, 0, 1, 1], [], []>} : vector<16x128xf32>, vector<128x128xf32>, vector<16x128xf32> -> vector<16x128xf32>
    %183 = vector.extract_strided_slice %182 {offsets = [0, 0], sizes = [16, 15], strides = [1, 1]} : vector<16x128xf32> to vector<16x15xf32>
    %184 = vector.broadcast %3 : vector<1x15xf32> to vector<16x15xf32>
    %185 = arith.addf %183, %184 : vector<16x15xf32>
    %186 = tpu.iota {dimensions = array<i32: 0>} : vector<15x15xi32>
    %187 = tpu.iota {dimensions = array<i32: 1>} : vector<15x15xi32>
    %188 = arith.cmpi eq, %186, %187 : vector<15x15xi32>
    %cst_29 = arith.constant 0.000000e+00 : f32
    %cst_30 = arith.constant -1.000000e+09 : f32
    %189 = vector.broadcast %cst_29 : f32 to vector<15x15xf32>
    %190 = vector.broadcast %cst_30 : f32 to vector<15x15xf32>
    %191 = arith.select %188, %189, %190 : vector<15x15xi1>, vector<15x15xf32>
    %192 = tpu.iota {dimensions = array<i32: 1>} : vector<2x15x15xi32>
    %193 = tpu.iota {dimensions = array<i32: 1>} : vector<2x15xi32>
    %194 = vector.extract_strided_slice %185 {offsets = [0, 0], sizes = [2, 15], strides = [1, 1]} : vector<16x15xf32> to vector<2x15xf32>
    %195 = vector.broadcast %4 : vector<1x15xf32> to vector<2x15xf32>
    %196 = arith.addf %195, %194 : vector<2x15xf32>
    %197 = vector.extract_strided_slice %9 {offsets = [2, 0], sizes = [2, 1], strides = [1, 1]} : vector<16x1xf32> to vector<2x1xf32>
    %198 = vector.shape_cast %197 : vector<2x1xf32> to vector<2x1x1xf32>
    %199 = vector.shape_cast %6 : vector<15x15xf32> to vector<1x15x15xf32>
    %200 = vector.broadcast %198 : vector<2x1x1xf32> to vector<2x15x15xf32>
    %201 = vector.broadcast %199 : vector<1x15x15xf32> to vector<2x15x15xf32>
    %202 = arith.mulf %200, %201 : vector<2x15x15xf32>
    %cst_31 = arith.constant 1.000000e+00 : f32
    %203 = vector.broadcast %cst_31 : f32 to vector<2x1x1xf32>
    %204 = arith.subf %203, %198 : vector<2x1x1xf32>
    %205 = vector.shape_cast %191 : vector<15x15xf32> to vector<1x15x15xf32>
    %206 = vector.broadcast %204 : vector<2x1x1xf32> to vector<2x15x15xf32>
    %207 = vector.broadcast %205 : vector<1x15x15xf32> to vector<2x15x15xf32>
    %208 = arith.mulf %206, %207 : vector<2x15x15xf32>
    %209 = arith.addf %202, %208 : vector<2x15x15xf32>
    %210 = vector.shape_cast %196 : vector<2x15xf32> to vector<2x15x1xf32>
    %211 = vector.broadcast %210 : vector<2x15x1xf32> to vector<2x15x15xf32>
    %212 = arith.addf %211, %209 : vector<2x15x15xf32>
    %cst_32 = arith.constant dense<0xFF800000> : vector<2x15xf32>
    %213 = vector.multi_reduction <maximumf>, %212, %cst_32 [1] : vector<2x15x15xf32> to vector<2x15xf32>
    %214 = vector.shape_cast %213 : vector<2x15xf32> to vector<2x1x15xf32>
    %215 = vector.broadcast %214 : vector<2x1x15xf32> to vector<2x15x15xf32>
    %216 = arith.cmpf oge, %212, %215 : vector<2x15x15xf32>
    %c15_i32 = arith.constant 15 : i32
    %217 = vector.broadcast %c15_i32 : i32 to vector<2x15x15xi32>
    %218 = arith.select %216, %192, %217 : vector<2x15x15xi1>, vector<2x15x15xi32>
    %cst_33 = arith.constant dense<2147483647> : vector<2x15xi32>
    %219 = vector.multi_reduction <minsi>, %218, %cst_33 [1] : vector<2x15x15xi32> to vector<2x15xi32>
    %220 = vector.extract_strided_slice %185 {offsets = [2, 0], sizes = [2, 15], strides = [1, 1]} : vector<16x15xf32> to vector<2x15xf32>
    %221 = vector.broadcast %197 : vector<2x1xf32> to vector<2x15xf32>
    %222 = arith.mulf %221, %220 : vector<2x15xf32>
    %223 = arith.addf %213, %222 : vector<2x15xf32>
    %224 = vector.extract_strided_slice %9 {offsets = [4, 0], sizes = [2, 1], strides = [1, 1]} : vector<16x1xf32> to vector<2x1xf32>
    %225 = vector.shape_cast %224 : vector<2x1xf32> to vector<2x1x1xf32>
    %226 = vector.shape_cast %6 : vector<15x15xf32> to vector<1x15x15xf32>
    %227 = vector.broadcast %225 : vector<2x1x1xf32> to vector<2x15x15xf32>
    %228 = vector.broadcast %226 : vector<1x15x15xf32> to vector<2x15x15xf32>
    %229 = arith.mulf %227, %228 : vector<2x15x15xf32>
    %cst_34 = arith.constant 1.000000e+00 : f32
    %230 = vector.broadcast %cst_34 : f32 to vector<2x1x1xf32>
    %231 = arith.subf %230, %225 : vector<2x1x1xf32>
    %232 = vector.shape_cast %191 : vector<15x15xf32> to vector<1x15x15xf32>
    %233 = vector.broadcast %231 : vector<2x1x1xf32> to vector<2x15x15xf32>
    %234 = vector.broadcast %232 : vector<1x15x15xf32> to vector<2x15x15xf32>
    %235 = arith.mulf %233, %234 : vector<2x15x15xf32>
    %236 = arith.addf %229, %235 : vector<2x15x15xf32>
    %237 = vector.shape_cast %223 : vector<2x15xf32> to vector<2x15x1xf32>
    %238 = vector.broadcast %237 : vector<2x15x1xf32> to vector<2x15x15xf32>
    %239 = arith.addf %238, %236 : vector<2x15x15xf32>
    %cst_35 = arith.constant dense<0xFF800000> : vector<2x15xf32>
    %240 = vector.multi_reduction <maximumf>, %239, %cst_35 [1] : vector<2x15x15xf32> to vector<2x15xf32>
    %241 = vector.shape_cast %240 : vector<2x15xf32> to vector<2x1x15xf32>
    %242 = vector.broadcast %241 : vector<2x1x15xf32> to vector<2x15x15xf32>
    %243 = arith.cmpf oge, %239, %242 : vector<2x15x15xf32>
    %c15_i32_36 = arith.constant 15 : i32
    %244 = vector.broadcast %c15_i32_36 : i32 to vector<2x15x15xi32>
    %245 = arith.select %243, %192, %244 : vector<2x15x15xi1>, vector<2x15x15xi32>
    %cst_37 = arith.constant dense<2147483647> : vector<2x15xi32>
    %246 = vector.multi_reduction <minsi>, %245, %cst_37 [1] : vector<2x15x15xi32> to vector<2x15xi32>
    %247 = vector.extract_strided_slice %185 {offsets = [4, 0], sizes = [2, 15], strides = [1, 1]} : vector<16x15xf32> to vector<2x15xf32>
    %248 = vector.broadcast %224 : vector<2x1xf32> to vector<2x15xf32>
    %249 = arith.mulf %248, %247 : vector<2x15xf32>
    %250 = arith.addf %240, %249 : vector<2x15xf32>
    %251 = vector.extract_strided_slice %9 {offsets = [6, 0], sizes = [2, 1], strides = [1, 1]} : vector<16x1xf32> to vector<2x1xf32>
    %252 = vector.shape_cast %251 : vector<2x1xf32> to vector<2x1x1xf32>
    %253 = vector.shape_cast %6 : vector<15x15xf32> to vector<1x15x15xf32>
    %254 = vector.broadcast %252 : vector<2x1x1xf32> to vector<2x15x15xf32>
    %255 = vector.broadcast %253 : vector<1x15x15xf32> to vector<2x15x15xf32>
    %256 = arith.mulf %254, %255 : vector<2x15x15xf32>
    %cst_38 = arith.constant 1.000000e+00 : f32
    %257 = vector.broadcast %cst_38 : f32 to vector<2x1x1xf32>
    %258 = arith.subf %257, %252 : vector<2x1x1xf32>
    %259 = vector.shape_cast %191 : vector<15x15xf32> to vector<1x15x15xf32>
    %260 = vector.broadcast %258 : vector<2x1x1xf32> to vector<2x15x15xf32>
    %261 = vector.broadcast %259 : vector<1x15x15xf32> to vector<2x15x15xf32>
    %262 = arith.mulf %260, %261 : vector<2x15x15xf32>
    %263 = arith.addf %256, %262 : vector<2x15x15xf32>
    %264 = vector.shape_cast %250 : vector<2x15xf32> to vector<2x15x1xf32>
    %265 = vector.broadcast %264 : vector<2x15x1xf32> to vector<2x15x15xf32>
    %266 = arith.addf %265, %263 : vector<2x15x15xf32>
    %cst_39 = arith.constant dense<0xFF800000> : vector<2x15xf32>
    %267 = vector.multi_reduction <maximumf>, %266, %cst_39 [1] : vector<2x15x15xf32> to vector<2x15xf32>
    %268 = vector.shape_cast %267 : vector<2x15xf32> to vector<2x1x15xf32>
    %269 = vector.broadcast %268 : vector<2x1x15xf32> to vector<2x15x15xf32>
    %270 = arith.cmpf oge, %266, %269 : vector<2x15x15xf32>
    %c15_i32_40 = arith.constant 15 : i32
    %271 = vector.broadcast %c15_i32_40 : i32 to vector<2x15x15xi32>
    %272 = arith.select %270, %192, %271 : vector<2x15x15xi1>, vector<2x15x15xi32>
    %cst_41 = arith.constant dense<2147483647> : vector<2x15xi32>
    %273 = vector.multi_reduction <minsi>, %272, %cst_41 [1] : vector<2x15x15xi32> to vector<2x15xi32>
    %274 = vector.extract_strided_slice %185 {offsets = [6, 0], sizes = [2, 15], strides = [1, 1]} : vector<16x15xf32> to vector<2x15xf32>
    %275 = vector.broadcast %251 : vector<2x1xf32> to vector<2x15xf32>
    %276 = arith.mulf %275, %274 : vector<2x15xf32>
    %277 = arith.addf %267, %276 : vector<2x15xf32>
    %278 = vector.extract_strided_slice %9 {offsets = [8, 0], sizes = [2, 1], strides = [1, 1]} : vector<16x1xf32> to vector<2x1xf32>
    %279 = vector.shape_cast %278 : vector<2x1xf32> to vector<2x1x1xf32>
    %280 = vector.shape_cast %6 : vector<15x15xf32> to vector<1x15x15xf32>
    %281 = vector.broadcast %279 : vector<2x1x1xf32> to vector<2x15x15xf32>
    %282 = vector.broadcast %280 : vector<1x15x15xf32> to vector<2x15x15xf32>
    %283 = arith.mulf %281, %282 : vector<2x15x15xf32>
    %cst_42 = arith.constant 1.000000e+00 : f32
    %284 = vector.broadcast %cst_42 : f32 to vector<2x1x1xf32>
    %285 = arith.subf %284, %279 : vector<2x1x1xf32>
    %286 = vector.shape_cast %191 : vector<15x15xf32> to vector<1x15x15xf32>
    %287 = vector.broadcast %285 : vector<2x1x1xf32> to vector<2x15x15xf32>
    %288 = vector.broadcast %286 : vector<1x15x15xf32> to vector<2x15x15xf32>
    %289 = arith.mulf %287, %288 : vector<2x15x15xf32>
    %290 = arith.addf %283, %289 : vector<2x15x15xf32>
    %291 = vector.shape_cast %277 : vector<2x15xf32> to vector<2x15x1xf32>
    %292 = vector.broadcast %291 : vector<2x15x1xf32> to vector<2x15x15xf32>
    %293 = arith.addf %292, %290 : vector<2x15x15xf32>
    %cst_43 = arith.constant dense<0xFF800000> : vector<2x15xf32>
    %294 = vector.multi_reduction <maximumf>, %293, %cst_43 [1] : vector<2x15x15xf32> to vector<2x15xf32>
    %295 = vector.shape_cast %294 : vector<2x15xf32> to vector<2x1x15xf32>
    %296 = vector.broadcast %295 : vector<2x1x15xf32> to vector<2x15x15xf32>
    %297 = arith.cmpf oge, %293, %296 : vector<2x15x15xf32>
    %c15_i32_44 = arith.constant 15 : i32
    %298 = vector.broadcast %c15_i32_44 : i32 to vector<2x15x15xi32>
    %299 = arith.select %297, %192, %298 : vector<2x15x15xi1>, vector<2x15x15xi32>
    %cst_45 = arith.constant dense<2147483647> : vector<2x15xi32>
    %300 = vector.multi_reduction <minsi>, %299, %cst_45 [1] : vector<2x15x15xi32> to vector<2x15xi32>
    %301 = vector.extract_strided_slice %185 {offsets = [8, 0], sizes = [2, 15], strides = [1, 1]} : vector<16x15xf32> to vector<2x15xf32>
    %302 = vector.broadcast %278 : vector<2x1xf32> to vector<2x15xf32>
    %303 = arith.mulf %302, %301 : vector<2x15xf32>
    %304 = arith.addf %294, %303 : vector<2x15xf32>
    %305 = vector.extract_strided_slice %9 {offsets = [10, 0], sizes = [2, 1], strides = [1, 1]} : vector<16x1xf32> to vector<2x1xf32>
    %306 = vector.shape_cast %305 : vector<2x1xf32> to vector<2x1x1xf32>
    %307 = vector.shape_cast %6 : vector<15x15xf32> to vector<1x15x15xf32>
    %308 = vector.broadcast %306 : vector<2x1x1xf32> to vector<2x15x15xf32>
    %309 = vector.broadcast %307 : vector<1x15x15xf32> to vector<2x15x15xf32>
    %310 = arith.mulf %308, %309 : vector<2x15x15xf32>
    %cst_46 = arith.constant 1.000000e+00 : f32
    %311 = vector.broadcast %cst_46 : f32 to vector<2x1x1xf32>
    %312 = arith.subf %311, %306 : vector<2x1x1xf32>
    %313 = vector.shape_cast %191 : vector<15x15xf32> to vector<1x15x15xf32>
    %314 = vector.broadcast %312 : vector<2x1x1xf32> to vector<2x15x15xf32>
    %315 = vector.broadcast %313 : vector<1x15x15xf32> to vector<2x15x15xf32>
    %316 = arith.mulf %314, %315 : vector<2x15x15xf32>
    %317 = arith.addf %310, %316 : vector<2x15x15xf32>
    %318 = vector.shape_cast %304 : vector<2x15xf32> to vector<2x15x1xf32>
    %319 = vector.broadcast %318 : vector<2x15x1xf32> to vector<2x15x15xf32>
    %320 = arith.addf %319, %317 : vector<2x15x15xf32>
    %cst_47 = arith.constant dense<0xFF800000> : vector<2x15xf32>
    %321 = vector.multi_reduction <maximumf>, %320, %cst_47 [1] : vector<2x15x15xf32> to vector<2x15xf32>
    %322 = vector.shape_cast %321 : vector<2x15xf32> to vector<2x1x15xf32>
    %323 = vector.broadcast %322 : vector<2x1x15xf32> to vector<2x15x15xf32>
    %324 = arith.cmpf oge, %320, %323 : vector<2x15x15xf32>
    %c15_i32_48 = arith.constant 15 : i32
    %325 = vector.broadcast %c15_i32_48 : i32 to vector<2x15x15xi32>
    %326 = arith.select %324, %192, %325 : vector<2x15x15xi1>, vector<2x15x15xi32>
    %cst_49 = arith.constant dense<2147483647> : vector<2x15xi32>
    %327 = vector.multi_reduction <minsi>, %326, %cst_49 [1] : vector<2x15x15xi32> to vector<2x15xi32>
    %328 = vector.extract_strided_slice %185 {offsets = [10, 0], sizes = [2, 15], strides = [1, 1]} : vector<16x15xf32> to vector<2x15xf32>
    %329 = vector.broadcast %305 : vector<2x1xf32> to vector<2x15xf32>
    %330 = arith.mulf %329, %328 : vector<2x15xf32>
    %331 = arith.addf %321, %330 : vector<2x15xf32>
    %332 = vector.extract_strided_slice %9 {offsets = [12, 0], sizes = [2, 1], strides = [1, 1]} : vector<16x1xf32> to vector<2x1xf32>
    %333 = vector.shape_cast %332 : vector<2x1xf32> to vector<2x1x1xf32>
    %334 = vector.shape_cast %6 : vector<15x15xf32> to vector<1x15x15xf32>
    %335 = vector.broadcast %333 : vector<2x1x1xf32> to vector<2x15x15xf32>
    %336 = vector.broadcast %334 : vector<1x15x15xf32> to vector<2x15x15xf32>
    %337 = arith.mulf %335, %336 : vector<2x15x15xf32>
    %cst_50 = arith.constant 1.000000e+00 : f32
    %338 = vector.broadcast %cst_50 : f32 to vector<2x1x1xf32>
    %339 = arith.subf %338, %333 : vector<2x1x1xf32>
    %340 = vector.shape_cast %191 : vector<15x15xf32> to vector<1x15x15xf32>
    %341 = vector.broadcast %339 : vector<2x1x1xf32> to vector<2x15x15xf32>
    %342 = vector.broadcast %340 : vector<1x15x15xf32> to vector<2x15x15xf32>
    %343 = arith.mulf %341, %342 : vector<2x15x15xf32>
    %344 = arith.addf %337, %343 : vector<2x15x15xf32>
    %345 = vector.shape_cast %331 : vector<2x15xf32> to vector<2x15x1xf32>
    %346 = vector.broadcast %345 : vector<2x15x1xf32> to vector<2x15x15xf32>
    %347 = arith.addf %346, %344 : vector<2x15x15xf32>
    %cst_51 = arith.constant dense<0xFF800000> : vector<2x15xf32>
    %348 = vector.multi_reduction <maximumf>, %347, %cst_51 [1] : vector<2x15x15xf32> to vector<2x15xf32>
    %349 = vector.shape_cast %348 : vector<2x15xf32> to vector<2x1x15xf32>
    %350 = vector.broadcast %349 : vector<2x1x15xf32> to vector<2x15x15xf32>
    %351 = arith.cmpf oge, %347, %350 : vector<2x15x15xf32>
    %c15_i32_52 = arith.constant 15 : i32
    %352 = vector.broadcast %c15_i32_52 : i32 to vector<2x15x15xi32>
    %353 = arith.select %351, %192, %352 : vector<2x15x15xi1>, vector<2x15x15xi32>
    %cst_53 = arith.constant dense<2147483647> : vector<2x15xi32>
    %354 = vector.multi_reduction <minsi>, %353, %cst_53 [1] : vector<2x15x15xi32> to vector<2x15xi32>
    %355 = vector.extract_strided_slice %185 {offsets = [12, 0], sizes = [2, 15], strides = [1, 1]} : vector<16x15xf32> to vector<2x15xf32>
    %356 = vector.broadcast %332 : vector<2x1xf32> to vector<2x15xf32>
    %357 = arith.mulf %356, %355 : vector<2x15xf32>
    %358 = arith.addf %348, %357 : vector<2x15xf32>
    %359 = vector.extract_strided_slice %9 {offsets = [14, 0], sizes = [2, 1], strides = [1, 1]} : vector<16x1xf32> to vector<2x1xf32>
    %360 = vector.shape_cast %359 : vector<2x1xf32> to vector<2x1x1xf32>
    %361 = vector.shape_cast %6 : vector<15x15xf32> to vector<1x15x15xf32>
    %362 = vector.broadcast %360 : vector<2x1x1xf32> to vector<2x15x15xf32>
    %363 = vector.broadcast %361 : vector<1x15x15xf32> to vector<2x15x15xf32>
    %364 = arith.mulf %362, %363 : vector<2x15x15xf32>
    %cst_54 = arith.constant 1.000000e+00 : f32
    %365 = vector.broadcast %cst_54 : f32 to vector<2x1x1xf32>
    %366 = arith.subf %365, %360 : vector<2x1x1xf32>
    %367 = vector.shape_cast %191 : vector<15x15xf32> to vector<1x15x15xf32>
    %368 = vector.broadcast %366 : vector<2x1x1xf32> to vector<2x15x15xf32>
    %369 = vector.broadcast %367 : vector<1x15x15xf32> to vector<2x15x15xf32>
    %370 = arith.mulf %368, %369 : vector<2x15x15xf32>
    %371 = arith.addf %364, %370 : vector<2x15x15xf32>
    %372 = vector.shape_cast %358 : vector<2x15xf32> to vector<2x15x1xf32>
    %373 = vector.broadcast %372 : vector<2x15x1xf32> to vector<2x15x15xf32>
    %374 = arith.addf %373, %371 : vector<2x15x15xf32>
    %cst_55 = arith.constant dense<0xFF800000> : vector<2x15xf32>
    %375 = vector.multi_reduction <maximumf>, %374, %cst_55 [1] : vector<2x15x15xf32> to vector<2x15xf32>
    %376 = vector.shape_cast %375 : vector<2x15xf32> to vector<2x1x15xf32>
    %377 = vector.broadcast %376 : vector<2x1x15xf32> to vector<2x15x15xf32>
    %378 = arith.cmpf oge, %374, %377 : vector<2x15x15xf32>
    %c15_i32_56 = arith.constant 15 : i32
    %379 = vector.broadcast %c15_i32_56 : i32 to vector<2x15x15xi32>
    %380 = arith.select %378, %192, %379 : vector<2x15x15xi1>, vector<2x15x15xi32>
    %cst_57 = arith.constant dense<2147483647> : vector<2x15xi32>
    %381 = vector.multi_reduction <minsi>, %380, %cst_57 [1] : vector<2x15x15xi32> to vector<2x15xi32>
    %382 = vector.extract_strided_slice %185 {offsets = [14, 0], sizes = [2, 15], strides = [1, 1]} : vector<16x15xf32> to vector<2x15xf32>
    %383 = vector.broadcast %359 : vector<2x1xf32> to vector<2x15xf32>
    %384 = arith.mulf %383, %382 : vector<2x15xf32>
    %385 = arith.addf %375, %384 : vector<2x15xf32>
    %386 = vector.broadcast %5 : vector<1x15xf32> to vector<2x15xf32>
    %387 = arith.addf %385, %386 : vector<2x15xf32>
    %cst_58 = arith.constant dense<0xFF800000> : vector<2xf32>
    %388 = vector.multi_reduction <maximumf>, %387, %cst_58 [1] : vector<2x15xf32> to vector<2xf32>
    %389 = vector.shape_cast %388 : vector<2xf32> to vector<2x1xf32>
    %390 = vector.broadcast %389 : vector<2x1xf32> to vector<2x15xf32>
    %391 = arith.cmpf oge, %387, %390 : vector<2x15xf32>
    %c15_i32_59 = arith.constant 15 : i32
    %392 = vector.broadcast %c15_i32_59 : i32 to vector<2x15xi32>
    %393 = arith.select %391, %193, %392 : vector<2x15xi1>, vector<2x15xi32>
    %cst_60 = arith.constant dense<2147483647> : vector<2xi32>
    %394 = vector.multi_reduction <minsi>, %393, %cst_60 [1] : vector<2x15xi32> to vector<2xi32>
    %395 = vector.shape_cast %394 : vector<2xi32> to vector<2x1xi32>
    %396 = tpu.iota {dimensions = array<i32: 1>} : vector<2x8xi32>
    %c7_i32 = arith.constant 7 : i32
    %397 = vector.broadcast %c7_i32 : i32 to vector<2x8xi32>
    %398 = arith.cmpi eq, %396, %397 : vector<2x8xi32>
    %c0_i32 = arith.constant 0 : i32
    %399 = vector.broadcast %c0_i32 : i32 to vector<2x8xi32>
    %400 = vector.shape_cast %395 : vector<2x1xi32> to vector<2x1xi32>
    %401 = vector.broadcast %400 : vector<2x1xi32> to vector<2x8xi32>
    %402 = arith.select %398, %401, %399 : vector<2x8xi1>, vector<2x8xi32>
    %403 = vector.broadcast %395 : vector<2x1xi32> to vector<2x15xi32>
    %404 = arith.cmpi eq, %193, %403 : vector<2x15xi32>
    %c0_i32_61 = arith.constant 0 : i32
    %405 = vector.broadcast %c0_i32_61 : i32 to vector<2x15xi32>
    %406 = arith.select %404, %381, %405 : vector<2x15xi1>, vector<2x15xi32>
    %cst_62 = arith.constant dense<0> : vector<2xi32>
    %407 = vector.multi_reduction <add>, %406, %cst_62 [1] : vector<2x15xi32> to vector<2xi32>
    %408 = vector.shape_cast %407 : vector<2xi32> to vector<2x1xi32>
    %c6_i32 = arith.constant 6 : i32
    %409 = vector.broadcast %c6_i32 : i32 to vector<2x8xi32>
    %410 = arith.cmpi eq, %396, %409 : vector<2x8xi32>
    %411 = vector.shape_cast %408 : vector<2x1xi32> to vector<2x1xi32>
    %412 = vector.broadcast %411 : vector<2x1xi32> to vector<2x8xi32>
    %413 = arith.select %410, %412, %402 : vector<2x8xi1>, vector<2x8xi32>
    %414 = vector.broadcast %408 : vector<2x1xi32> to vector<2x15xi32>
    %415 = arith.cmpi eq, %193, %414 : vector<2x15xi32>
    %c0_i32_63 = arith.constant 0 : i32
    %416 = vector.broadcast %c0_i32_63 : i32 to vector<2x15xi32>
    %417 = arith.select %415, %354, %416 : vector<2x15xi1>, vector<2x15xi32>
    %cst_64 = arith.constant dense<0> : vector<2xi32>
    %418 = vector.multi_reduction <add>, %417, %cst_64 [1] : vector<2x15xi32> to vector<2xi32>
    %419 = vector.shape_cast %418 : vector<2xi32> to vector<2x1xi32>
    %c5_i32 = arith.constant 5 : i32
    %420 = vector.broadcast %c5_i32 : i32 to vector<2x8xi32>
    %421 = arith.cmpi eq, %396, %420 : vector<2x8xi32>
    %422 = vector.shape_cast %419 : vector<2x1xi32> to vector<2x1xi32>
    %423 = vector.broadcast %422 : vector<2x1xi32> to vector<2x8xi32>
    %424 = arith.select %421, %423, %413 : vector<2x8xi1>, vector<2x8xi32>
    %425 = vector.broadcast %419 : vector<2x1xi32> to vector<2x15xi32>
    %426 = arith.cmpi eq, %193, %425 : vector<2x15xi32>
    %c0_i32_65 = arith.constant 0 : i32
    %427 = vector.broadcast %c0_i32_65 : i32 to vector<2x15xi32>
    %428 = arith.select %426, %327, %427 : vector<2x15xi1>, vector<2x15xi32>
    %cst_66 = arith.constant dense<0> : vector<2xi32>
    %429 = vector.multi_reduction <add>, %428, %cst_66 [1] : vector<2x15xi32> to vector<2xi32>
    %430 = vector.shape_cast %429 : vector<2xi32> to vector<2x1xi32>
    %c4_i32 = arith.constant 4 : i32
    %431 = vector.broadcast %c4_i32 : i32 to vector<2x8xi32>
    %432 = arith.cmpi eq, %396, %431 : vector<2x8xi32>
    %433 = vector.shape_cast %430 : vector<2x1xi32> to vector<2x1xi32>
    %434 = vector.broadcast %433 : vector<2x1xi32> to vector<2x8xi32>
    %435 = arith.select %432, %434, %424 : vector<2x8xi1>, vector<2x8xi32>
    %436 = vector.broadcast %430 : vector<2x1xi32> to vector<2x15xi32>
    %437 = arith.cmpi eq, %193, %436 : vector<2x15xi32>
    %c0_i32_67 = arith.constant 0 : i32
    %438 = vector.broadcast %c0_i32_67 : i32 to vector<2x15xi32>
    %439 = arith.select %437, %300, %438 : vector<2x15xi1>, vector<2x15xi32>
    %cst_68 = arith.constant dense<0> : vector<2xi32>
    %440 = vector.multi_reduction <add>, %439, %cst_68 [1] : vector<2x15xi32> to vector<2xi32>
    %441 = vector.shape_cast %440 : vector<2xi32> to vector<2x1xi32>
    %c3_i32 = arith.constant 3 : i32
    %442 = vector.broadcast %c3_i32 : i32 to vector<2x8xi32>
    %443 = arith.cmpi eq, %396, %442 : vector<2x8xi32>
    %444 = vector.shape_cast %441 : vector<2x1xi32> to vector<2x1xi32>
    %445 = vector.broadcast %444 : vector<2x1xi32> to vector<2x8xi32>
    %446 = arith.select %443, %445, %435 : vector<2x8xi1>, vector<2x8xi32>
    %447 = vector.broadcast %441 : vector<2x1xi32> to vector<2x15xi32>
    %448 = arith.cmpi eq, %193, %447 : vector<2x15xi32>
    %c0_i32_69 = arith.constant 0 : i32
    %449 = vector.broadcast %c0_i32_69 : i32 to vector<2x15xi32>
    %450 = arith.select %448, %273, %449 : vector<2x15xi1>, vector<2x15xi32>
    %cst_70 = arith.constant dense<0> : vector<2xi32>
    %451 = vector.multi_reduction <add>, %450, %cst_70 [1] : vector<2x15xi32> to vector<2xi32>
    %452 = vector.shape_cast %451 : vector<2xi32> to vector<2x1xi32>
    %c2_i32 = arith.constant 2 : i32
    %453 = vector.broadcast %c2_i32 : i32 to vector<2x8xi32>
    %454 = arith.cmpi eq, %396, %453 : vector<2x8xi32>
    %455 = vector.shape_cast %452 : vector<2x1xi32> to vector<2x1xi32>
    %456 = vector.broadcast %455 : vector<2x1xi32> to vector<2x8xi32>
    %457 = arith.select %454, %456, %446 : vector<2x8xi1>, vector<2x8xi32>
    %458 = vector.broadcast %452 : vector<2x1xi32> to vector<2x15xi32>
    %459 = arith.cmpi eq, %193, %458 : vector<2x15xi32>
    %c0_i32_71 = arith.constant 0 : i32
    %460 = vector.broadcast %c0_i32_71 : i32 to vector<2x15xi32>
    %461 = arith.select %459, %246, %460 : vector<2x15xi1>, vector<2x15xi32>
    %cst_72 = arith.constant dense<0> : vector<2xi32>
    %462 = vector.multi_reduction <add>, %461, %cst_72 [1] : vector<2x15xi32> to vector<2xi32>
    %463 = vector.shape_cast %462 : vector<2xi32> to vector<2x1xi32>
    %c1_i32 = arith.constant 1 : i32
    %464 = vector.broadcast %c1_i32 : i32 to vector<2x8xi32>
    %465 = arith.cmpi eq, %396, %464 : vector<2x8xi32>
    %466 = vector.shape_cast %463 : vector<2x1xi32> to vector<2x1xi32>
    %467 = vector.broadcast %466 : vector<2x1xi32> to vector<2x8xi32>
    %468 = arith.select %465, %467, %457 : vector<2x8xi1>, vector<2x8xi32>
    %469 = vector.broadcast %463 : vector<2x1xi32> to vector<2x15xi32>
    %470 = arith.cmpi eq, %193, %469 : vector<2x15xi32>
    %c0_i32_73 = arith.constant 0 : i32
    %471 = vector.broadcast %c0_i32_73 : i32 to vector<2x15xi32>
    %472 = arith.select %470, %219, %471 : vector<2x15xi1>, vector<2x15xi32>
    %cst_74 = arith.constant dense<0> : vector<2xi32>
    %473 = vector.multi_reduction <add>, %472, %cst_74 [1] : vector<2x15xi32> to vector<2xi32>
    %474 = vector.shape_cast %473 : vector<2xi32> to vector<2x1xi32>
    %c0_i32_75 = arith.constant 0 : i32
    %475 = vector.broadcast %c0_i32_75 : i32 to vector<2x8xi32>
    %476 = arith.cmpi eq, %396, %475 : vector<2x8xi32>
    %477 = vector.shape_cast %474 : vector<2x1xi32> to vector<2x1xi32>
    %478 = vector.broadcast %477 : vector<2x1xi32> to vector<2x8xi32>
    %479 = arith.select %476, %478, %468 : vector<2x8xi1>, vector<2x8xi32>
    %c0_76 = arith.constant 0 : index
    %c0_77 = arith.constant 0 : index
    %480 = vector.load %arg4[%c0_76, %c0_77] : memref<2x8xi32, #tpu.memory_space<vmem>>, vector<2x8xi32>
    tpu.vector_store %arg4[%c0_76, %c0_77], %479 {strides = array<i32>} : memref<2x8xi32, #tpu.memory_space<vmem>>, vector<2x8xi32>,
    return
  }
}

</mosaic_0001>

<llo_original>
// kernel: model1_forward.1
$region0: #{model1_forward.1}
  #allocation0 [shape = 'u32[]', space=smem, size = 0x4, offset = 0x4, fixed_abs, tag = 'smem constant byte address 0x4 - core index']
  #allocation1 [shape = 'u32[72,128]{1,0:T(1,128)}', space=vmem, size = 0x9000, scoped, tag = 'internal scratch']
  %s0 = inlined_call_operand.vmem [shape: f32[16,512], index: 0, kind: input, shape index: {}]
  %s1 = inlined_call_operand.vmem [shape: f32[16,1], index: 1, kind: input, shape index: {}]
  %s2 = inlined_call_operand.vmem [shape: f32[168,128], index: 2, kind: input, shape index: {}]
  %s3 = inlined_call_operand.vmem [shape: bf16[128,512], index: 3, kind: input, shape index: {}]
  %s4 = inlined_call_operand.hbm [shape: s32[2,8], index: 4, kind: output, shape index: {}]
  %s5 = sld [smem:[#allocation0]]
  $region26: #{model1_forward.1} parent=0
    _
  %s7 = ssub.s32 1, %s5
  %s8 = scalar_select 0, %s7, %s5
  $region1: #{model1_forward.1} parent=0
    #allocation2 [shape = 'u8[1024]{0}', space=vmem, size = 0x400, scoped, tag = 'output window, operand 0, single buffered']
    #allocation3 [shape = 's32[1]{0}', space=sflag, size = 0x4, scoped, tag = 'scoped memory for model1_forward.1']
    %9 = vsyncpa [#allocation3], 0
    // Predicated region
    $region2: #{model1_forward.1} parent=1 // pred_check
      _
    $region3: #{model1_forward.1} parent=1 // pred_check_branch
      %11 = sbr.rel (0) target = $region5
    $region4: #{model1_forward.1} parent=1 // pred_region
      _
    $region5: #{model1_forward.1} parent=1 // pred_fallthru
      _
    // Predicated region
    $region6: #{model1_forward.1} parent=1 // pred_check
      _
    $region7: #{model1_forward.1} parent=1 // pred_check_branch
      %13 = sbr.rel (0) target = $region9
    $region8: #{model1_forward.1} parent=1 // pred_region
      _
    $region9: #{model1_forward.1} parent=1 // pred_fallthru
      _
    // Predicated region
    $region10: #{model1_forward.1} parent=1 // pred_check
      _
    $region11: #{model1_forward.1} parent=1 // pred_check_branch
      %15 = sbr.rel (0) target = $region13
    $region12: #{model1_forward.1} parent=1 // pred_region
      _
    $region13: #{model1_forward.1} parent=1 // pred_fallthru
      _
    // Predicated region
    $region14: #{model1_forward.1} parent=1 // pred_check
      _
    $region15: #{model1_forward.1} parent=1 // pred_check_branch
      %17 = sbr.rel (0) target = $region17
    $region16: #{model1_forward.1} parent=1 // pred_region
      _
    $region17: #{model1_forward.1} parent=1 // pred_fallthru
      _
    %v18 = vld [vmem:[%s2] sm:$0x3]
    %v19 = vld [vmem:[%s2 + $0x8] sm:$0x3]
    %v20 = vld [vmem:[%s2 + $0x10] sm:$0xff]
    %v21 = vld [vmem:[%s2 + $0x18] sm:$0xff]
    %v22 = vld [vmem:[%s2 + $0x20] sm:$0xff]
    %v23 = vld [vmem:[%s2 + $0x28] sm:$0xff]
    %v24 = vld [vmem:[%s2 + $0x30] sm:$0xff]
    %v25 = vld [vmem:[%s2 + $0x38] sm:$0xff]
    %v26 = vld [vmem:[%s2 + $0x40] sm:$0xff]
    %v27 = vld [vmem:[%s2 + $0x48] sm:$0xff]
    %v28 = vld [vmem:[%s2 + $0x50] sm:$0xff]
    %v29 = vld [vmem:[%s2 + $0x58] sm:$0xff]
    %v30 = vld [vmem:[%s2 + $0x60] sm:$0xff]
    %v31 = vld [vmem:[%s2 + $0x68] sm:$0xff]
    %v32 = vld [vmem:[%s2 + $0x70] sm:$0xff]
    %v33 = vld [vmem:[%s2 + $0x78] sm:$0xff]
    %v34 = vld [vmem:[%s2 + $0x80] sm:$0xff]
    %v35 = vld [vmem:[%s2 + $0x88] sm:$0xff]
    %v36 = vld [vmem:[%s2 + $0x90] sm:$0x1]
    %v37 = vld [vmem:[%s2 + $0x91] sm:$0x1]
    %v38 = vld [vmem:[%s2 + $0x92] sm:$0x1]
    %v39 = vld [vmem:[%s2 + $0x98] sm:$0xff]
    %v40 = vld [vmem:[%s2 + $0xa0] sm:$0x7f]
    %v41 = vld [vmem:[%s3] sm:$0xff]
    %v42 = vld [vmem:[%s3 + $0x8] sm:$0xff]
    %v43 = vld [vmem:[%s3 + $0x10] sm:$0xff]
    %v44 = vld [vmem:[%s3 + $0x18] sm:$0xff]
    %v45 = vld [vmem:[%s3 + $0x20] sm:$0xff]
    %v46 = vld [vmem:[%s3 + $0x28] sm:$0xff]
    %v47 = vld [vmem:[%s3 + $0x30] sm:$0xff]
    %v48 = vld [vmem:[%s3 + $0x38] sm:$0xff]
    %v49 = vld [vmem:[%s3 + $0x40] sm:$0xff]
    %v50 = vld [vmem:[%s3 + $0x48] sm:$0xff]
    %v51 = vld [vmem:[%s3 + $0x50] sm:$0xff]
    %v52 = vld [vmem:[%s3 + $0x58] sm:$0xff]
    %v53 = vld [vmem:[%s3 + $0x60] sm:$0xff]
    %v54 = vld [vmem:[%s3 + $0x68] sm:$0xff]
    %v55 = vld [vmem:[%s3 + $0x70] sm:$0xff]
    %v56 = vld [vmem:[%s3 + $0x78] sm:$0xff]
    %v57 = vld [vmem:[%s3 + $0x80] sm:$0xff]
    %v58 = vld [vmem:[%s3 + $0x88] sm:$0xff]
    %v59 = vld [vmem:[%s3 + $0x90] sm:$0xff]
    %v60 = vld [vmem:[%s3 + $0x98] sm:$0xff]
    %v61 = vld [vmem:[%s3 + $0xa0] sm:$0xff]
    %v62 = vld [vmem:[%s3 + $0xa8] sm:$0xff]
    %v63 = vld [vmem:[%s3 + $0xb0] sm:$0xff]
    %v64 = vld [vmem:[%s3 + $0xb8] sm:$0xff]
    %v65 = vld [vmem:[%s3 + $0xc0] sm:$0xff]
    %v66 = vld [vmem:[%s3 + $0xc8] sm:$0xff]
    %v67 = vld [vmem:[%s3 + $0xd0] sm:$0xff]
    %v68 = vld [vmem:[%s3 + $0xd8] sm:$0xff]
    %v69 = vld [vmem:[%s3 + $0xe0] sm:$0xff]
    %v70 = vld [vmem:[%s3 + $0xe8] sm:$0xff]
    %v71 = vld [vmem:[%s3 + $0xf0] sm:$0xff]
    %v72 = vld [vmem:[%s3 + $0xf8] sm:$0xff]
    %v73 = vld [vmem:[%s0] sm:$0xff]
    %v74 = vld [vmem:[%s0 + $0x8] sm:$0xff]
    %v75 = vld [vmem:[%s0 + $0x10] sm:$0xff]
    %v76 = vld [vmem:[%s0 + $0x18] sm:$0xff]
    %v77 = vld [vmem:[%s0 + $0x20] sm:$0xff]
    %v78 = vld [vmem:[%s0 + $0x28] sm:$0xff]
    %v79 = vld [vmem:[%s0 + $0x30] sm:$0xff]
    %v80 = vld [vmem:[%s0 + $0x38] sm:$0xff]
    %v81 = vld [vmem:[%s1] sm:$0xff]
    %v82 = vld [vmem:[%s1 + $0x8] sm:$0xff]
    %v83 = vpack.c.bf16 %v18, %v18
    %v116 = vunpack.c.l.b16 %v41
    %v117 = vunpack.c.h.b16 %v41
    %v118 = vunpack.c.l.b16 %v42
    %v119 = vunpack.c.h.b16 %v42
    %v120 = vunpack.c.l.b16 %v43
    %v121 = vunpack.c.h.b16 %v43
    %v122 = vunpack.c.l.b16 %v44
    %v123 = vunpack.c.h.b16 %v44
    %v124 = vunpack.c.l.b16 %v45
    %v125 = vunpack.c.h.b16 %v45
    %v126 = vunpack.c.l.b16 %v46
    %v127 = vunpack.c.h.b16 %v46
    %v128 = vunpack.c.l.b16 %v47
    %v129 = vunpack.c.h.b16 %v47
    %v130 = vunpack.c.l.b16 %v48
    %v131 = vunpack.c.h.b16 %v48
    %v132 = vunpack.c.l.b16 %v49
    %v133 = vunpack.c.h.b16 %v49
    %v134 = vunpack.c.l.b16 %v50
    %v135 = vunpack.c.h.b16 %v50
    %v136 = vunpack.c.l.b16 %v51
    %v137 = vunpack.c.h.b16 %v51
    %v138 = vunpack.c.l.b16 %v52
    %v139 = vunpack.c.h.b16 %v52
    %v140 = vunpack.c.l.b16 %v53
    %v141 = vunpack.c.h.b16 %v53
    %v142 = vunpack.c.l.b16 %v54
    %v143 = vunpack.c.h.b16 %v54
    %v144 = vunpack.c.l.b16 %v55
    %v145 = vunpack.c.h.b16 %v55
    %v146 = vunpack.c.l.b16 %v56
    %v147 = vunpack.c.h.b16 %v56
    %v148 = vunpack.c.l.b16 %v57
    %v149 = vunpack.c.h.b16 %v57
    %v150 = vunpack.c.l.b16 %v58
    %v151 = vunpack.c.h.b16 %v58
    %v152 = vunpack.c.l.b16 %v59
    %v153 = vunpack.c.h.b16 %v59
    %v154 = vunpack.c.l.b16 %v60
    %v155 = vunpack.c.h.b16 %v60
    %v156 = vunpack.c.l.b16 %v61
    %v157 = vunpack.c.h.b16 %v61
    %v158 = vunpack.c.l.b16 %v62
    %v159 = vunpack.c.h.b16 %v62
    %v160 = vunpack.c.l.b16 %v63
    %v161 = vunpack.c.h.b16 %v63
    %v162 = vunpack.c.l.b16 %v64
    %v163 = vunpack.c.h.b16 %v64
    %v164 = vunpack.c.l.b16 %v65
    %v165 = vunpack.c.h.b16 %v65
    %v166 = vunpack.c.l.b16 %v66
    %v167 = vunpack.c.h.b16 %v66
    %v168 = vunpack.c.l.b16 %v67
    %v169 = vunpack.c.h.b16 %v67
    %v170 = vunpack.c.l.b16 %v68
    %v171 = vunpack.c.h.b16 %v68
    %v172 = vunpack.c.l.b16 %v69
    %v173 = vunpack.c.h.b16 %v69
    %v174 = vunpack.c.l.b16 %v70
    %v175 = vunpack.c.h.b16 %v70
    %v176 = vunpack.c.l.b16 %v71
    %v177 = vunpack.c.h.b16 %v71
    %v178 = vunpack.c.l.b16 %v72
    %v179 = vunpack.c.h.b16 %v72
    %v180 = vpack.c.b16 %v120, %v116
    %v181 = vpack.c.b16 %v121, %v117
    %v182 = vpack.c.b16 %v122, %v118
    %v183 = vpack.c.b16 %v123, %v119
    %v184 = vpack.c.b16 %v128, %v124
    %v185 = vpack.c.b16 %v129, %v125
    %v186 = vpack.c.b16 %v130, %v126
    %v187 = vpack.c.b16 %v131, %v127
    %v188 = vpack.c.b16 %v136, %v132
    %v189 = vpack.c.b16 %v137, %v133
    %v190 = vpack.c.b16 %v138, %v134
    %v191 = vpack.c.b16 %v139, %v135
    %v192 = vpack.c.b16 %v144, %v140
    %v193 = vpack.c.b16 %v145, %v141
    %v194 = vpack.c.b16 %v146, %v142
    %v195 = vpack.c.b16 %v147, %v143
    %v196 = vpack.c.b16 %v152, %v148
    %v197 = vpack.c.b16 %v153, %v149
    %v198 = vpack.c.b16 %v154, %v150
    %v199 = vpack.c.b16 %v155, %v151
    %v200 = vpack.c.b16 %v160, %v156
    %v201 = vpack.c.b16 %v161, %v157
    %v202 = vpack.c.b16 %v162, %v158
    %v203 = vpack.c.b16 %v163, %v159
    %v204 = vpack.c.b16 %v168, %v164
    %v205 = vpack.c.b16 %v169, %v165
    %v206 = vpack.c.b16 %v170, %v166
    %v207 = vpack.c.b16 %v171, %v167
    %v208 = vpack.c.b16 %v176, %v172
    %v209 = vpack.c.b16 %v177, %v173
    %v210 = vpack.c.b16 %v178, %v174
    %v211 = vpack.c.b16 %v179, %v175
    %244 = vmatpush.bf16.msra.mxu0 %v208
    %245 = vmatpush.bf16.msra.mxu0 %v204
    %246 = vmatpush.bf16.msra.mxu0 %v200
    %247 = vmatpush.bf16.msra.mxu0 %v196
    %248 = vmatpush.bf16.msra.mxu0 %v192
    %249 = vmatpush.bf16.msra.mxu0 %v188
    %250 = vmatpush.bf16.msra.mxu0 %v184
    %251 = vmatpush.bf16.msra.mxu0 %v180
    %252 = vmatmul.bf16.gmra.mxu0 %v83
    %v253 = vpop.f32.mrf.mxu0
    %v254 = vadd.f32 0.0, %v253
    %v255 = vpop.f32.mrf.mxu0
    %256 = vdwg.mxu0
    %257 = vmatpush.bf16.msra.mxu0 %v209
    %258 = vmatpush.bf16.msra.mxu0 %v205
    %259 = vmatpush.bf16.msra.mxu0 %v201
    %260 = vmatpush.bf16.msra.mxu0 %v197
    %261 = vmatpush.bf16.msra.mxu0 %v193
    %262 = vmatpush.bf16.msra.mxu0 %v189
    %263 = vmatpush.bf16.msra.mxu0 %v185
    %264 = vmatpush.bf16.msra.mxu0 %v181
    %265 = vmatmul.bf16.gmra.mxu0 %v83
    %v266 = vpop.f32.mrf.mxu0
    %v267 = vadd.f32 0.0, %v266
    %v268 = vpop.f32.mrf.mxu0
    %269 = vdwg.mxu0
    %270 = vmatpush.bf16.msra.mxu0 %v210
    %271 = vmatpush.bf16.msra.mxu0 %v206
    %272 = vmatpush.bf16.msra.mxu0 %v202
    %273 = vmatpush.bf16.msra.mxu0 %v198
    %274 = vmatpush.bf16.msra.mxu0 %v194
    %275 = vmatpush.bf16.msra.mxu0 %v190
    %276 = vmatpush.bf16.msra.mxu0 %v186
    %277 = vmatpush.bf16.msra.mxu0 %v182
    %278 = vmatmul.bf16.gmra.mxu0 %v83
    %v279 = vpop.f32.mrf.mxu0
    %v280 = vadd.f32 0.0, %v279
    %v281 = vpop.f32.mrf.mxu0
    %282 = vdwg.mxu0
    %283 = vmatpush.bf16.msra.mxu0 %v211
    %284 = vmatpush.bf16.msra.mxu0 %v207
    %285 = vmatpush.bf16.msra.mxu0 %v203
    %286 = vmatpush.bf16.msra.mxu0 %v199
    %287 = vmatpush.bf16.msra.mxu0 %v195
    %288 = vmatpush.bf16.msra.mxu0 %v191
    %289 = vmatpush.bf16.msra.mxu0 %v187
    %290 = vmatpush.bf16.msra.mxu0 %v183
    %291 = vmatmul.bf16.gmra.mxu0 %v83
    %v292 = vpop.f32.mrf.mxu0
    %v293 = vadd.f32 0.0, %v292
    %v294 = vpop.f32.mrf.mxu0
    %295 = vdwg.mxu0
    %v296 = vadd.f32 %v73, %v254
    %v297 = vadd.f32 %v74, %v267
    %v298 = vadd.f32 %v75, %v280
    %v299 = vadd.f32 %v76, %v293
    %v300 = vxor.u32 %v296, 2147483648
    %v301 = vxor.u32 %v297, 2147483648
    %v302 = vxor.u32 %v298, 2147483648
    %v303 = vmul.f32 %v300, 1.442695
    %v304 = vpow.pop %v303
    %v305 = vmul.f32 %v301, 1.442695
    %v306 = vpow.pop %v305
    %v307 = vmul.f32 %v302, 1.442695
    %v308 = vpow.pop %v307
    %v309 = vadd.f32 %v304, 1.0
    %v310 = vadd.f32 %v306, 1.0
    %v311 = vadd.f32 %v308, 1.0
    %v312 = vrcp.pop %v309
    %v313 = vmul.f32 %v309, %v312
    %v314 = vsub.f32 1.0, %v313
    %v315 = vmul.f32 %v312, %v314
    %v316 = vadd.f32 %v312, %v315
    %vm317 = vweird.f32 %v309
    %vm318 = vweird.f32 %v312
    %vm319 = vmor %vm317, %vm318
    %v320 = vsel %vm319, %v312, %v316
    %v321 = vand.u32 2147483647, %v309
    %vm322 = vcmp.eq.f32.partialorder %v321, 8.507059e+37
    %v323 = vand.u32 %v309, 2147483648
    %v324 = vor.u32 1.1754944e-38, %v323
    %v325 = vsel %vm322, %v324, %v320
    %v326 = vmul.f32 1.0, %v325
    %v327 = vrcp.pop %v310
    %v328 = vmul.f32 %v310, %v327
    %v329 = vsub.f32 1.0, %v328
    %v330 = vmul.f32 %v327, %v329
    %v331 = vadd.f32 %v327, %v330
    %vm332 = vweird.f32 %v310
    %vm333 = vweird.f32 %v327
    %vm334 = vmor %vm332, %vm333
    %v335 = vsel %vm334, %v327, %v331
    %v336 = vand.u32 2147483647, %v310
    %vm337 = vcmp.eq.f32.partialorder %v336, 8.507059e+37
    %v338 = vand.u32 %v310, 2147483648
    %v339 = vor.u32 1.1754944e-38, %v338
    %v340 = vsel %vm337, %v339, %v335
    %v341 = vmul.f32 1.0, %v340
    %v342 = vrcp.pop %v311
    %v343 = vmul.f32 %v311, %v342
    %v344 = vsub.f32 1.0, %v343
    %v345 = vmul.f32 %v342, %v344
    %v346 = vadd.f32 %v342, %v345
    %vm347 = vweird.f32 %v311
    %vm348 = vweird.f32 %v342
    %vm349 = vmor %vm347, %vm348
    %v350 = vsel %vm349, %v342, %v346
    %v351 = vand.u32 2147483647, %v311
    %vm352 = vcmp.eq.f32.partialorder %v351, 8.507059e+37
    %v353 = vand.u32 %v311, 2147483648
    %v354 = vor.u32 1.1754944e-38, %v353
    %v355 = vsel %vm352, %v354, %v350
    %v356 = vmul.f32 1.0, %v355
    %v357 = vtanh.pop %v299
    %v358 = vmul.f32 %v341, %v19
    %v359 = vmul.f32 %v326, %v357
    %v360 = vadd.f32 %v358, %v359
    %v361 = vtanh.pop %v360
    %v362 = vmul.f32 %v356, %v361
    %v363 = vpack.c.bf16 %v362, %v362
    %364 = vmatpush.bf16.msra.mxu0 %v208
    %365 = vmatpush.bf16.msra.mxu0 %v204
    %366 = vmatpush.bf16.msra.mxu0 %v200
    %367 = vmatpush.bf16.msra.mxu0 %v196
    %368 = vmatpush.bf16.msra.mxu0 %v192
    %369 = vmatpush.bf16.msra.mxu0 %v188
    %370 = vmatpush.bf16.msra.mxu0 %v184
    %371 = vmatpush.bf16.msra.mxu0 %v180
    %372 = vmatmul.bf16.gmra.mxu0 %v363
    %v373 = vpop.f32.mrf.mxu0
    %v374 = vadd.f32 0.0, %v373
    %v375 = vpop.f32.mrf.mxu0
    %376 = vdwg.mxu0
    %377 = vmatpush.bf16.msra.mxu0 %v209
    %378 = vmatpush.bf16.msra.mxu0 %v205
    %379 = vmatpush.bf16.msra.mxu0 %v201
    %380 = vmatpush.bf16.msra.mxu0 %v197
    %381 = vmatpush.bf16.msra.mxu0 %v193
    %382 = vmatpush.bf16.msra.mxu0 %v189
    %383 = vmatpush.bf16.msra.mxu0 %v185
    %384 = vmatpush.bf16.msra.mxu0 %v181
    %385 = vmatmul.bf16.gmra.mxu0 %v363
    %v386 = vpop.f32.mrf.mxu0
    %v387 = vadd.f32 0.0, %v386
    %v388 = vpop.f32.mrf.mxu0
    %389 = vdwg.mxu0
    %390 = vmatpush.bf16.msra.mxu0 %v210
    %391 = vmatpush.bf16.msra.mxu0 %v206
    %392 = vmatpush.bf16.msra.mxu0 %v202
    %393 = vmatpush.bf16.msra.mxu0 %v198
    %394 = vmatpush.bf16.msra.mxu0 %v194
    %395 = vmatpush.bf16.msra.mxu0 %v190
    %396 = vmatpush.bf16.msra.mxu0 %v186
    %397 = vmatpush.bf16.msra.mxu0 %v182
    %398 = vmatmul.bf16.gmra.mxu0 %v363
    %v399 = vpop.f32.mrf.mxu0
    %v400 = vadd.f32 0.0, %v399
    %v401 = vpop.f32.mrf.mxu0
    %402 = vdwg.mxu0
    %403 = vmatpush.bf16.msra.mxu0 %v211
    %404 = vmatpush.bf16.msra.mxu0 %v207
    %405 = vmatpush.bf16.msra.mxu0 %v203
    %406 = vmatpush.bf16.msra.mxu0 %v199
    %407 = vmatpush.bf16.msra.mxu0 %v195
    %408 = vmatpush.bf16.msra.mxu0 %v191
    %409 = vmatpush.bf16.msra.mxu0 %v187
    %410 = vmatpush.bf16.msra.mxu0 %v183
    %411 = vmatmul.bf16.gmra.mxu0 %v363
    %v412 = vpop.f32.mrf.mxu0
    %v413 = vadd.f32 0.0, %v412
    %v414 = vpop.f32.mrf.mxu0
    %415 = vdwg.mxu0
    %v420 = vrot.slane %v374, 6
    %v421 = vrot.slane %v387, 6
    %v422 = vrot.slane %v400, 6
    %v423 = vrot.slane %v413, 6
    %v428 = vadd.f32 %v73, %v420
    %v429 = vadd.f32 %v74, %v421
    %v430 = vadd.f32 %v75, %v422
    %v431 = vadd.f32 %v76, %v423
    %v432 = vxor.u32 %v428, 2147483648
    %v433 = vxor.u32 %v429, 2147483648
    %v434 = vxor.u32 %v430, 2147483648
    %v435 = vmul.f32 %v432, 1.442695
    %v436 = vpow.pop %v435
    %v437 = vmul.f32 %v433, 1.442695
    %v438 = vpow.pop %v437
    %v439 = vmul.f32 %v434, 1.442695
    %v440 = vpow.pop %v439
    %v441 = vadd.f32 %v436, 1.0
    %v442 = vadd.f32 %v438, 1.0
    %v443 = vadd.f32 %v440, 1.0
    %v444 = vrcp.pop %v441
    %v445 = vmul.f32 %v441, %v444
    %v446 = vsub.f32 1.0, %v445
    %v447 = vmul.f32 %v444, %v446
    %v448 = vadd.f32 %v444, %v447
    %vm449 = vweird.f32 %v441
    %vm450 = vweird.f32 %v444
    %vm451 = vmor %vm449, %vm450
    %v452 = vsel %vm451, %v444, %v448
    %v453 = vand.u32 2147483647, %v441
    %vm454 = vcmp.eq.f32.partialorder %v453, 8.507059e+37
    %v455 = vand.u32 %v441, 2147483648
    %v456 = vor.u32 1.1754944e-38, %v455
    %v457 = vsel %vm454, %v456, %v452
    %v458 = vmul.f32 1.0, %v457
    %v459 = vrcp.pop %v442
    %v460 = vmul.f32 %v442, %v459
    %v461 = vsub.f32 1.0, %v460
    %v462 = vmul.f32 %v459, %v461
    %v463 = vadd.f32 %v459, %v462
    %vm464 = vweird.f32 %v442
    %vm465 = vweird.f32 %v459
    %vm466 = vmor %vm464, %vm465
    %v467 = vsel %vm466, %v459, %v463
    %v468 = vand.u32 2147483647, %v442
    %vm469 = vcmp.eq.f32.partialorder %v468, 8.507059e+37
    %v470 = vand.u32 %v442, 2147483648
    %v471 = vor.u32 1.1754944e-38, %v470
    %v472 = vsel %vm469, %v471, %v467
    %v473 = vmul.f32 1.0, %v472
    %v474 = vrcp.pop %v443
    %v475 = vmul.f32 %v443, %v474
    %v476 = vsub.f32 1.0, %v475
    %v477 = vmul.f32 %v474, %v476
    %v478 = vadd.f32 %v474, %v477
    %vm479 = vweird.f32 %v443
    %vm480 = vweird.f32 %v474
    %vm481 = vmor %vm479, %vm480
    %v482 = vsel %vm481, %v474, %v478
    %v483 = vand.u32 2147483647, %v443
    %vm484 = vcmp.eq.f32.partialorder %v483, 8.507059e+37
    %v485 = vand.u32 %v443, 2147483648
    %v486 = vor.u32 1.1754944e-38, %v485
    %v487 = vsel %vm484, %v486, %v482
    %v488 = vmul.f32 1.0, %v487
    %v489 = vtanh.pop %v431
    %v491 = vrot.slane %v360, 6
    %v493 = vmul.f32 %v473, %v491
    %v494 = vmul.f32 %v458, %v489
    %v495 = vadd.f32 %v493, %v494
    %v496 = vtanh.pop %v495
    %v497 = vmul.f32 %v488, %v496
    %v498 = vpack.c.bf16 %v497, %v497
    %v500 = vrot.slane %v498, 1
    %502 = vmatpush.bf16.msra.mxu0 %v208
    %503 = vmatpush.bf16.msra.mxu0 %v204
    %504 = vmatpush.bf16.msra.mxu0 %v200
    %505 = vmatpush.bf16.msra.mxu0 %v196
    %506 = vmatpush.bf16.msra.mxu0 %v192
    %507 = vmatpush.bf16.msra.mxu0 %v188
    %508 = vmatpush.bf16.msra.mxu0 %v184
    %509 = vmatpush.bf16.msra.mxu0 %v180
    %510 = vmatmul.bf16.gmra.mxu0 %v500
    %v511 = vpop.f32.mrf.mxu0
    %v512 = vadd.f32 0.0, %v511
    %v513 = vpop.f32.mrf.mxu0
    %514 = vdwg.mxu0
    %515 = vmatpush.bf16.msra.mxu0 %v209
    %516 = vmatpush.bf16.msra.mxu0 %v205
    %517 = vmatpush.bf16.msra.mxu0 %v201
    %518 = vmatpush.bf16.msra.mxu0 %v197
    %519 = vmatpush.bf16.msra.mxu0 %v193
    %520 = vmatpush.bf16.msra.mxu0 %v189
    %521 = vmatpush.bf16.msra.mxu0 %v185
    %522 = vmatpush.bf16.msra.mxu0 %v181
    %523 = vmatmul.bf16.gmra.mxu0 %v500
    %v524 = vpop.f32.mrf.mxu0
    %v525 = vadd.f32 0.0, %v524
    %v526 = vpop.f32.mrf.mxu0
    %527 = vdwg.mxu0
    %528 = vmatpush.bf16.msra.mxu0 %v210
    %529 = vmatpush.bf16.msra.mxu0 %v206
    %530 = vmatpush.bf16.msra.mxu0 %v202
    %531 = vmatpush.bf16.msra.mxu0 %v198
    %532 = vmatpush.bf16.msra.mxu0 %v194
    %533 = vmatpush.bf16.msra.mxu0 %v190
    %534 = vmatpush.bf16.msra.mxu0 %v186
    %535 = vmatpush.bf16.msra.mxu0 %v182
    %536 = vmatmul.bf16.gmra.mxu0 %v500
    %v537 = vpop.f32.mrf.mxu0
    %v538 = vadd.f32 0.0, %v537
    %v539 = vpop.f32.mrf.mxu0
    %540 = vdwg.mxu0
    %541 = vmatpush.bf16.msra.mxu0 %v211
    %542 = vmatpush.bf16.msra.mxu0 %v207
    %543 = vmatpush.bf16.msra.mxu0 %v203
    %544 = vmatpush.bf16.msra.mxu0 %v199
    %545 = vmatpush.bf16.msra.mxu0 %v195
    %546 = vmatpush.bf16.msra.mxu0 %v191
    %547 = vmatpush.bf16.msra.mxu0 %v187
    %548 = vmatpush.bf16.msra.mxu0 %v183
    %549 = vmatmul.bf16.gmra.mxu0 %v500
    %v550 = vpop.f32.mrf.mxu0
    %v551 = vadd.f32 0.0, %v550
    %v552 = vpop.f32.mrf.mxu0
    %553 = vdwg.mxu0
    %v558 = vrot.slane %v512, 4
    %v559 = vrot.slane %v525, 4
    %v560 = vrot.slane %v538, 4
    %v561 = vrot.slane %v551, 4
    %v566 = vadd.f32 %v73, %v558
    %v567 = vadd.f32 %v74, %v559
    %v568 = vadd.f32 %v75, %v560
    %v569 = vadd.f32 %v76, %v561
    %v570 = vxor.u32 %v566, 2147483648
    %v571 = vxor.u32 %v567, 2147483648
    %v572 = vxor.u32 %v568, 2147483648
    %v573 = vmul.f32 %v570, 1.442695
    %v574 = vpow.pop %v573
    %v575 = vmul.f32 %v571, 1.442695
    %v576 = vpow.pop %v575
    %v577 = vmul.f32 %v572, 1.442695
    %v578 = vpow.pop %v577
    %v579 = vadd.f32 %v574, 1.0
    %v580 = vadd.f32 %v576, 1.0
    %v581 = vadd.f32 %v578, 1.0
    %v582 = vrcp.pop %v579
    %v583 = vmul.f32 %v579, %v582
    %v584 = vsub.f32 1.0, %v583
    %v585 = vmul.f32 %v582, %v584
    %v586 = vadd.f32 %v582, %v585
    %vm587 = vweird.f32 %v579
    %vm588 = vweird.f32 %v582
    %vm589 = vmor %vm587, %vm588
    %v590 = vsel %vm589, %v582, %v586
    %v591 = vand.u32 2147483647, %v579
    %vm592 = vcmp.eq.f32.partialorder %v591, 8.507059e+37
    %v593 = vand.u32 %v579, 2147483648
    %v594 = vor.u32 1.1754944e-38, %v593
    %v595 = vsel %vm592, %v594, %v590
    %v596 = vmul.f32 1.0, %v595
    %v597 = vrcp.pop %v580
    %v598 = vmul.f32 %v580, %v597
    %v599 = vsub.f32 1.0, %v598
    %v600 = vmul.f32 %v597, %v599
    %v601 = vadd.f32 %v597, %v600
    %vm602 = vweird.f32 %v580
    %vm603 = vweird.f32 %v597
    %vm604 = vmor %vm602, %vm603
    %v605 = vsel %vm604, %v597, %v601
    %v606 = vand.u32 2147483647, %v580
    %vm607 = vcmp.eq.f32.partialorder %v606, 8.507059e+37
    %v608 = vand.u32 %v580, 2147483648
    %v609 = vor.u32 1.1754944e-38, %v608
    %v610 = vsel %vm607, %v609, %v605
    %v611 = vmul.f32 1.0, %v610
    %v612 = vrcp.pop %v581
    %v613 = vmul.f32 %v581, %v612
    %v614 = vsub.f32 1.0, %v613
    %v615 = vmul.f32 %v612, %v614
    %v616 = vadd.f32 %v612, %v615
    %vm617 = vweird.f32 %v581
    %vm618 = vweird.f32 %v612
    %vm619 = vmor %vm617, %vm618
    %v620 = vsel %vm619, %v612, %v616
    %v621 = vand.u32 2147483647, %v581
    %vm622 = vcmp.eq.f32.partialorder %v621, 8.507059e+37
    %v623 = vand.u32 %v581, 2147483648
    %v624 = vor.u32 1.1754944e-38, %v623
    %v625 = vsel %vm622, %v624, %v620
    %v626 = vmul.f32 1.0, %v625
    %v627 = vtanh.pop %v569
    %v629 = vrot.slane %v495, 6
    %v631 = vmul.f32 %v611, %v629
    %v632 = vmul.f32 %v596, %v627
    %v633 = vadd.f32 %v631, %v632
    %v634 = vtanh.pop %v633
    %v635 = vmul.f32 %v626, %v634
    %v636 = vpack.c.bf16 %v635, %v635
    %v638 = vrot.slane %v636, 2
    %640 = vmatpush.bf16.msra.mxu0 %v208
    %641 = vmatpush.bf16.msra.mxu0 %v204
    %642 = vmatpush.bf16.msra.mxu0 %v200
    %643 = vmatpush.bf16.msra.mxu0 %v196
    %644 = vmatpush.bf16.msra.mxu0 %v192
    %645 = vmatpush.bf16.msra.mxu0 %v188
    %646 = vmatpush.bf16.msra.mxu0 %v184
    %647 = vmatpush.bf16.msra.mxu0 %v180
    %648 = vmatmul.bf16.gmra.mxu0 %v638
    %v649 = vpop.f32.mrf.mxu0
    %v650 = vadd.f32 0.0, %v649
    %v651 = vpop.f32.mrf.mxu0
    %652 = vdwg.mxu0
    %653 = vmatpush.bf16.msra.mxu0 %v209
    %654 = vmatpush.bf16.msra.mxu0 %v205
    %655 = vmatpush.bf16.msra.mxu0 %v201
    %656 = vmatpush.bf16.msra.mxu0 %v197
    %657 = vmatpush.bf16.msra.mxu0 %v193
    %658 = vmatpush.bf16.msra.mxu0 %v189
    %659 = vmatpush.bf16.msra.mxu0 %v185
    %660 = vmatpush.bf16.msra.mxu0 %v181
    %661 = vmatmul.bf16.gmra.mxu0 %v638
    %v662 = vpop.f32.mrf.mxu0
    %v663 = vadd.f32 0.0, %v662
    %v664 = vpop.f32.mrf.mxu0
    %665 = vdwg.mxu0
    %666 = vmatpush.bf16.msra.mxu0 %v210
    %667 = vmatpush.bf16.msra.mxu0 %v206
    %668 = vmatpush.bf16.msra.mxu0 %v202
    %669 = vmatpush.bf16.msra.mxu0 %v198
    %670 = vmatpush.bf16.msra.mxu0 %v194
    %671 = vmatpush.bf16.msra.mxu0 %v190
    %672 = vmatpush.bf16.msra.mxu0 %v186
    %673 = vmatpush.bf16.msra.mxu0 %v182
    %674 = vmatmul.bf16.gmra.mxu0 %v638
    %v675 = vpop.f32.mrf.mxu0
    %v676 = vadd.f32 0.0, %v675
    %v677 = vpop.f32.mrf.mxu0
    %678 = vdwg.mxu0
    %679 = vmatpush.bf16.msra.mxu0 %v211
    %680 = vmatpush.bf16.msra.mxu0 %v207
    %681 = vmatpush.bf16.msra.mxu0 %v203
    %682 = vmatpush.bf16.msra.mxu0 %v199
    %683 = vmatpush.bf16.msra.mxu0 %v195
    %684 = vmatpush.bf16.msra.mxu0 %v191
    %685 = vmatpush.bf16.msra.mxu0 %v187
    %686 = vmatpush.bf16.msra.mxu0 %v183
    %687 = vmatmul.bf16.gmra.mxu0 %v638
    %v688 = vpop.f32.mrf.mxu0
    %v689 = vadd.f32 0.0, %v688
    %v690 = vpop.f32.mrf.mxu0
    %691 = vdwg.mxu0
    %v696 = vrot.slane %v650, 2
    %v697 = vrot.slane %v663, 2
    %v698 = vrot.slane %v676, 2
    %v699 = vrot.slane %v689, 2
    %v704 = vadd.f32 %v73, %v696
    %v705 = vadd.f32 %v74, %v697
    %v706 = vadd.f32 %v75, %v698
    %v707 = vadd.f32 %v76, %v699
    %v708 = vxor.u32 %v704, 2147483648
    %v709 = vxor.u32 %v705, 2147483648
    %v710 = vxor.u32 %v706, 2147483648
    %v711 = vmul.f32 %v708, 1.442695
    %v712 = vpow.pop %v711
    %v713 = vmul.f32 %v709, 1.442695
    %v714 = vpow.pop %v713
    %v715 = vmul.f32 %v710, 1.442695
    %v716 = vpow.pop %v715
    %v717 = vadd.f32 %v712, 1.0
    %v718 = vadd.f32 %v714, 1.0
    %v719 = vadd.f32 %v716, 1.0
    %v720 = vrcp.pop %v717
    %v721 = vmul.f32 %v717, %v720
    %v722 = vsub.f32 1.0, %v721
    %v723 = vmul.f32 %v720, %v722
    %v724 = vadd.f32 %v720, %v723
    %vm725 = vweird.f32 %v717
    %vm726 = vweird.f32 %v720
    %vm727 = vmor %vm725, %vm726
    %v728 = vsel %vm727, %v720, %v724
    %v729 = vand.u32 2147483647, %v717
    %vm730 = vcmp.eq.f32.partialorder %v729, 8.507059e+37
    %v731 = vand.u32 %v717, 2147483648
    %v732 = vor.u32 1.1754944e-38, %v731
    %v733 = vsel %vm730, %v732, %v728
    %v734 = vmul.f32 1.0, %v733
    %v735 = vrcp.pop %v718
    %v736 = vmul.f32 %v718, %v735
    %v737 = vsub.f32 1.0, %v736
    %v738 = vmul.f32 %v735, %v737
    %v739 = vadd.f32 %v735, %v738
    %vm740 = vweird.f32 %v718
    %vm741 = vweird.f32 %v735
    %vm742 = vmor %vm740, %vm741
    %v743 = vsel %vm742, %v735, %v739
    %v744 = vand.u32 2147483647, %v718
    %vm745 = vcmp.eq.f32.partialorder %v744, 8.507059e+37
    %v746 = vand.u32 %v718, 2147483648
    %v747 = vor.u32 1.1754944e-38, %v746
    %v748 = vsel %vm745, %v747, %v743
    %v749 = vmul.f32 1.0, %v748
    %v750 = vrcp.pop %v719
    %v751 = vmul.f32 %v719, %v750
    %v752 = vsub.f32 1.0, %v751
    %v753 = vmul.f32 %v750, %v752
    %v754 = vadd.f32 %v750, %v753
    %vm755 = vweird.f32 %v719
    %vm756 = vweird.f32 %v750
    %vm757 = vmor %vm755, %vm756
    %v758 = vsel %vm757, %v750, %v754
    %v759 = vand.u32 2147483647, %v719
    %vm760 = vcmp.eq.f32.partialorder %v759, 8.507059e+37
    %v761 = vand.u32 %v719, 2147483648
    %v762 = vor.u32 1.1754944e-38, %v761
    %v763 = vsel %vm760, %v762, %v758
    %v764 = vmul.f32 1.0, %v763
    %v765 = vtanh.pop %v707
    %v767 = vrot.slane %v633, 6
    %v769 = vmul.f32 %v749, %v767
    %v770 = vmul.f32 %v734, %v765
    %v771 = vadd.f32 %v769, %v770
    %v772 = vtanh.pop %v771
    %v773 = vmul.f32 %v764, %v772
    %v774 = vpack.c.bf16 %v773, %v773
    %v776 = vrot.slane %v774, 3
    %778 = vmatpush.bf16.msra.mxu0 %v208
    %779 = vmatpush.bf16.msra.mxu0 %v204
    %780 = vmatpush.bf16.msra.mxu0 %v200
    %781 = vmatpush.bf16.msra.mxu0 %v196
    %782 = vmatpush.bf16.msra.mxu0 %v192
    %783 = vmatpush.bf16.msra.mxu0 %v188
    %784 = vmatpush.bf16.msra.mxu0 %v184
    %785 = vmatpush.bf16.msra.mxu0 %v180
    %786 = vmatmul.bf16.gmra.mxu0 %v776
    %v787 = vpop.f32.mrf.mxu0
    %v788 = vadd.f32 0.0, %v787
    %v789 = vpop.f32.mrf.mxu0
    %790 = vdwg.mxu0
    %791 = vmatpush.bf16.msra.mxu0 %v209
    %792 = vmatpush.bf16.msra.mxu0 %v205
    %793 = vmatpush.bf16.msra.mxu0 %v201
    %794 = vmatpush.bf16.msra.mxu0 %v197
    %795 = vmatpush.bf16.msra.mxu0 %v193
    %796 = vmatpush.bf16.msra.mxu0 %v189
    %797 = vmatpush.bf16.msra.mxu0 %v185
    %798 = vmatpush.bf16.msra.mxu0 %v181
    %799 = vmatmul.bf16.gmra.mxu0 %v776
    %v800 = vpop.f32.mrf.mxu0
    %v801 = vadd.f32 0.0, %v800
    %v802 = vpop.f32.mrf.mxu0
    %803 = vdwg.mxu0
    %804 = vmatpush.bf16.msra.mxu0 %v210
    %805 = vmatpush.bf16.msra.mxu0 %v206
    %806 = vmatpush.bf16.msra.mxu0 %v202
    %807 = vmatpush.bf16.msra.mxu0 %v198
    %808 = vmatpush.bf16.msra.mxu0 %v194
    %809 = vmatpush.bf16.msra.mxu0 %v190
    %810 = vmatpush.bf16.msra.mxu0 %v186
    %811 = vmatpush.bf16.msra.mxu0 %v182
    %812 = vmatmul.bf16.gmra.mxu0 %v776
    %v813 = vpop.f32.mrf.mxu0
    %v814 = vadd.f32 0.0, %v813
    %v815 = vpop.f32.mrf.mxu0
    %816 = vdwg.mxu0
    %817 = vmatpush.bf16.msra.mxu0 %v211
    %818 = vmatpush.bf16.msra.mxu0 %v207
    %819 = vmatpush.bf16.msra.mxu0 %v203
    %820 = vmatpush.bf16.msra.mxu0 %v199
    %821 = vmatpush.bf16.msra.mxu0 %v195
    %822 = vmatpush.bf16.msra.mxu0 %v191
    %823 = vmatpush.bf16.msra.mxu0 %v187
    %824 = vmatpush.bf16.msra.mxu0 %v183
    %825 = vmatmul.bf16.gmra.mxu0 %v776
    %v826 = vpop.f32.mrf.mxu0
    %v827 = vadd.f32 0.0, %v826
    %v828 = vpop.f32.mrf.mxu0
    %829 = vdwg.mxu0
    %v830 = vadd.f32 %v77, %v788
    %v831 = vadd.f32 %v78, %v801
    %v832 = vadd.f32 %v79, %v814
    %v833 = vadd.f32 %v80, %v827
    %v834 = vxor.u32 %v830, 2147483648
    %v835 = vxor.u32 %v831, 2147483648
    %v836 = vxor.u32 %v832, 2147483648
    %v837 = vmul.f32 %v834, 1.442695
    %v838 = vpow.pop %v837
    %v839 = vmul.f32 %v835, 1.442695
    %v840 = vpow.pop %v839
    %v841 = vmul.f32 %v836, 1.442695
    %v842 = vpow.pop %v841
    %v843 = vadd.f32 %v838, 1.0
    %v844 = vadd.f32 %v840, 1.0
    %v845 = vadd.f32 %v842, 1.0
    %v846 = vrcp.pop %v843
    %v847 = vmul.f32 %v843, %v846
    %v848 = vsub.f32 1.0, %v847
    %v849 = vmul.f32 %v846, %v848
    %v850 = vadd.f32 %v846, %v849
    %vm851 = vweird.f32 %v843
    %vm852 = vweird.f32 %v846
    %vm853 = vmor %vm851, %vm852
    %v854 = vsel %vm853, %v846, %v850
    %v855 = vand.u32 2147483647, %v843
    %vm856 = vcmp.eq.f32.partialorder %v855, 8.507059e+37
    %v857 = vand.u32 %v843, 2147483648
    %v858 = vor.u32 1.1754944e-38, %v857
    %v859 = vsel %vm856, %v858, %v854
    %v860 = vmul.f32 1.0, %v859
    %v861 = vrcp.pop %v844
    %v862 = vmul.f32 %v844, %v861
    %v863 = vsub.f32 1.0, %v862
    %v864 = vmul.f32 %v861, %v863
    %v865 = vadd.f32 %v861, %v864
    %vm866 = vweird.f32 %v844
    %vm867 = vweird.f32 %v861
    %vm868 = vmor %vm866, %vm867
    %v869 = vsel %vm868, %v861, %v865
    %v870 = vand.u32 2147483647, %v844
    %vm871 = vcmp.eq.f32.partialorder %v870, 8.507059e+37
    %v872 = vand.u32 %v844, 2147483648
    %v873 = vor.u32 1.1754944e-38, %v872
    %v874 = vsel %vm871, %v873, %v869
    %v875 = vmul.f32 1.0, %v874
    %v876 = vrcp.pop %v845
    %v877 = vmul.f32 %v845, %v876
    %v878 = vsub.f32 1.0, %v877
    %v879 = vmul.f32 %v876, %v878
    %v880 = vadd.f32 %v876, %v879
    %vm881 = vweird.f32 %v845
    %vm882 = vweird.f32 %v876
    %vm883 = vmor %vm881, %vm882
    %v884 = vsel %vm883, %v876, %v880
    %v885 = vand.u32 2147483647, %v845
    %vm886 = vcmp.eq.f32.partialorder %v885, 8.507059e+37
    %v887 = vand.u32 %v845, 2147483648
    %v888 = vor.u32 1.1754944e-38, %v887
    %v889 = vsel %vm886, %v888, %v884
    %v890 = vmul.f32 1.0, %v889
    %v891 = vtanh.pop %v833
    %v893 = vrot.slane %v771, 6
    %v895 = vmul.f32 %v875, %v893
    %v896 = vmul.f32 %v860, %v891
    %v897 = vadd.f32 %v895, %v896
    %v898 = vtanh.pop %v897
    %v899 = vmul.f32 %v890, %v898
    %v900 = vpack.c.bf16 %v899, %v899
    %901 = vmatpush.bf16.msra.mxu0 %v208
    %902 = vmatpush.bf16.msra.mxu0 %v204
    %903 = vmatpush.bf16.msra.mxu0 %v200
    %904 = vmatpush.bf16.msra.mxu0 %v196
    %905 = vmatpush.bf16.msra.mxu0 %v192
    %906 = vmatpush.bf16.msra.mxu0 %v188
    %907 = vmatpush.bf16.msra.mxu0 %v184
    %908 = vmatpush.bf16.msra.mxu0 %v180
    %909 = vmatmul.bf16.gmra.mxu0 %v900
    %v910 = vpop.f32.mrf.mxu0
    %v911 = vadd.f32 0.0, %v910
    %v912 = vpop.f32.mrf.mxu0
    %913 = vdwg.mxu0
    %914 = vmatpush.bf16.msra.mxu0 %v209
    %915 = vmatpush.bf16.msra.mxu0 %v205
    %916 = vmatpush.bf16.msra.mxu0 %v201
    %917 = vmatpush.bf16.msra.mxu0 %v197
    %918 = vmatpush.bf16.msra.mxu0 %v193
    %919 = vmatpush.bf16.msra.mxu0 %v189
    %920 = vmatpush.bf16.msra.mxu0 %v185
    %921 = vmatpush.bf16.msra.mxu0 %v181
    %922 = vmatmul.bf16.gmra.mxu0 %v900
    %v923 = vpop.f32.mrf.mxu0
    %v924 = vadd.f32 0.0, %v923
    %v925 = vpop.f32.mrf.mxu0
    %926 = vdwg.mxu0
    %927 = vmatpush.bf16.msra.mxu0 %v210
    %928 = vmatpush.bf16.msra.mxu0 %v206
    %929 = vmatpush.bf16.msra.mxu0 %v202
    %930 = vmatpush.bf16.msra.mxu0 %v198
    %931 = vmatpush.bf16.msra.mxu0 %v194
    %932 = vmatpush.bf16.msra.mxu0 %v190
    %933 = vmatpush.bf16.msra.mxu0 %v186
    %934 = vmatpush.bf16.msra.mxu0 %v182
    %935 = vmatmul.bf16.gmra.mxu0 %v900
    %v936 = vpop.f32.mrf.mxu0
    %v937 = vadd.f32 0.0, %v936
    %v938 = vpop.f32.mrf.mxu0
    %939 = vdwg.mxu0
    %940 = vmatpush.bf16.msra.mxu0 %v211
    %941 = vmatpush.bf16.msra.mxu0 %v207
    %942 = vmatpush.bf16.msra.mxu0 %v203
    %943 = vmatpush.bf16.msra.mxu0 %v199
    %944 = vmatpush.bf16.msra.mxu0 %v195
    %945 = vmatpush.bf16.msra.mxu0 %v191
    %946 = vmatpush.bf16.msra.mxu0 %v187
    %947 = vmatpush.bf16.msra.mxu0 %v183
    %948 = vmatmul.bf16.gmra.mxu0 %v900
    %v949 = vpop.f32.mrf.mxu0
    %v950 = vadd.f32 0.0, %v949
    %v951 = vpop.f32.mrf.mxu0
    %952 = vdwg.mxu0
    %v957 = vrot.slane %v911, 6
    %v958 = vrot.slane %v924, 6
    %v959 = vrot.slane %v937, 6
    %v960 = vrot.slane %v950, 6
    %v965 = vadd.f32 %v77, %v957
    %v966 = vadd.f32 %v78, %v958
    %v967 = vadd.f32 %v79, %v959
    %v968 = vadd.f32 %v80, %v960
    %v969 = vxor.u32 %v965, 2147483648
    %v970 = vxor.u32 %v966, 2147483648
    %v971 = vxor.u32 %v967, 2147483648
    %v972 = vmul.f32 %v969, 1.442695
    %v973 = vpow.pop %v972
    %v974 = vmul.f32 %v970, 1.442695
    %v975 = vpow.pop %v974
    %v976 = vmul.f32 %v971, 1.442695
    %v977 = vpow.pop %v976
    %v978 = vadd.f32 %v973, 1.0
    %v979 = vadd.f32 %v975, 1.0
    %v980 = vadd.f32 %v977, 1.0
    %v981 = vrcp.pop %v978
    %v982 = vmul.f32 %v978, %v981
    %v983 = vsub.f32 1.0, %v982
    %v984 = vmul.f32 %v981, %v983
    %v985 = vadd.f32 %v981, %v984
    %vm986 = vweird.f32 %v978
    %vm987 = vweird.f32 %v981
    %vm988 = vmor %vm986, %vm987
    %v989 = vsel %vm988, %v981, %v985
    %v990 = vand.u32 2147483647, %v978
    %vm991 = vcmp.eq.f32.partialorder %v990, 8.507059e+37
    %v992 = vand.u32 %v978, 2147483648
    %v993 = vor.u32 1.1754944e-38, %v992
    %v994 = vsel %vm991, %v993, %v989
    %v995 = vmul.f32 1.0, %v994
    %v996 = vrcp.pop %v979
    %v997 = vmul.f32 %v979, %v996
    %v998 = vsub.f32 1.0, %v997
    %v999 = vmul.f32 %v996, %v998
    %v1000 = vadd.f32 %v996, %v999
    %vm1001 = vweird.f32 %v979
    %vm1002 = vweird.f32 %v996
    %vm1003 = vmor %vm1001, %vm1002
    %v1004 = vsel %vm1003, %v996, %v1000
    %v1005 = vand.u32 2147483647, %v979
    %vm1006 = vcmp.eq.f32.partialorder %v1005, 8.507059e+37
    %v1007 = vand.u32 %v979, 2147483648
    %v1008 = vor.u32 1.1754944e-38, %v1007
    %v1009 = vsel %vm1006, %v1008, %v1004
    %v1010 = vmul.f32 1.0, %v1009
    %v1011 = vrcp.pop %v980
    %v1012 = vmul.f32 %v980, %v1011
    %v1013 = vsub.f32 1.0, %v1012
    %v1014 = vmul.f32 %v1011, %v1013
    %v1015 = vadd.f32 %v1011, %v1014
    %vm1016 = vweird.f32 %v980
    %vm1017 = vweird.f32 %v1011
    %vm1018 = vmor %vm1016, %vm1017
    %v1019 = vsel %vm1018, %v1011, %v1015
    %v1020 = vand.u32 2147483647, %v980
    %vm1021 = vcmp.eq.f32.partialorder %v1020, 8.507059e+37
    %v1022 = vand.u32 %v980, 2147483648
    %v1023 = vor.u32 1.1754944e-38, %v1022
    %v1024 = vsel %vm1021, %v1023, %v1019
    %v1025 = vmul.f32 1.0, %v1024
    %v1026 = vtanh.pop %v968
    %v1028 = vrot.slane %v897, 6
    %v1030 = vmul.f32 %v1010, %v1028
    %v1031 = vmul.f32 %v995, %v1026
    %v1032 = vadd.f32 %v1030, %v1031
    %v1033 = vtanh.pop %v1032
    %v1034 = vmul.f32 %v1025, %v1033
    %v1035 = vpack.c.bf16 %v1034, %v1034
    %v1037 = vrot.slane %v1035, 1
    %1039 = vmatpush.bf16.msra.mxu0 %v208
    %1040 = vmatpush.bf16.msra.mxu0 %v204
    %1041 = vmatpush.bf16.msra.mxu0 %v200
    %1042 = vmatpush.bf16.msra.mxu0 %v196
    %1043 = vmatpush.bf16.msra.mxu0 %v192
    %1044 = vmatpush.bf16.msra.mxu0 %v188
    %1045 = vmatpush.bf16.msra.mxu0 %v184
    %1046 = vmatpush.bf16.msra.mxu0 %v180
    %1047 = vmatmul.bf16.gmra.mxu0 %v1037
    %v1048 = vpop.f32.mrf.mxu0
    %v1049 = vadd.f32 0.0, %v1048
    %v1050 = vpop.f32.mrf.mxu0
    %1051 = vdwg.mxu0
    %1052 = vmatpush.bf16.msra.mxu0 %v209
    %1053 = vmatpush.bf16.msra.mxu0 %v205
    %1054 = vmatpush.bf16.msra.mxu0 %v201
    %1055 = vmatpush.bf16.msra.mxu0 %v197
    %1056 = vmatpush.bf16.msra.mxu0 %v193
    %1057 = vmatpush.bf16.msra.mxu0 %v189
    %1058 = vmatpush.bf16.msra.mxu0 %v185
    %1059 = vmatpush.bf16.msra.mxu0 %v181
    %1060 = vmatmul.bf16.gmra.mxu0 %v1037
    %v1061 = vpop.f32.mrf.mxu0
    %v1062 = vadd.f32 0.0, %v1061
    %v1063 = vpop.f32.mrf.mxu0
    %1064 = vdwg.mxu0
    %1065 = vmatpush.bf16.msra.mxu0 %v210
    %1066 = vmatpush.bf16.msra.mxu0 %v206
    %1067 = vmatpush.bf16.msra.mxu0 %v202
    %1068 = vmatpush.bf16.msra.mxu0 %v198
    %1069 = vmatpush.bf16.msra.mxu0 %v194
    %1070 = vmatpush.bf16.msra.mxu0 %v190
    %1071 = vmatpush.bf16.msra.mxu0 %v186
    %1072 = vmatpush.bf16.msra.mxu0 %v182
    %1073 = vmatmul.bf16.gmra.mxu0 %v1037
    %v1074 = vpop.f32.mrf.mxu0
    %v1075 = vadd.f32 0.0, %v1074
    %v1076 = vpop.f32.mrf.mxu0
    %1077 = vdwg.mxu0
    %1078 = vmatpush.bf16.msra.mxu0 %v211
    %1079 = vmatpush.bf16.msra.mxu0 %v207
    %1080 = vmatpush.bf16.msra.mxu0 %v203
    %1081 = vmatpush.bf16.msra.mxu0 %v199
    %1082 = vmatpush.bf16.msra.mxu0 %v195
    %1083 = vmatpush.bf16.msra.mxu0 %v191
    %1084 = vmatpush.bf16.msra.mxu0 %v187
    %1085 = vmatpush.bf16.msra.mxu0 %v183
    %1086 = vmatmul.bf16.gmra.mxu0 %v1037
    %v1087 = vpop.f32.mrf.mxu0
    %v1088 = vadd.f32 0.0, %v1087
    %v1089 = vpop.f32.mrf.mxu0
    %1090 = vdwg.mxu0
    %v1095 = vrot.slane %v1049, 4
    %v1096 = vrot.slane %v1062, 4
    %v1097 = vrot.slane %v1075, 4
    %v1098 = vrot.slane %v1088, 4
    %v1103 = vadd.f32 %v77, %v1095
    %v1104 = vadd.f32 %v78, %v1096
    %v1105 = vadd.f32 %v79, %v1097
    %v1106 = vadd.f32 %v80, %v1098
    %v1107 = vxor.u32 %v1103, 2147483648
    %v1108 = vxor.u32 %v1104, 2147483648
    %v1109 = vxor.u32 %v1105, 2147483648
    %v1110 = vmul.f32 %v1107, 1.442695
    %v1111 = vpow.pop %v1110
    %v1112 = vmul.f32 %v1108, 1.442695
    %v1113 = vpow.pop %v1112
    %v1114 = vmul.f32 %v1109, 1.442695
    %v1115 = vpow.pop %v1114
    %v1116 = vadd.f32 %v1111, 1.0
    %v1117 = vadd.f32 %v1113, 1.0
    %v1118 = vadd.f32 %v1115, 1.0
    %v1119 = vrcp.pop %v1116
    %v1120 = vmul.f32 %v1116, %v1119
    %v1121 = vsub.f32 1.0, %v1120
    %v1122 = vmul.f32 %v1119, %v1121
    %v1123 = vadd.f32 %v1119, %v1122
    %vm1124 = vweird.f32 %v1116
    %vm1125 = vweird.f32 %v1119
    %vm1126 = vmor %vm1124, %vm1125
    %v1127 = vsel %vm1126, %v1119, %v1123
    %v1128 = vand.u32 2147483647, %v1116
    %vm1129 = vcmp.eq.f32.partialorder %v1128, 8.507059e+37
    %v1130 = vand.u32 %v1116, 2147483648
    %v1131 = vor.u32 1.1754944e-38, %v1130
    %v1132 = vsel %vm1129, %v1131, %v1127
    %v1133 = vmul.f32 1.0, %v1132
    %v1134 = vrcp.pop %v1117
    %v1135 = vmul.f32 %v1117, %v1134
    %v1136 = vsub.f32 1.0, %v1135
    %v1137 = vmul.f32 %v1134, %v1136
    %v1138 = vadd.f32 %v1134, %v1137
    %vm1139 = vweird.f32 %v1117
    %vm1140 = vweird.f32 %v1134
    %vm1141 = vmor %vm1139, %vm1140
    %v1142 = vsel %vm1141, %v1134, %v1138
    %v1143 = vand.u32 2147483647, %v1117
    %vm1144 = vcmp.eq.f32.partialorder %v1143, 8.507059e+37
    %v1145 = vand.u32 %v1117, 2147483648
    %v1146 = vor.u32 1.1754944e-38, %v1145
    %v1147 = vsel %vm1144, %v1146, %v1142
    %v1148 = vmul.f32 1.0, %v1147
    %v1149 = vrcp.pop %v1118
    %v1150 = vmul.f32 %v1118, %v1149
    %v1151 = vsub.f32 1.0, %v1150
    %v1152 = vmul.f32 %v1149, %v1151
    %v1153 = vadd.f32 %v1149, %v1152
    %vm1154 = vweird.f32 %v1118
    %vm1155 = vweird.f32 %v1149
    %vm1156 = vmor %vm1154, %vm1155
    %v1157 = vsel %vm1156, %v1149, %v1153
    %v1158 = vand.u32 2147483647, %v1118
    %vm1159 = vcmp.eq.f32.partialorder %v1158, 8.507059e+37
    %v1160 = vand.u32 %v1118, 2147483648
    %v1161 = vor.u32 1.1754944e-38, %v1160
    %v1162 = vsel %vm1159, %v1161, %v1157
    %v1163 = vmul.f32 1.0, %v1162
    %v1164 = vtanh.pop %v1106
    %v1166 = vrot.slane %v1032, 6
    %v1168 = vmul.f32 %v1148, %v1166
    %v1169 = vmul.f32 %v1133, %v1164
    %v1170 = vadd.f32 %v1168, %v1169
    %v1171 = vtanh.pop %v1170
    %v1172 = vmul.f32 %v1163, %v1171
    %v1173 = vpack.c.bf16 %v1172, %v1172
    %v1175 = vrot.slane %v1173, 2
    %1177 = vmatpush.bf16.msra.mxu0 %v208
    %1178 = vmatpush.bf16.msra.mxu0 %v204
    %1179 = vmatpush.bf16.msra.mxu0 %v200
    %1180 = vmatpush.bf16.msra.mxu0 %v196
    %1181 = vmatpush.bf16.msra.mxu0 %v192
    %1182 = vmatpush.bf16.msra.mxu0 %v188
    %1183 = vmatpush.bf16.msra.mxu0 %v184
    %1184 = vmatpush.bf16.msra.mxu0 %v180
    %1185 = vmatmul.bf16.gmra.mxu0 %v1175
    %v1186 = vpop.f32.mrf.mxu0
    %v1187 = vadd.f32 0.0, %v1186
    %v1188 = vpop.f32.mrf.mxu0
    %1189 = vdwg.mxu0
    %1190 = vmatpush.bf16.msra.mxu0 %v209
    %1191 = vmatpush.bf16.msra.mxu0 %v205
    %1192 = vmatpush.bf16.msra.mxu0 %v201
    %1193 = vmatpush.bf16.msra.mxu0 %v197
    %1194 = vmatpush.bf16.msra.mxu0 %v193
    %1195 = vmatpush.bf16.msra.mxu0 %v189
    %1196 = vmatpush.bf16.msra.mxu0 %v185
    %1197 = vmatpush.bf16.msra.mxu0 %v181
    %1198 = vmatmul.bf16.gmra.mxu0 %v1175
    %v1199 = vpop.f32.mrf.mxu0
    %v1200 = vadd.f32 0.0, %v1199
    %v1201 = vpop.f32.mrf.mxu0
    %1202 = vdwg.mxu0
    %1203 = vmatpush.bf16.msra.mxu0 %v210
    %1204 = vmatpush.bf16.msra.mxu0 %v206
    %1205 = vmatpush.bf16.msra.mxu0 %v202
    %1206 = vmatpush.bf16.msra.mxu0 %v198
    %1207 = vmatpush.bf16.msra.mxu0 %v194
    %1208 = vmatpush.bf16.msra.mxu0 %v190
    %1209 = vmatpush.bf16.msra.mxu0 %v186
    %1210 = vmatpush.bf16.msra.mxu0 %v182
    %1211 = vmatmul.bf16.gmra.mxu0 %v1175
    %v1212 = vpop.f32.mrf.mxu0
    %v1213 = vadd.f32 0.0, %v1212
    %v1214 = vpop.f32.mrf.mxu0
    %1215 = vdwg.mxu0
    %1216 = vmatpush.bf16.msra.mxu0 %v211
    %1217 = vmatpush.bf16.msra.mxu0 %v207
    %1218 = vmatpush.bf16.msra.mxu0 %v203
    %1219 = vmatpush.bf16.msra.mxu0 %v199
    %1220 = vmatpush.bf16.msra.mxu0 %v195
    %1221 = vmatpush.bf16.msra.mxu0 %v191
    %1222 = vmatpush.bf16.msra.mxu0 %v187
    %1223 = vmatpush.bf16.msra.mxu0 %v183
    %1224 = vmatmul.bf16.gmra.mxu0 %v1175
    %v1225 = vpop.f32.mrf.mxu0
    %v1226 = vadd.f32 0.0, %v1225
    %v1227 = vpop.f32.mrf.mxu0
    %1228 = vdwg.mxu0
    %v1233 = vrot.slane %v1187, 2
    %v1234 = vrot.slane %v1200, 2
    %v1235 = vrot.slane %v1213, 2
    %v1236 = vrot.slane %v1226, 2
    %v1241 = vadd.f32 %v77, %v1233
    %v1242 = vadd.f32 %v78, %v1234
    %v1243 = vadd.f32 %v79, %v1235
    %v1244 = vadd.f32 %v80, %v1236
    %v1245 = vxor.u32 %v1241, 2147483648
    %v1246 = vxor.u32 %v1242, 2147483648
    %v1247 = vxor.u32 %v1243, 2147483648
    %v1248 = vmul.f32 %v1245, 1.442695
    %v1249 = vpow.pop %v1248
    %v1250 = vmul.f32 %v1246, 1.442695
    %v1251 = vpow.pop %v1250
    %v1252 = vmul.f32 %v1247, 1.442695
    %v1253 = vpow.pop %v1252
    %v1254 = vadd.f32 %v1249, 1.0
    %v1255 = vadd.f32 %v1251, 1.0
    %v1256 = vadd.f32 %v1253, 1.0
    %v1257 = vrcp.pop %v1254
    %v1258 = vmul.f32 %v1254, %v1257
    %v1259 = vsub.f32 1.0, %v1258
    %v1260 = vmul.f32 %v1257, %v1259
    %v1261 = vadd.f32 %v1257, %v1260
    %vm1262 = vweird.f32 %v1254
    %vm1263 = vweird.f32 %v1257
    %vm1264 = vmor %vm1262, %vm1263
    %v1265 = vsel %vm1264, %v1257, %v1261
    %v1266 = vand.u32 2147483647, %v1254
    %vm1267 = vcmp.eq.f32.partialorder %v1266, 8.507059e+37
    %v1268 = vand.u32 %v1254, 2147483648
    %v1269 = vor.u32 1.1754944e-38, %v1268
    %v1270 = vsel %vm1267, %v1269, %v1265
    %v1271 = vmul.f32 1.0, %v1270
    %v1272 = vrcp.pop %v1255
    %v1273 = vmul.f32 %v1255, %v1272
    %v1274 = vsub.f32 1.0, %v1273
    %v1275 = vmul.f32 %v1272, %v1274
    %v1276 = vadd.f32 %v1272, %v1275
    %vm1277 = vweird.f32 %v1255
    %vm1278 = vweird.f32 %v1272
    %vm1279 = vmor %vm1277, %vm1278
    %v1280 = vsel %vm1279, %v1272, %v1276
    %v1281 = vand.u32 2147483647, %v1255
    %vm1282 = vcmp.eq.f32.partialorder %v1281, 8.507059e+37
    %v1283 = vand.u32 %v1255, 2147483648
    %v1284 = vor.u32 1.1754944e-38, %v1283
    %v1285 = vsel %vm1282, %v1284, %v1280
    %v1286 = vmul.f32 1.0, %v1285
    %v1287 = vrcp.pop %v1256
    %v1288 = vmul.f32 %v1256, %v1287
    %v1289 = vsub.f32 1.0, %v1288
    %v1290 = vmul.f32 %v1287, %v1289
    %v1291 = vadd.f32 %v1287, %v1290
    %vm1292 = vweird.f32 %v1256
    %vm1293 = vweird.f32 %v1287
    %vm1294 = vmor %vm1292, %vm1293
    %v1295 = vsel %vm1294, %v1287, %v1291
    %v1296 = vand.u32 2147483647, %v1256
    %vm1297 = vcmp.eq.f32.partialorder %v1296, 8.507059e+37
    %v1298 = vand.u32 %v1256, 2147483648
    %v1299 = vor.u32 1.1754944e-38, %v1298
    %v1300 = vsel %vm1297, %v1299, %v1295
    %v1301 = vmul.f32 1.0, %v1300
    %v1302 = vtanh.pop %v1244
    %v1304 = vrot.slane %v1170, 6
    %v1306 = vmul.f32 %v1286, %v1304
    %v1307 = vmul.f32 %v1271, %v1302
    %v1308 = vadd.f32 %v1306, %v1307
    %v1309 = vtanh.pop %v1308
    %v1310 = vmul.f32 %v1301, %v1309
    %v1311 = vlaneseq
    %v1312 = vand.u32 %v1311, 127
    %vm1313 = vcmp.lt.s32.totalorder %v1312, 32
    %v1315 = vrot.slane %v1310, 6
    %v1317 = vsel %vm1313, %v362, %v1315
    %v1319 = vrot.slane %v1172, 2
    %v1321 = vsel %vm1313, %v497, %v1319
    %v1323 = vrot.slane %v1034, 6
    %v1325 = vsel %vm1313, %v635, %v1323
    %v1327 = vrot.slane %v899, 2
    %v1329 = vsel %vm1313, %v773, %v1327
    %v1331 = vrot.slane %v773, 6
    %v1333 = vsel %vm1313, %v899, %v1331
    %v1335 = vrot.slane %v635, 2
    %v1337 = vsel %vm1313, %v1034, %v1335
    %v1339 = vrot.slane %v497, 6
    %v1341 = vsel %vm1313, %v1172, %v1339
    %v1343 = vrot.slane %v362, 2
    %v1345 = vsel %vm1313, %v1310, %v1343
    %vm1346 = vcmask 1041408
    %v1347 = vsel %vm1346, %v1317, %v1321
    %vm1348 = vcmask 1043456
    %v1349 = vsel %vm1348, %v1347, %v1325
    %vm1350 = vcmask 1045504
    %v1351 = vsel %vm1350, %v1349, %v1329
    %v1352 = vsel %vm1346, %v1333, %v1337
    %v1353 = vsel %vm1348, %v1352, %v1341
    %v1354 = vsel %vm1350, %v1353, %v1345
    %1355 = vmatpush.msra.mxu0 %v35
    %1356 = vmatpush.msra.mxu0 %v34
    %1357 = vmatpush.msra.mxu0 %v33
    %1358 = vmatpush.msra.mxu0 %v32
    %1359 = vmatpush.msra.mxu0 %v31
    %1360 = vmatpush.msra.mxu0 %v30
    %1361 = vmatpush.msra.mxu0 %v29
    %1362 = vmatpush.msra.mxu0 %v28
    %1363 = vmatpush.msra.mxu0 %v27
    %1364 = vmatpush.msra.mxu0 %v26
    %1365 = vmatpush.msra.mxu0 %v25
    %1366 = vmatpush.msra.mxu0 %v24
    %1367 = vmatpush.msra.mxu0 %v23
    %1368 = vmatpush.msra.mxu0 %v22
    %1369 = vmatpush.msra.mxu0 %v21
    %1370 = vmatpush.msra.mxu0 %v20
    %1371 = vmatmul.f32.gmra.mxu0 %v1351
    %v1372 = vpop.f32.mrf.mxu0
    %v1373 = vadd.f32 0.0, %v1372
    %1374 = vmatmul.f32.gmra.mxu0 %v1354
    %v1375 = vpop.f32.mrf.mxu0
    %v1376 = vadd.f32 0.0, %v1375
    %1377 = vdwg.mxu0
    %v1378 = vperm.slane %v36, 0
    %v1379 = vadd.f32 %v1373, %v1378
    %v1380 = vadd.f32 %v1376, %v1378
    %v1381 = vlaneseq
    %v1382 = vshrl.u32 %v1381, 7
    %v1383 = vadd.s32 %v1382, 8
    %vm1384 = vcmp.eq.s32.totalorder %v1382, %v1312
    %vm1385 = vcmp.eq.s32.totalorder %v1383, %v1312
    %v1386 = vsel %vm1384, 0.0, -1e+09
    %v1387 = vsel %vm1385, 0.0, -1e+09
    %v1388 = vperm.slane %v37, 0
    %v1389 = vadd.f32 %v1388, %v1379
    %1391 = vst [vmem:[#allocation1] sm:$0xff] %v81
    %s1392 = scalar_lea.vmem [#allocation1], 2
    %v1393 = vld [vmem:[%s1392] ss:$9 sm:$0xff]
    %s1394 = scalar_lea.vmem [#allocation1], 3
    %v1395 = vld [vmem:[%s1394] ss:$9 sm:$0xff]
    %v1398 = vperm.slane %v1393, 0
    %v1399 = vperm.slane %v1395, 0
    %1400 = vset.pattern.permute.xlu0 0
    %1401 = vperm.xlu0 %1400, %v1398
    %v1402 = vpop.permute.xlu0 %1401
    %1404 = vset.pattern.permute.xlu0 0
    %1405 = vperm.xlu0 %1404, %v1399
    %v1406 = vpop.permute.xlu0 %1405
    %v1408 = vmul.f32 %v1402, %v39
    %v1409 = vmul.f32 %v1402, %v40
    %v1410 = vmul.f32 %v1406, %v39
    %v1411 = vmul.f32 %v1406, %v40
    %v1412 = vsub.f32 1.0, %v1393
    %v1413 = vsub.f32 1.0, %v1395
    %v1416 = vperm.slane %v1412, 0
    %v1417 = vperm.slane %v1413, 0
    %1418 = vset.pattern.permute.xlu0 0
    %1419 = vperm.xlu0 %1418, %v1416
    %v1420 = vpop.permute.xlu0 %1419
    %1422 = vset.pattern.permute.xlu0 0
    %1423 = vperm.xlu0 %1422, %v1417
    %v1424 = vpop.permute.xlu0 %1423
    %v1426 = vmul.f32 %v1420, %v1386
    %v1427 = vmul.f32 %v1420, %v1387
    %v1428 = vmul.f32 %v1424, %v1386
    %v1429 = vmul.f32 %v1424, %v1387
    %v1430 = vadd.f32 %v1408, %v1426
    %v1431 = vadd.f32 %v1409, %v1427
    %v1432 = vadd.f32 %v1410, %v1428
    %v1433 = vadd.f32 %v1411, %v1429
    %v1434 = vperm.slane %v1389, 0
    %v1435 = vlaneseq
    %v1436 = vshrl.u32 %v1435, 7
    %1438 = vset.pattern.permute.xlu0 %v1436
    %1439 = vperm.xlu0 %1438, %v1434
    %v1440 = vpop.permute.xlu0 %1439
    %v1441 = vlaneseq
    %v1442 = vshrl.u32 %v1441, 7
    %v1443 = vadd.s32 %v1442, 8
    %1444 = vset.pattern.permute.xlu0 %v1443
    %1445 = vperm.xlu0 %1444, %v1434
    %v1446 = vpop.permute.xlu0 %1445
    %v1447 = vperm.slane %v1389, 1
    %v1448 = vlaneseq
    %v1449 = vshrl.u32 %v1448, 7
    %1451 = vset.pattern.permute.xlu0 %v1449
    %1452 = vperm.xlu0 %1451, %v1447
    %v1453 = vpop.permute.xlu0 %1452
    %v1454 = vlaneseq
    %v1455 = vshrl.u32 %v1454, 7
    %v1456 = vadd.s32 %v1455, 8
    %1457 = vset.pattern.permute.xlu0 %v1456
    %1458 = vperm.xlu0 %1457, %v1447
    %v1459 = vpop.permute.xlu0 %1458
    %v1460 = vadd.f32 %v1440, %v1430
    %v1461 = vadd.f32 %v1446, %v1431
    %v1462 = vadd.f32 %v1453, %v1432
    %v1463 = vadd.f32 %v1459, %v1433
    %vm1464 = vcmask 121856
    %v1465 = vsel %vm1464, %v1460, -inf
    %vm1466 = vcmask 120832
    %v1467 = vsel %vm1466, %v1461, -inf
    %v1468 = vmax.f32 %v1465, %v1467
    %v1469 = vrot.slane %v1468, 4
    %v1470 = vmax.f32 %v1468, %v1469
    %v1471 = vrot.slane %v1470, 2
    %v1472 = vmax.f32 %v1470, %v1471
    %v1473 = vrot.slane %v1472, 1
    %v1474 = vmax.f32 %v1472, %v1473
    %v1475 = vsel %vm1464, %v1462, -inf
    %v1476 = vsel %vm1466, %v1463, -inf
    %v1477 = vmax.f32 %v1475, %v1476
    %v1478 = vrot.slane %v1477, 4
    %v1479 = vmax.f32 %v1477, %v1478
    %v1480 = vrot.slane %v1479, 2
    %v1481 = vmax.f32 %v1479, %v1480
    %v1482 = vrot.slane %v1481, 1
    %v1483 = vmax.f32 %v1481, %v1482
    %vm1484 = vcmp.ge.f32.partialorder %v1460, %v1474
    %vm1485 = vcmp.ge.f32.partialorder %v1461, %v1474
    %vm1486 = vcmp.ge.f32.partialorder %v1462, %v1483
    %vm1487 = vcmp.ge.f32.partialorder %v1463, %v1483
    %v1488 = vsel %vm1484, %v1382, 15
    %v1489 = vsel %vm1485, %v1383, 15
    %v1490 = vsel %vm1486, %v1382, 15
    %v1491 = vsel %vm1487, %v1383, 15
    %v1492 = vsel %vm1464, %v1488, 2147483647
    %v1493 = vsel %vm1466, %v1489, 2147483647
    %vm1494 = vcmp.lt.s32.totalorder %v1492, %v1493
    %v1495 = vsel %vm1494, %v1492, %v1493
    %v1496 = vrot.slane %v1495, 4
    %vm1497 = vcmp.lt.s32.totalorder %v1495, %v1496
    %v1498 = vsel %vm1497, %v1495, %v1496
    %v1499 = vrot.slane %v1498, 2
    %vm1500 = vcmp.lt.s32.totalorder %v1498, %v1499
    %v1501 = vsel %vm1500, %v1498, %v1499
    %v1502 = vrot.slane %v1501, 1
    %vm1503 = vcmp.lt.s32.totalorder %v1501, %v1502
    %v1504 = vsel %vm1503, %v1501, %v1502
    %v1505 = vsel %vm1464, %v1490, 2147483647
    %v1506 = vsel %vm1466, %v1491, 2147483647
    %vm1507 = vcmp.lt.s32.totalorder %v1505, %v1506
    %v1508 = vsel %vm1507, %v1505, %v1506
    %v1509 = vrot.slane %v1508, 4
    %vm1510 = vcmp.lt.s32.totalorder %v1508, %v1509
    %v1511 = vsel %vm1510, %v1508, %v1509
    %v1512 = vrot.slane %v1511, 2
    %vm1513 = vcmp.lt.s32.totalorder %v1511, %v1512
    %v1514 = vsel %vm1513, %v1511, %v1512
    %v1515 = vrot.slane %v1514, 1
    %vm1516 = vcmp.lt.s32.totalorder %v1514, %v1515
    %v1517 = vsel %vm1516, %v1514, %v1515
    %1518 = vset.pattern.permute.xlu0 0
    %1519 = vperm.xlu0 %1518, %v81
    %v1520 = vpop.permute.xlu0 %1519
    %v1522 = vmul.f32 %v1520, %v1379
    %v1524 = vrot.slane %v1522, 2
    %v1525 = vrot.slane %v1522, 3
    %v1528 = vadd.f32 %v1474, %v1524
    %v1529 = vadd.f32 %v1483, %v1525
    %1530 = vst [vmem:[#allocation1] sm:$0xff] %v81
    %s1531 = scalar_lea.vmem [#allocation1], 4
    %v1532 = vld [vmem:[%s1531] ss:$9 sm:$0xff]
    %s1533 = scalar_lea.vmem [#allocation1], 5
    %v1534 = vld [vmem:[%s1533] ss:$9 sm:$0xff]
    %v1537 = vperm.slane %v1532, 0
    %v1538 = vperm.slane %v1534, 0
    %1539 = vset.pattern.permute.xlu0 0
    %1540 = vperm.xlu0 %1539, %v1537
    %v1541 = vpop.permute.xlu0 %1540
    %1543 = vset.pattern.permute.xlu0 0
    %1544 = vperm.xlu0 %1543, %v1538
    %v1545 = vpop.permute.xlu0 %1544
    %v1547 = vmul.f32 %v1541, %v39
    %v1548 = vmul.f32 %v1541, %v40
    %v1549 = vmul.f32 %v1545, %v39
    %v1550 = vmul.f32 %v1545, %v40
    %v1551 = vsub.f32 1.0, %v1532
    %v1552 = vsub.f32 1.0, %v1534
    %v1555 = vperm.slane %v1551, 0
    %v1556 = vperm.slane %v1552, 0
    %1557 = vset.pattern.permute.xlu0 0
    %1558 = vperm.xlu0 %1557, %v1555
    %v1559 = vpop.permute.xlu0 %1558
    %1561 = vset.pattern.permute.xlu0 0
    %1562 = vperm.xlu0 %1561, %v1556
    %v1563 = vpop.permute.xlu0 %1562
    %v1565 = vmul.f32 %v1559, %v1386
    %v1566 = vmul.f32 %v1559, %v1387
    %v1567 = vmul.f32 %v1563, %v1386
    %v1568 = vmul.f32 %v1563, %v1387
    %v1569 = vadd.f32 %v1547, %v1565
    %v1570 = vadd.f32 %v1548, %v1566
    %v1571 = vadd.f32 %v1549, %v1567
    %v1572 = vadd.f32 %v1550, %v1568
    %v1573 = vperm.slane %v1528, 0
    %v1574 = vlaneseq
    %v1575 = vshrl.u32 %v1574, 7
    %1577 = vset.pattern.permute.xlu0 %v1575
    %1578 = vperm.xlu0 %1577, %v1573
    %v1579 = vpop.permute.xlu0 %1578
    %v1580 = vlaneseq
    %v1581 = vshrl.u32 %v1580, 7
    %v1582 = vadd.s32 %v1581, 8
    %1583 = vset.pattern.permute.xlu0 %v1582
    %1584 = vperm.xlu0 %1583, %v1573
    %v1585 = vpop.permute.xlu0 %1584
    %v1586 = vperm.slane %v1529, 0
    %v1587 = vlaneseq
    %v1588 = vshrl.u32 %v1587, 7
    %1590 = vset.pattern.permute.xlu0 %v1588
    %1591 = vperm.xlu0 %1590, %v1586
    %v1592 = vpop.permute.xlu0 %1591
    %v1593 = vlaneseq
    %v1594 = vshrl.u32 %v1593, 7
    %v1595 = vadd.s32 %v1594, 8
    %1596 = vset.pattern.permute.xlu0 %v1595
    %1597 = vperm.xlu0 %1596, %v1586
    %v1598 = vpop.permute.xlu0 %1597
    %v1599 = vadd.f32 %v1579, %v1569
    %v1600 = vadd.f32 %v1585, %v1570
    %v1601 = vadd.f32 %v1592, %v1571
    %v1602 = vadd.f32 %v1598, %v1572
    %v1603 = vsel %vm1464, %v1599, -inf
    %v1604 = vsel %vm1466, %v1600, -inf
    %v1605 = vmax.f32 %v1603, %v1604
    %v1606 = vrot.slane %v1605, 4
    %v1607 = vmax.f32 %v1605, %v1606
    %v1608 = vrot.slane %v1607, 2
    %v1609 = vmax.f32 %v1607, %v1608
    %v1610 = vrot.slane %v1609, 1
    %v1611 = vmax.f32 %v1609, %v1610
    %v1612 = vsel %vm1464, %v1601, -inf
    %v1613 = vsel %vm1466, %v1602, -inf
    %v1614 = vmax.f32 %v1612, %v1613
    %v1615 = vrot.slane %v1614, 4
    %v1616 = vmax.f32 %v1614, %v1615
    %v1617 = vrot.slane %v1616, 2
    %v1618 = vmax.f32 %v1616, %v1617
    %v1619 = vrot.slane %v1618, 1
    %v1620 = vmax.f32 %v1618, %v1619
    %vm1621 = vcmp.ge.f32.partialorder %v1599, %v1611
    %vm1622 = vcmp.ge.f32.partialorder %v1600, %v1611
    %vm1623 = vcmp.ge.f32.partialorder %v1601, %v1620
    %vm1624 = vcmp.ge.f32.partialorder %v1602, %v1620
    %v1625 = vsel %vm1621, %v1382, 15
    %v1626 = vsel %vm1622, %v1383, 15
    %v1627 = vsel %vm1623, %v1382, 15
    %v1628 = vsel %vm1624, %v1383, 15
    %v1629 = vsel %vm1464, %v1625, 2147483647
    %v1630 = vsel %vm1466, %v1626, 2147483647
    %vm1631 = vcmp.lt.s32.totalorder %v1629, %v1630
    %v1632 = vsel %vm1631, %v1629, %v1630
    %v1633 = vrot.slane %v1632, 4
    %vm1634 = vcmp.lt.s32.totalorder %v1632, %v1633
    %v1635 = vsel %vm1634, %v1632, %v1633
    %v1636 = vrot.slane %v1635, 2
    %vm1637 = vcmp.lt.s32.totalorder %v1635, %v1636
    %v1638 = vsel %vm1637, %v1635, %v1636
    %v1639 = vrot.slane %v1638, 1
    %vm1640 = vcmp.lt.s32.totalorder %v1638, %v1639
    %v1641 = vsel %vm1640, %v1638, %v1639
    %v1642 = vsel %vm1464, %v1627, 2147483647
    %v1643 = vsel %vm1466, %v1628, 2147483647
    %vm1644 = vcmp.lt.s32.totalorder %v1642, %v1643
    %v1645 = vsel %vm1644, %v1642, %v1643
    %v1646 = vrot.slane %v1645, 4
    %vm1647 = vcmp.lt.s32.totalorder %v1645, %v1646
    %v1648 = vsel %vm1647, %v1645, %v1646
    %v1649 = vrot.slane %v1648, 2
    %vm1650 = vcmp.lt.s32.totalorder %v1648, %v1649
    %v1651 = vsel %vm1650, %v1648, %v1649
    %v1652 = vrot.slane %v1651, 1
    %vm1653 = vcmp.lt.s32.totalorder %v1651, %v1652
    %v1654 = vsel %vm1653, %v1651, %v1652
    %v1655 = vrot.slane %v1522, 4
    %v1656 = vrot.slane %v1522, 5
    %v1659 = vadd.f32 %v1611, %v1655
    %v1660 = vadd.f32 %v1620, %v1656
    %1661 = vst [vmem:[#allocation1] sm:$0xff] %v81
    %s1662 = scalar_lea.vmem [#allocation1], 6
    %v1663 = vld [vmem:[%s1662] ss:$9 sm:$0xff]
    %s1664 = scalar_lea.vmem [#allocation1], 7
    %v1665 = vld [vmem:[%s1664] ss:$9 sm:$0xff]
    %v1668 = vperm.slane %v1663, 0
    %v1669 = vperm.slane %v1665, 0
    %1670 = vset.pattern.permute.xlu0 0
    %1671 = vperm.xlu0 %1670, %v1668
    %v1672 = vpop.permute.xlu0 %1671
    %1674 = vset.pattern.permute.xlu0 0
    %1675 = vperm.xlu0 %1674, %v1669
    %v1676 = vpop.permute.xlu0 %1675
    %v1678 = vmul.f32 %v1672, %v39
    %v1679 = vmul.f32 %v1672, %v40
    %v1680 = vmul.f32 %v1676, %v39
    %v1681 = vmul.f32 %v1676, %v40
    %v1682 = vsub.f32 1.0, %v1663
    %v1683 = vsub.f32 1.0, %v1665
    %v1686 = vperm.slane %v1682, 0
    %v1687 = vperm.slane %v1683, 0
    %1688 = vset.pattern.permute.xlu0 0
    %1689 = vperm.xlu0 %1688, %v1686
    %v1690 = vpop.permute.xlu0 %1689
    %1692 = vset.pattern.permute.xlu0 0
    %1693 = vperm.xlu0 %1692, %v1687
    %v1694 = vpop.permute.xlu0 %1693
    %v1696 = vmul.f32 %v1690, %v1386
    %v1697 = vmul.f32 %v1690, %v1387
    %v1698 = vmul.f32 %v1694, %v1386
    %v1699 = vmul.f32 %v1694, %v1387
    %v1700 = vadd.f32 %v1678, %v1696
    %v1701 = vadd.f32 %v1679, %v1697
    %v1702 = vadd.f32 %v1680, %v1698
    %v1703 = vadd.f32 %v1681, %v1699
    %v1704 = vperm.slane %v1659, 0
    %v1705 = vlaneseq
    %v1706 = vshrl.u32 %v1705, 7
    %1708 = vset.pattern.permute.xlu0 %v1706
    %1709 = vperm.xlu0 %1708, %v1704
    %v1710 = vpop.permute.xlu0 %1709
    %v1711 = vlaneseq
    %v1712 = vshrl.u32 %v1711, 7
    %v1713 = vadd.s32 %v1712, 8
    %1714 = vset.pattern.permute.xlu0 %v1713
    %1715 = vperm.xlu0 %1714, %v1704
    %v1716 = vpop.permute.xlu0 %1715
    %v1717 = vperm.slane %v1660, 0
    %v1718 = vlaneseq
    %v1719 = vshrl.u32 %v1718, 7
    %1721 = vset.pattern.permute.xlu0 %v1719
    %1722 = vperm.xlu0 %1721, %v1717
    %v1723 = vpop.permute.xlu0 %1722
    %v1724 = vlaneseq
    %v1725 = vshrl.u32 %v1724, 7
    %v1726 = vadd.s32 %v1725, 8
    %1727 = vset.pattern.permute.xlu0 %v1726
    %1728 = vperm.xlu0 %1727, %v1717
    %v1729 = vpop.permute.xlu0 %1728
    %v1730 = vadd.f32 %v1710, %v1700
    %v1731 = vadd.f32 %v1716, %v1701
    %v1732 = vadd.f32 %v1723, %v1702
    %v1733 = vadd.f32 %v1729, %v1703
    %v1734 = vsel %vm1464, %v1730, -inf
    %v1735 = vsel %vm1466, %v1731, -inf
    %v1736 = vmax.f32 %v1734, %v1735
    %v1737 = vrot.slane %v1736, 4
    %v1738 = vmax.f32 %v1736, %v1737
    %v1739 = vrot.slane %v1738, 2
    %v1740 = vmax.f32 %v1738, %v1739
    %v1741 = vrot.slane %v1740, 1
    %v1742 = vmax.f32 %v1740, %v1741
    %v1743 = vsel %vm1464, %v1732, -inf
    %v1744 = vsel %vm1466, %v1733, -inf
    %v1745 = vmax.f32 %v1743, %v1744
    %v1746 = vrot.slane %v1745, 4
    %v1747 = vmax.f32 %v1745, %v1746
    %v1748 = vrot.slane %v1747, 2
    %v1749 = vmax.f32 %v1747, %v1748
    %v1750 = vrot.slane %v1749, 1
    %v1751 = vmax.f32 %v1749, %v1750
    %vm1752 = vcmp.ge.f32.partialorder %v1730, %v1742
    %vm1753 = vcmp.ge.f32.partialorder %v1731, %v1742
    %vm1754 = vcmp.ge.f32.partialorder %v1732, %v1751
    %vm1755 = vcmp.ge.f32.partialorder %v1733, %v1751
    %v1756 = vsel %vm1752, %v1382, 15
    %v1757 = vsel %vm1753, %v1383, 15
    %v1758 = vsel %vm1754, %v1382, 15
    %v1759 = vsel %vm1755, %v1383, 15
    %v1760 = vsel %vm1464, %v1756, 2147483647
    %v1761 = vsel %vm1466, %v1757, 2147483647
    %vm1762 = vcmp.lt.s32.totalorder %v1760, %v1761
    %v1763 = vsel %vm1762, %v1760, %v1761
    %v1764 = vrot.slane %v1763, 4
    %vm1765 = vcmp.lt.s32.totalorder %v1763, %v1764
    %v1766 = vsel %vm1765, %v1763, %v1764
    %v1767 = vrot.slane %v1766, 2
    %vm1768 = vcmp.lt.s32.totalorder %v1766, %v1767
    %v1769 = vsel %vm1768, %v1766, %v1767
    %v1770 = vrot.slane %v1769, 1
    %vm1771 = vcmp.lt.s32.totalorder %v1769, %v1770
    %v1772 = vsel %vm1771, %v1769, %v1770
    %v1773 = vsel %vm1464, %v1758, 2147483647
    %v1774 = vsel %vm1466, %v1759, 2147483647
    %vm1775 = vcmp.lt.s32.totalorder %v1773, %v1774
    %v1776 = vsel %vm1775, %v1773, %v1774
    %v1777 = vrot.slane %v1776, 4
    %vm1778 = vcmp.lt.s32.totalorder %v1776, %v1777
    %v1779 = vsel %vm1778, %v1776, %v1777
    %v1780 = vrot.slane %v1779, 2
    %vm1781 = vcmp.lt.s32.totalorder %v1779, %v1780
    %v1782 = vsel %vm1781, %v1779, %v1780
    %v1783 = vrot.slane %v1782, 1
    %vm1784 = vcmp.lt.s32.totalorder %v1782, %v1783
    %v1785 = vsel %vm1784, %v1782, %v1783
    %v1786 = vrot.slane %v1522, 6
    %v1787 = vrot.slane %v1522, 7
    %v1790 = vadd.f32 %v1742, %v1786
    %v1791 = vadd.f32 %v1751, %v1787
    %v1793 = vrot.slane %v82, 1
    %v1795 = vperm.slane %v82, 0
    %v1796 = vperm.slane %v1793, 0
    %1797 = vset.pattern.permute.xlu0 0
    %1798 = vperm.xlu0 %1797, %v1795
    %v1799 = vpop.permute.xlu0 %1798
    %1801 = vset.pattern.permute.xlu0 0
    %1802 = vperm.xlu0 %1801, %v1796
    %v1803 = vpop.permute.xlu0 %1802
    %v1805 = vmul.f32 %v1799, %v39
    %v1806 = vmul.f32 %v1799, %v40
    %v1807 = vmul.f32 %v1803, %v39
    %v1808 = vmul.f32 %v1803, %v40
    %v1809 = vsub.f32 1.0, %v82
    %v1810 = vsub.f32 1.0, %v1793
    %v1813 = vperm.slane %v1809, 0
    %v1814 = vperm.slane %v1810, 0
    %1815 = vset.pattern.permute.xlu0 0
    %1816 = vperm.xlu0 %1815, %v1813
    %v1817 = vpop.permute.xlu0 %1816
    %1819 = vset.pattern.permute.xlu0 0
    %1820 = vperm.xlu0 %1819, %v1814
    %v1821 = vpop.permute.xlu0 %1820
    %v1823 = vmul.f32 %v1817, %v1386
    %v1824 = vmul.f32 %v1817, %v1387
    %v1825 = vmul.f32 %v1821, %v1386
    %v1826 = vmul.f32 %v1821, %v1387
    %v1827 = vadd.f32 %v1805, %v1823
    %v1828 = vadd.f32 %v1806, %v1824
    %v1829 = vadd.f32 %v1807, %v1825
    %v1830 = vadd.f32 %v1808, %v1826
    %v1831 = vperm.slane %v1790, 0
    %v1832 = vlaneseq
    %v1833 = vshrl.u32 %v1832, 7
    %1835 = vset.pattern.permute.xlu0 %v1833
    %1836 = vperm.xlu0 %1835, %v1831
    %v1837 = vpop.permute.xlu0 %1836
    %v1838 = vlaneseq
    %v1839 = vshrl.u32 %v1838, 7
    %v1840 = vadd.s32 %v1839, 8
    %1841 = vset.pattern.permute.xlu0 %v1840
    %1842 = vperm.xlu0 %1841, %v1831
    %v1843 = vpop.permute.xlu0 %1842
    %v1844 = vperm.slane %v1791, 0
    %v1845 = vlaneseq
    %v1846 = vshrl.u32 %v1845, 7
    %1848 = vset.pattern.permute.xlu0 %v1846
    %1849 = vperm.xlu0 %1848, %v1844
    %v1850 = vpop.permute.xlu0 %1849
    %v1851 = vlaneseq
    %v1852 = vshrl.u32 %v1851, 7
    %v1853 = vadd.s32 %v1852, 8
    %1854 = vset.pattern.permute.xlu0 %v1853
    %1855 = vperm.xlu0 %1854, %v1844
    %v1856 = vpop.permute.xlu0 %1855
    %v1857 = vadd.f32 %v1837, %v1827
    %v1858 = vadd.f32 %v1843, %v1828
    %v1859 = vadd.f32 %v1850, %v1829
    %v1860 = vadd.f32 %v1856, %v1830
    %v1861 = vsel %vm1464, %v1857, -inf
    %v1862 = vsel %vm1466, %v1858, -inf
    %v1863 = vmax.f32 %v1861, %v1862
    %v1864 = vrot.slane %v1863, 4
    %v1865 = vmax.f32 %v1863, %v1864
    %v1866 = vrot.slane %v1865, 2
    %v1867 = vmax.f32 %v1865, %v1866
    %v1868 = vrot.slane %v1867, 1
    %v1869 = vmax.f32 %v1867, %v1868
    %v1870 = vsel %vm1464, %v1859, -inf
    %v1871 = vsel %vm1466, %v1860, -inf
    %v1872 = vmax.f32 %v1870, %v1871
    %v1873 = vrot.slane %v1872, 4
    %v1874 = vmax.f32 %v1872, %v1873
    %v1875 = vrot.slane %v1874, 2
    %v1876 = vmax.f32 %v1874, %v1875
    %v1877 = vrot.slane %v1876, 1
    %v1878 = vmax.f32 %v1876, %v1877
    %vm1879 = vcmp.ge.f32.partialorder %v1857, %v1869
    %vm1880 = vcmp.ge.f32.partialorder %v1858, %v1869
    %vm1881 = vcmp.ge.f32.partialorder %v1859, %v1878
    %vm1882 = vcmp.ge.f32.partialorder %v1860, %v1878
    %v1883 = vsel %vm1879, %v1382, 15
    %v1884 = vsel %vm1880, %v1383, 15
    %v1885 = vsel %vm1881, %v1382, 15
    %v1886 = vsel %vm1882, %v1383, 15
    %v1887 = vsel %vm1464, %v1883, 2147483647
    %v1888 = vsel %vm1466, %v1884, 2147483647
    %vm1889 = vcmp.lt.s32.totalorder %v1887, %v1888
    %v1890 = vsel %vm1889, %v1887, %v1888
    %v1891 = vrot.slane %v1890, 4
    %vm1892 = vcmp.lt.s32.totalorder %v1890, %v1891
    %v1893 = vsel %vm1892, %v1890, %v1891
    %v1894 = vrot.slane %v1893, 2
    %vm1895 = vcmp.lt.s32.totalorder %v1893, %v1894
    %v1896 = vsel %vm1895, %v1893, %v1894
    %v1897 = vrot.slane %v1896, 1
    %vm1898 = vcmp.lt.s32.totalorder %v1896, %v1897
    %v1899 = vsel %vm1898, %v1896, %v1897
    %v1900 = vsel %vm1464, %v1885, 2147483647
    %v1901 = vsel %vm1466, %v1886, 2147483647
    %vm1902 = vcmp.lt.s32.totalorder %v1900, %v1901
    %v1903 = vsel %vm1902, %v1900, %v1901
    %v1904 = vrot.slane %v1903, 4
    %vm1905 = vcmp.lt.s32.totalorder %v1903, %v1904
    %v1906 = vsel %vm1905, %v1903, %v1904
    %v1907 = vrot.slane %v1906, 2
    %vm1908 = vcmp.lt.s32.totalorder %v1906, %v1907
    %v1909 = vsel %vm1908, %v1906, %v1907
    %v1910 = vrot.slane %v1909, 1
    %vm1911 = vcmp.lt.s32.totalorder %v1909, %v1910
    %v1912 = vsel %vm1911, %v1909, %v1910
    %1913 = vset.pattern.permute.xlu0 0
    %1914 = vperm.xlu0 %1913, %v82
    %v1915 = vpop.permute.xlu0 %1914
    %v1917 = vmul.f32 %v1915, %v1380
    %v1919 = vrot.slane %v1917, 1
    %v1922 = vadd.f32 %v1869, %v1917
    %v1923 = vadd.f32 %v1878, %v1919
    %1924 = vst [vmem:[#allocation1] sm:$0xff] %v82
    %s1925 = scalar_lea.vmem [#allocation1], 2
    %v1926 = vld [vmem:[%s1925] ss:$9 sm:$0xff]
    %s1927 = scalar_lea.vmem [#allocation1], 3
    %v1928 = vld [vmem:[%s1927] ss:$9 sm:$0xff]
    %v1931 = vperm.slane %v1926, 0
    %v1932 = vperm.slane %v1928, 0
    %1933 = vset.pattern.permute.xlu0 0
    %1934 = vperm.xlu0 %1933, %v1931
    %v1935 = vpop.permute.xlu0 %1934
    %1937 = vset.pattern.permute.xlu0 0
    %1938 = vperm.xlu0 %1937, %v1932
    %v1939 = vpop.permute.xlu0 %1938
    %v1941 = vmul.f32 %v1935, %v39
    %v1942 = vmul.f32 %v1935, %v40
    %v1943 = vmul.f32 %v1939, %v39
    %v1944 = vmul.f32 %v1939, %v40
    %v1945 = vsub.f32 1.0, %v1926
    %v1946 = vsub.f32 1.0, %v1928
    %v1949 = vperm.slane %v1945, 0
    %v1950 = vperm.slane %v1946, 0
    %1951 = vset.pattern.permute.xlu0 0
    %1952 = vperm.xlu0 %1951, %v1949
    %v1953 = vpop.permute.xlu0 %1952
    %1955 = vset.pattern.permute.xlu0 0
    %1956 = vperm.xlu0 %1955, %v1950
    %v1957 = vpop.permute.xlu0 %1956
    %v1959 = vmul.f32 %v1953, %v1386
    %v1960 = vmul.f32 %v1953, %v1387
    %v1961 = vmul.f32 %v1957, %v1386
    %v1962 = vmul.f32 %v1957, %v1387
    %v1963 = vadd.f32 %v1941, %v1959
    %v1964 = vadd.f32 %v1942, %v1960
    %v1965 = vadd.f32 %v1943, %v1961
    %v1966 = vadd.f32 %v1944, %v1962
    %v1967 = vperm.slane %v1922, 0
    %v1968 = vlaneseq
    %v1969 = vshrl.u32 %v1968, 7
    %1971 = vset.pattern.permute.xlu0 %v1969
    %1972 = vperm.xlu0 %1971, %v1967
    %v1973 = vpop.permute.xlu0 %1972
    %v1974 = vlaneseq
    %v1975 = vshrl.u32 %v1974, 7
    %v1976 = vadd.s32 %v1975, 8
    %1977 = vset.pattern.permute.xlu0 %v1976
    %1978 = vperm.xlu0 %1977, %v1967
    %v1979 = vpop.permute.xlu0 %1978
    %v1980 = vperm.slane %v1923, 0
    %v1981 = vlaneseq
    %v1982 = vshrl.u32 %v1981, 7
    %1984 = vset.pattern.permute.xlu0 %v1982
    %1985 = vperm.xlu0 %1984, %v1980
    %v1986 = vpop.permute.xlu0 %1985
    %v1987 = vlaneseq
    %v1988 = vshrl.u32 %v1987, 7
    %v1989 = vadd.s32 %v1988, 8
    %1990 = vset.pattern.permute.xlu0 %v1989
    %1991 = vperm.xlu0 %1990, %v1980
    %v1992 = vpop.permute.xlu0 %1991
    %v1993 = vadd.f32 %v1973, %v1963
    %v1994 = vadd.f32 %v1979, %v1964
    %v1995 = vadd.f32 %v1986, %v1965
    %v1996 = vadd.f32 %v1992, %v1966
    %v1997 = vsel %vm1464, %v1993, -inf
    %v1998 = vsel %vm1466, %v1994, -inf
    %v1999 = vmax.f32 %v1997, %v1998
    %v2000 = vrot.slane %v1999, 4
    %v2001 = vmax.f32 %v1999, %v2000
    %v2002 = vrot.slane %v2001, 2
    %v2003 = vmax.f32 %v2001, %v2002
    %v2004 = vrot.slane %v2003, 1
    %v2005 = vmax.f32 %v2003, %v2004
    %v2006 = vsel %vm1464, %v1995, -inf
    %v2007 = vsel %vm1466, %v1996, -inf
    %v2008 = vmax.f32 %v2006, %v2007
    %v2009 = vrot.slane %v2008, 4
    %v2010 = vmax.f32 %v2008, %v2009
    %v2011 = vrot.slane %v2010, 2
    %v2012 = vmax.f32 %v2010, %v2011
    %v2013 = vrot.slane %v2012, 1
    %v2014 = vmax.f32 %v2012, %v2013
    %vm2015 = vcmp.ge.f32.partialorder %v1993, %v2005
    %vm2016 = vcmp.ge.f32.partialorder %v1994, %v2005
    %vm2017 = vcmp.ge.f32.partialorder %v1995, %v2014
    %vm2018 = vcmp.ge.f32.partialorder %v1996, %v2014
    %v2019 = vsel %vm2015, %v1382, 15
    %v2020 = vsel %vm2016, %v1383, 15
    %v2021 = vsel %vm2017, %v1382, 15
    %v2022 = vsel %vm2018, %v1383, 15
    %v2023 = vsel %vm1464, %v2019, 2147483647
    %v2024 = vsel %vm1466, %v2020, 2147483647
    %vm2025 = vcmp.lt.s32.totalorder %v2023, %v2024
    %v2026 = vsel %vm2025, %v2023, %v2024
    %v2027 = vrot.slane %v2026, 4
    %vm2028 = vcmp.lt.s32.totalorder %v2026, %v2027
    %v2029 = vsel %vm2028, %v2026, %v2027
    %v2030 = vrot.slane %v2029, 2
    %vm2031 = vcmp.lt.s32.totalorder %v2029, %v2030
    %v2032 = vsel %vm2031, %v2029, %v2030
    %v2033 = vrot.slane %v2032, 1
    %vm2034 = vcmp.lt.s32.totalorder %v2032, %v2033
    %v2035 = vsel %vm2034, %v2032, %v2033
    %v2036 = vsel %vm1464, %v2021, 2147483647
    %v2037 = vsel %vm1466, %v2022, 2147483647
    %vm2038 = vcmp.lt.s32.totalorder %v2036, %v2037
    %v2039 = vsel %vm2038, %v2036, %v2037
    %v2040 = vrot.slane %v2039, 4
    %vm2041 = vcmp.lt.s32.totalorder %v2039, %v2040
    %v2042 = vsel %vm2041, %v2039, %v2040
    %v2043 = vrot.slane %v2042, 2
    %vm2044 = vcmp.lt.s32.totalorder %v2042, %v2043
    %v2045 = vsel %vm2044, %v2042, %v2043
    %v2046 = vrot.slane %v2045, 1
    %vm2047 = vcmp.lt.s32.totalorder %v2045, %v2046
    %v2048 = vsel %vm2047, %v2045, %v2046
    %v2049 = vrot.slane %v1917, 2
    %v2050 = vrot.slane %v1917, 3
    %v2053 = vadd.f32 %v2005, %v2049
    %v2054 = vadd.f32 %v2014, %v2050
    %2055 = vst [vmem:[#allocation1] sm:$0xff] %v82
    %s2056 = scalar_lea.vmem [#allocation1], 4
    %v2057 = vld [vmem:[%s2056] ss:$9 sm:$0xff]
    %s2058 = scalar_lea.vmem [#allocation1], 5
    %v2059 = vld [vmem:[%s2058] ss:$9 sm:$0xff]
    %v2062 = vperm.slane %v2057, 0
    %v2063 = vperm.slane %v2059, 0
    %2064 = vset.pattern.permute.xlu0 0
    %2065 = vperm.xlu0 %2064, %v2062
    %v2066 = vpop.permute.xlu0 %2065
    %2068 = vset.pattern.permute.xlu0 0
    %2069 = vperm.xlu0 %2068, %v2063
    %v2070 = vpop.permute.xlu0 %2069
    %v2072 = vmul.f32 %v2066, %v39
    %v2073 = vmul.f32 %v2066, %v40
    %v2074 = vmul.f32 %v2070, %v39
    %v2075 = vmul.f32 %v2070, %v40
    %v2076 = vsub.f32 1.0, %v2057
    %v2077 = vsub.f32 1.0, %v2059
    %v2080 = vperm.slane %v2076, 0
    %v2081 = vperm.slane %v2077, 0
    %2082 = vset.pattern.permute.xlu0 0
    %2083 = vperm.xlu0 %2082, %v2080
    %v2084 = vpop.permute.xlu0 %2083
    %2086 = vset.pattern.permute.xlu0 0
    %2087 = vperm.xlu0 %2086, %v2081
    %v2088 = vpop.permute.xlu0 %2087
    %v2090 = vmul.f32 %v2084, %v1386
    %v2091 = vmul.f32 %v2084, %v1387
    %v2092 = vmul.f32 %v2088, %v1386
    %v2093 = vmul.f32 %v2088, %v1387
    %v2094 = vadd.f32 %v2072, %v2090
    %v2095 = vadd.f32 %v2073, %v2091
    %v2096 = vadd.f32 %v2074, %v2092
    %v2097 = vadd.f32 %v2075, %v2093
    %v2098 = vperm.slane %v2053, 0
    %v2099 = vlaneseq
    %v2100 = vshrl.u32 %v2099, 7
    %2102 = vset.pattern.permute.xlu0 %v2100
    %2103 = vperm.xlu0 %2102, %v2098
    %v2104 = vpop.permute.xlu0 %2103
    %v2105 = vlaneseq
    %v2106 = vshrl.u32 %v2105, 7
    %v2107 = vadd.s32 %v2106, 8
    %2108 = vset.pattern.permute.xlu0 %v2107
    %2109 = vperm.xlu0 %2108, %v2098
    %v2110 = vpop.permute.xlu0 %2109
    %v2111 = vperm.slane %v2054, 0
    %v2112 = vlaneseq
    %v2113 = vshrl.u32 %v2112, 7
    %2115 = vset.pattern.permute.xlu0 %v2113
    %2116 = vperm.xlu0 %2115, %v2111
    %v2117 = vpop.permute.xlu0 %2116
    %v2118 = vlaneseq
    %v2119 = vshrl.u32 %v2118, 7
    %v2120 = vadd.s32 %v2119, 8
    %2121 = vset.pattern.permute.xlu0 %v2120
    %2122 = vperm.xlu0 %2121, %v2111
    %v2123 = vpop.permute.xlu0 %2122
    %v2124 = vadd.f32 %v2104, %v2094
    %v2125 = vadd.f32 %v2110, %v2095
    %v2126 = vadd.f32 %v2117, %v2096
    %v2127 = vadd.f32 %v2123, %v2097
    %v2128 = vsel %vm1464, %v2124, -inf
    %v2129 = vsel %vm1466, %v2125, -inf
    %v2130 = vmax.f32 %v2128, %v2129
    %v2131 = vrot.slane %v2130, 4
    %v2132 = vmax.f32 %v2130, %v2131
    %v2133 = vrot.slane %v2132, 2
    %v2134 = vmax.f32 %v2132, %v2133
    %v2135 = vrot.slane %v2134, 1
    %v2136 = vmax.f32 %v2134, %v2135
    %v2137 = vsel %vm1464, %v2126, -inf
    %v2138 = vsel %vm1466, %v2127, -inf
    %v2139 = vmax.f32 %v2137, %v2138
    %v2140 = vrot.slane %v2139, 4
    %v2141 = vmax.f32 %v2139, %v2140
    %v2142 = vrot.slane %v2141, 2
    %v2143 = vmax.f32 %v2141, %v2142
    %v2144 = vrot.slane %v2143, 1
    %v2145 = vmax.f32 %v2143, %v2144
    %vm2146 = vcmp.ge.f32.partialorder %v2124, %v2136
    %vm2147 = vcmp.ge.f32.partialorder %v2125, %v2136
    %vm2148 = vcmp.ge.f32.partialorder %v2126, %v2145
    %vm2149 = vcmp.ge.f32.partialorder %v2127, %v2145
    %v2150 = vsel %vm2146, %v1382, 15
    %v2151 = vsel %vm2147, %v1383, 15
    %v2152 = vsel %vm2148, %v1382, 15
    %v2153 = vsel %vm2149, %v1383, 15
    %v2154 = vsel %vm1464, %v2150, 2147483647
    %v2155 = vsel %vm1466, %v2151, 2147483647
    %vm2156 = vcmp.lt.s32.totalorder %v2154, %v2155
    %v2157 = vsel %vm2156, %v2154, %v2155
    %v2158 = vrot.slane %v2157, 4
    %vm2159 = vcmp.lt.s32.totalorder %v2157, %v2158
    %v2160 = vsel %vm2159, %v2157, %v2158
    %v2161 = vrot.slane %v2160, 2
    %vm2162 = vcmp.lt.s32.totalorder %v2160, %v2161
    %v2163 = vsel %vm2162, %v2160, %v2161
    %v2164 = vrot.slane %v2163, 1
    %vm2165 = vcmp.lt.s32.totalorder %v2163, %v2164
    %v2166 = vsel %vm2165, %v2163, %v2164
    %v2167 = vsel %vm1464, %v2152, 2147483647
    %v2168 = vsel %vm1466, %v2153, 2147483647
    %vm2169 = vcmp.lt.s32.totalorder %v2167, %v2168
    %v2170 = vsel %vm2169, %v2167, %v2168
    %v2171 = vrot.slane %v2170, 4
    %vm2172 = vcmp.lt.s32.totalorder %v2170, %v2171
    %v2173 = vsel %vm2172, %v2170, %v2171
    %v2174 = vrot.slane %v2173, 2
    %vm2175 = vcmp.lt.s32.totalorder %v2173, %v2174
    %v2176 = vsel %vm2175, %v2173, %v2174
    %v2177 = vrot.slane %v2176, 1
    %vm2178 = vcmp.lt.s32.totalorder %v2176, %v2177
    %v2179 = vsel %vm2178, %v2176, %v2177
    %v2180 = vrot.slane %v1917, 4
    %v2181 = vrot.slane %v1917, 5
    %v2184 = vadd.f32 %v2136, %v2180
    %v2185 = vadd.f32 %v2145, %v2181
    %2186 = vst [vmem:[#allocation1] sm:$0xff] %v82
    %s2187 = scalar_lea.vmem [#allocation1], 6
    %v2188 = vld [vmem:[%s2187] ss:$9 sm:$0xff]
    %s2189 = scalar_lea.vmem [#allocation1], 7
    %v2190 = vld [vmem:[%s2189] ss:$9 sm:$0xff]
    %v2193 = vperm.slane %v2188, 0
    %v2194 = vperm.slane %v2190, 0
    %2195 = vset.pattern.permute.xlu0 0
    %2196 = vperm.xlu0 %2195, %v2193
    %v2197 = vpop.permute.xlu0 %2196
    %2199 = vset.pattern.permute.xlu0 0
    %2200 = vperm.xlu0 %2199, %v2194
    %v2201 = vpop.permute.xlu0 %2200
    %v2203 = vmul.f32 %v2197, %v39
    %v2204 = vmul.f32 %v2197, %v40
    %v2205 = vmul.f32 %v2201, %v39
    %v2206 = vmul.f32 %v2201, %v40
    %v2207 = vsub.f32 1.0, %v2188
    %v2208 = vsub.f32 1.0, %v2190
    %v2211 = vperm.slane %v2207, 0
    %v2212 = vperm.slane %v2208, 0
    %2213 = vset.pattern.permute.xlu0 0
    %2214 = vperm.xlu0 %2213, %v2211
    %v2215 = vpop.permute.xlu0 %2214
    %2217 = vset.pattern.permute.xlu0 0
    %2218 = vperm.xlu0 %2217, %v2212
    %v2219 = vpop.permute.xlu0 %2218
    %v2221 = vmul.f32 %v2215, %v1386
    %v2222 = vmul.f32 %v2215, %v1387
    %v2223 = vmul.f32 %v2219, %v1386
    %v2224 = vmul.f32 %v2219, %v1387
    %v2225 = vadd.f32 %v2203, %v2221
    %v2226 = vadd.f32 %v2204, %v2222
    %v2227 = vadd.f32 %v2205, %v2223
    %v2228 = vadd.f32 %v2206, %v2224
    %v2229 = vperm.slane %v2184, 0
    %v2230 = vlaneseq
    %v2231 = vshrl.u32 %v2230, 7
    %2233 = vset.pattern.permute.xlu0 %v2231
    %2234 = vperm.xlu0 %2233, %v2229
    %v2235 = vpop.permute.xlu0 %2234
    %v2236 = vlaneseq
    %v2237 = vshrl.u32 %v2236, 7
    %v2238 = vadd.s32 %v2237, 8
    %2239 = vset.pattern.permute.xlu0 %v2238
    %2240 = vperm.xlu0 %2239, %v2229
    %v2241 = vpop.permute.xlu0 %2240
    %v2242 = vperm.slane %v2185, 0
    %v2243 = vlaneseq
    %v2244 = vshrl.u32 %v2243, 7
    %2246 = vset.pattern.permute.xlu0 %v2244
    %2247 = vperm.xlu0 %2246, %v2242
    %v2248 = vpop.permute.xlu0 %2247
    %v2249 = vlaneseq
    %v2250 = vshrl.u32 %v2249, 7
    %v2251 = vadd.s32 %v2250, 8
    %2252 = vset.pattern.permute.xlu0 %v2251
    %2253 = vperm.xlu0 %2252, %v2242
    %v2254 = vpop.permute.xlu0 %2253
    %v2255 = vadd.f32 %v2235, %v2225
    %v2256 = vadd.f32 %v2241, %v2226
    %v2257 = vadd.f32 %v2248, %v2227
    %v2258 = vadd.f32 %v2254, %v2228
    %v2259 = vsel %vm1464, %v2255, -inf
    %v2260 = vsel %vm1466, %v2256, -inf
    %v2261 = vmax.f32 %v2259, %v2260
    %v2262 = vrot.slane %v2261, 4
    %v2263 = vmax.f32 %v2261, %v2262
    %v2264 = vrot.slane %v2263, 2
    %v2265 = vmax.f32 %v2263, %v2264
    %v2266 = vrot.slane %v2265, 1
    %v2267 = vmax.f32 %v2265, %v2266
    %v2268 = vsel %vm1464, %v2257, -inf
    %v2269 = vsel %vm1466, %v2258, -inf
    %v2270 = vmax.f32 %v2268, %v2269
    %v2271 = vrot.slane %v2270, 4
    %v2272 = vmax.f32 %v2270, %v2271
    %v2273 = vrot.slane %v2272, 2
    %v2274 = vmax.f32 %v2272, %v2273
    %v2275 = vrot.slane %v2274, 1
    %v2276 = vmax.f32 %v2274, %v2275
    %vm2277 = vcmp.ge.f32.partialorder %v2255, %v2267
    %vm2278 = vcmp.ge.f32.partialorder %v2256, %v2267
    %vm2279 = vcmp.ge.f32.partialorder %v2257, %v2276
    %vm2280 = vcmp.ge.f32.partialorder %v2258, %v2276
    %v2281 = vsel %vm2277, %v1382, 15
    %v2282 = vsel %vm2278, %v1383, 15
    %v2283 = vsel %vm2279, %v1382, 15
    %v2284 = vsel %vm2280, %v1383, 15
    %v2285 = vsel %vm1464, %v2281, 2147483647
    %v2286 = vsel %vm1466, %v2282, 2147483647
    %vm2287 = vcmp.lt.s32.totalorder %v2285, %v2286
    %v2288 = vsel %vm2287, %v2285, %v2286
    %v2289 = vrot.slane %v2288, 4
    %vm2290 = vcmp.lt.s32.totalorder %v2288, %v2289
    %v2291 = vsel %vm2290, %v2288, %v2289
    %v2292 = vrot.slane %v2291, 2
    %vm2293 = vcmp.lt.s32.totalorder %v2291, %v2292
    %v2294 = vsel %vm2293, %v2291, %v2292
    %v2295 = vrot.slane %v2294, 1
    %vm2296 = vcmp.lt.s32.totalorder %v2294, %v2295
    %v2297 = vsel %vm2296, %v2294, %v2295
    %v2298 = vsel %vm1464, %v2283, 2147483647
    %v2299 = vsel %vm1466, %v2284, 2147483647
    %vm2300 = vcmp.lt.s32.totalorder %v2298, %v2299
    %v2301 = vsel %vm2300, %v2298, %v2299
    %v2302 = vrot.slane %v2301, 4
    %vm2303 = vcmp.lt.s32.totalorder %v2301, %v2302
    %v2304 = vsel %vm2303, %v2301, %v2302
    %v2305 = vrot.slane %v2304, 2
    %vm2306 = vcmp.lt.s32.totalorder %v2304, %v2305
    %v2307 = vsel %vm2306, %v2304, %v2305
    %v2308 = vrot.slane %v2307, 1
    %vm2309 = vcmp.lt.s32.totalorder %v2307, %v2308
    %v2310 = vsel %vm2309, %v2307, %v2308
    %v2311 = vrot.slane %v1917, 6
    %v2312 = vrot.slane %v1917, 7
    %v2315 = vadd.f32 %v2267, %v2311
    %v2316 = vadd.f32 %v2276, %v2312
    %v2317 = vperm.slane %v38, 0
    %v2318 = vadd.f32 %v2315, %v2317
    %v2319 = vadd.f32 %v2316, %v2317
    %v2322 = vrot.slane %v2319, 7
    %vm2323 = vcmask 1041409
    %v2324 = vsel %vm2323, %v2322, %v2318
    %vm2326 = vcmask 115712
    %v2327 = vsel %vm2326, %v2324, -inf
    %2328 = vmax.xlane.f32.xlu0 %v2327
    %v2329 = vpop.xlane.xlu0 %2328
    %v2331 = vrot.slane %v2329, 1
    %vm2334 = vcmp.ge.f32.partialorder %v2318, %v2329
    %vm2335 = vcmp.ge.f32.partialorder %v2319, %v2331
    %v2336 = vsel %vm2334, %v1312, 15
    %v2337 = vsel %vm2335, %v1312, 15
    %v2338 = vrot.slane %v2337, 7
    %v2339 = vsel %vm2323, %v2338, %v2336
    %v2340 = vsel %vm2326, %v2339, 2147483647
    %v2341 = vand.u32 %v2340, 65535
    %v2342 = vshra.s32 %v2340, 16
    %v2343 = vcvt.s32.f32 %v2341
    %v2344 = vcvt.s32.f32 %v2342
    %2345 = vmin.xlane.f32.xlu0 %v2344
    %v2346 = vpop.xlane.xlu0 %2345
    %vm2347 = vcmp.eq.f32.partialorder %v2344, %v2346
    %v2348 = vsel %vm2347, %v2343, inf
    %2349 = vmin.xlane.f32.xlu0 %v2348
    %v2350 = vpop.xlane.xlu0 %2349
    %v2351 = vcvt.f32.s32 %v2350
    %v2352 = vcvt.f32.s32 %v2346
    %v2353 = vshll.u32 %v2352, 16
    %v2354 = vadd.s32 %v2353, %v2351
    %vm2355 = vcmp.eq.s32.totalorder %v1312, 7
    %v2356 = vsel %vm2355, %v2354, 0
    %vm2357 = vcmp.eq.s32.totalorder %v1312, %v2354
    %v2358 = vsel %vm2323, %v2310, %v2297
    %v2359 = vsel %vm2357, %v2358, 0
    %v2360 = vsel %vm2326, %v2359, 0
    %v2361 = vand.u32 %v2360, 65535
    %v2362 = vshrl.u32 %v2360, 16
    %v2363 = vcvt.s32.f32 %v2361
    %v2364 = vcvt.s32.f32 %v2362
    %2365 = vadd.xlane.f32.xlu0 %v2363
    %v2366 = vpop.xlane.xlu0 %2365
    %2367 = vadd.xlane.f32.xlu0 %v2364
    %v2368 = vpop.xlane.xlu0 %2367
    %v2369 = vcvt.f32.s32 %v2366
    %v2370 = vcvt.f32.s32 %v2368
    %v2371 = vshll.u32 %v2370, 16
    %v2372 = vadd.s32 %v2371, %v2369
    %vm2373 = vcmp.eq.s32.totalorder %v1312, 6
    %v2374 = vsel %vm2373, %v2372, %v2356
    %vm2375 = vcmp.eq.s32.totalorder %v1312, %v2372
    %v2376 = vsel %vm2323, %v2179, %v2166
    %v2377 = vsel %vm2375, %v2376, 0
    %v2378 = vsel %vm2326, %v2377, 0
    %v2379 = vand.u32 %v2378, 65535
    %v2380 = vshrl.u32 %v2378, 16
    %v2381 = vcvt.s32.f32 %v2379
    %v2382 = vcvt.s32.f32 %v2380
    %2383 = vadd.xlane.f32.xlu0 %v2381
    %v2384 = vpop.xlane.xlu0 %2383
    %2385 = vadd.xlane.f32.xlu0 %v2382
    %v2386 = vpop.xlane.xlu0 %2385
    %v2387 = vcvt.f32.s32 %v2384
    %v2388 = vcvt.f32.s32 %v2386
    %v2389 = vshll.u32 %v2388, 16
    %v2390 = vadd.s32 %v2389, %v2387
    %vm2391 = vcmp.eq.s32.totalorder %v1312, 5
    %v2392 = vsel %vm2391, %v2390, %v2374
    %vm2393 = vcmp.eq.s32.totalorder %v1312, %v2390
    %v2394 = vsel %vm2323, %v2048, %v2035
    %v2395 = vsel %vm2393, %v2394, 0
    %v2396 = vsel %vm2326, %v2395, 0
    %v2397 = vand.u32 %v2396, 65535
    %v2398 = vshrl.u32 %v2396, 16
    %v2399 = vcvt.s32.f32 %v2397
    %v2400 = vcvt.s32.f32 %v2398
    %2401 = vadd.xlane.f32.xlu0 %v2399
    %v2402 = vpop.xlane.xlu0 %2401
    %2403 = vadd.xlane.f32.xlu0 %v2400
    %v2404 = vpop.xlane.xlu0 %2403
    %v2405 = vcvt.f32.s32 %v2402
    %v2406 = vcvt.f32.s32 %v2404
    %v2407 = vshll.u32 %v2406, 16
    %v2408 = vadd.s32 %v2407, %v2405
    %vm2409 = vcmp.eq.s32.totalorder %v1312, 4
    %v2410 = vsel %vm2409, %v2408, %v2392
    %vm2411 = vcmp.eq.s32.totalorder %v1312, %v2408
    %v2412 = vsel %vm2323, %v1912, %v1899
    %v2413 = vsel %vm2411, %v2412, 0
    %v2414 = vsel %vm2326, %v2413, 0
    %v2415 = vand.u32 %v2414, 65535
    %v2416 = vshrl.u32 %v2414, 16
    %v2417 = vcvt.s32.f32 %v2415
    %v2418 = vcvt.s32.f32 %v2416
    %2419 = vadd.xlane.f32.xlu0 %v2417
    %v2420 = vpop.xlane.xlu0 %2419
    %2421 = vadd.xlane.f32.xlu0 %v2418
    %v2422 = vpop.xlane.xlu0 %2421
    %v2423 = vcvt.f32.s32 %v2420
    %v2424 = vcvt.f32.s32 %v2422
    %v2425 = vshll.u32 %v2424, 16
    %v2426 = vadd.s32 %v2425, %v2423
    %vm2427 = vcmp.eq.s32.totalorder %v1312, 3
    %v2428 = vsel %vm2427, %v2426, %v2410
    %vm2429 = vcmp.eq.s32.totalorder %v1312, %v2426
    %v2430 = vsel %vm2323, %v1785, %v1772
    %v2431 = vsel %vm2429, %v2430, 0
    %v2432 = vsel %vm2326, %v2431, 0
    %v2433 = vand.u32 %v2432, 65535
    %v2434 = vshrl.u32 %v2432, 16
    %v2435 = vcvt.s32.f32 %v2433
    %v2436 = vcvt.s32.f32 %v2434
    %2437 = vadd.xlane.f32.xlu0 %v2435
    %v2438 = vpop.xlane.xlu0 %2437
    %2439 = vadd.xlane.f32.xlu0 %v2436
    %v2440 = vpop.xlane.xlu0 %2439
    %v2441 = vcvt.f32.s32 %v2438
    %v2442 = vcvt.f32.s32 %v2440
    %v2443 = vshll.u32 %v2442, 16
    %v2444 = vadd.s32 %v2443, %v2441
    %vm2445 = vcmp.eq.s32.totalorder %v1312, 2
    %v2446 = vsel %vm2445, %v2444, %v2428
    %vm2447 = vcmp.eq.s32.totalorder %v1312, %v2444
    %v2448 = vsel %vm2323, %v1654, %v1641
    %v2449 = vsel %vm2447, %v2448, 0
    %v2450 = vsel %vm2326, %v2449, 0
    %v2451 = vand.u32 %v2450, 65535
    %v2452 = vshrl.u32 %v2450, 16
    %v2453 = vcvt.s32.f32 %v2451
    %v2454 = vcvt.s32.f32 %v2452
    %2455 = vadd.xlane.f32.xlu0 %v2453
    %v2456 = vpop.xlane.xlu0 %2455
    %2457 = vadd.xlane.f32.xlu0 %v2454
    %v2458 = vpop.xlane.xlu0 %2457
    %v2459 = vcvt.f32.s32 %v2456
    %v2460 = vcvt.f32.s32 %v2458
    %v2461 = vshll.u32 %v2460, 16
    %v2462 = vadd.s32 %v2461, %v2459
    %vm2463 = vcmp.eq.s32.totalorder %v1312, 1
    %v2464 = vsel %vm2463, %v2462, %v2446
    %vm2465 = vcmp.eq.s32.totalorder %v1312, %v2462
    %v2466 = vsel %vm2323, %v1517, %v1504
    %v2467 = vsel %vm2465, %v2466, 0
    %v2468 = vsel %vm2326, %v2467, 0
    %v2469 = vand.u32 %v2468, 65535
    %v2470 = vshrl.u32 %v2468, 16
    %v2471 = vcvt.s32.f32 %v2469
    %v2472 = vcvt.s32.f32 %v2470
    %2473 = vadd.xlane.f32.xlu0 %v2471
    %v2474 = vpop.xlane.xlu0 %2473
    %2475 = vadd.xlane.f32.xlu0 %v2472
    %v2476 = vpop.xlane.xlu0 %2475
    %v2477 = vcvt.f32.s32 %v2474
    %v2478 = vcvt.f32.s32 %v2476
    %v2479 = vshll.u32 %v2478, 16
    %v2480 = vadd.s32 %v2479, %v2477
    %vm2481 = vcmp.eq.s32.totalorder %v1312, 0
    %v2482 = vsel %vm2481, %v2480, %v2464
    %vm2483 = vcmask 58368
    %2484 = vst.msk [vmem:[#allocation2] sm:$0x3] %vm2483, %v2482
    // Predicated region
    $region18: #{model1_forward.1} parent=1 // pred_check
      _
    $region19: #{model1_forward.1} parent=1 // pred_check_branch
      %2486 = sbr.rel (0) target = $region21
    $region20: #{model1_forward.1} parent=1 // pred_region
      %2488 = vsyncadd [#allocation3], 0
      %s2490 = sshll.u32 [#allocation2], 4
      %s2491 = int_to_ptr.vmem [resolvable:$true] %s2490
      %s2492 = sshll.u32 %s4, 4
      %s2493 = int_to_ptr.hbm [resolvable:$true] %s2492
      %2495 = dma.vmem_to_hbm [thread:$0]  %s2491, 32, %s2493, [#allocation3]
    $region21: #{model1_forward.1} parent=1 // pred_fallthru
      _
    // Predicated region
    $region22: #{model1_forward.1} parent=1 // pred_check
      _
    $region23: #{model1_forward.1} parent=1 // pred_check_branch
      %2497 = sbr.rel (0) target = $region25
    $region24: #{model1_forward.1} parent=1 // pred_region
      %2499 = dma.done [#allocation3], 32
    $region25: #{model1_forward.1} parent=1 // pred_fallthru
      _
    %2500 = vsyncpa [#allocation3], 1

</llo_original>
